<compile_context>
chip_gen: v7x
topology: tpu7x:2x2x1
jax: 0.10.0
libtpu: 0.0.40
codegen_flags: <defaults>
</compile_context>

<pallas_src>
import functools

import jax
import jax.numpy as jnp
from jax.experimental import pallas as pl
from jax.experimental.pallas import tpu as pltpu


ACT_DTYPE = jnp.bfloat16   # activation / MXU operand dtype
TM_DEFAULT = 512           # rows of the M tile (fits VMEM on v5e/v6e/v7x)
VMEM_LIMIT = 32 * 1024 * 1024


def _round_up(x, m):
    return (x + m - 1) // m * m


# ----------------------------------------------------------------------------
# Pallas kernel: one M-tile of  out = [ReLU](patches @ W + bias) [+ residual]
# ----------------------------------------------------------------------------
def _mm_tile_kernel(*refs, relu, has_residual):
    if has_residual:
        x_ref, w_ref, b_ref, r_ref, o_ref = refs
    else:
        x_ref, w_ref, b_ref, o_ref = refs
    acc = jnp.dot(x_ref[...], w_ref[...], preferred_element_type=jnp.float32)
    acc = acc + b_ref[...]                      # f32 epilogue
    if relu:
        acc = jnp.maximum(acc, 0.0)
    if has_residual:
        acc = acc + r_ref[...].astype(jnp.float32)
    o_ref[...] = acc.astype(o_ref.dtype)


def _fused_matmul(x2d, w2d, bias, *, relu=False, residual=None, tm=TM_DEFAULT):
    """out = act(x2d @ w2d + bias) [+ residual], M-tiled, lane-dense output."""
    M, K = x2d.shape
    Kw, N = w2d.shape
    assert Kw == K
    Np = _round_up(N, 128)                     # lane-dense output (>=128, x128)
    TM = min(tm, _round_up(M, 8))              # (8,128) tiling rule on M tile
    Mp = _round_up(M, TM)

    xp = x2d.astype(ACT_DTYPE)
    if Mp != M:
        xp = jnp.pad(xp, ((0, Mp - M), (0, 0)))
    wp = jnp.pad(w2d.astype(ACT_DTYPE), ((0, 0), (0, Np - N)))
    bp = jnp.pad(bias.astype(jnp.float32).reshape(1, N), ((0, 0), (0, Np - N)))

    args = [xp, wp, bp]
    in_specs = [
        pl.BlockSpec((TM, K), lambda i: (i, 0)),
        pl.BlockSpec((K, Np), lambda i: (0, 0)),
        pl.BlockSpec((1, Np), lambda i: (0, 0)),
    ]
    has_res = residual is not None
    res_bytes = 0
    if has_res:
        rp = jnp.pad(residual.astype(ACT_DTYPE), ((0, Mp - M), (0, Np - N)))
        args.append(rp)
        in_specs.append(pl.BlockSpec((TM, Np), lambda i: (i, 0)))
        res_bytes = Mp * Np * 2

    grid = (Mp // TM,)
    bytes_accessed = (Mp * K * 2 + K * Np * 2 + Np * 4 + Mp * Np * 2 + res_bytes)
    out = pl.pallas_call(
        functools.partial(_mm_tile_kernel, relu=relu, has_residual=has_res),
        grid=grid,
        in_specs=in_specs,
        out_specs=pl.BlockSpec((TM, Np), lambda i: (i, 0)),
        out_shape=jax.ShapeDtypeStruct((Mp, Np), ACT_DTYPE),
        compiler_params=pltpu.CompilerParams(
            dimension_semantics=("parallel",),
            vmem_limit_bytes=VMEM_LIMIT),
        cost_estimate=pl.CostEstimate(
            flops=2 * Mp * K * Np, transcendentals=0,
            bytes_accessed=bytes_accessed),
    )(*args)
    return out[:M, :N]


# ----------------------------------------------------------------------------
# Convolution wrappers (im2col / phase-interleave glue stays in XLA)
# ----------------------------------------------------------------------------
def conv2d(x, w, b, *, stride=1, padding=0, relu=False, residual=None):
    """torch.nn.Conv2d(..., stride, padding, bias=True) semantics, NHWC."""
    B, H, W, Cin = x.shape
    KH, KW, _, Cout = w.shape
    if isinstance(padding, int):
        padding = ((padding, padding), (padding, padding))
    (pt, pb), (pleft, pright) = padding
    xp = jnp.pad(x, ((0, 0), (pt, pb), (pleft, pright), (0, 0)))
    Hp, Wp = H + pt + pb, W + pleft + pright
    Ho = (Hp - KH) // stride + 1
    Wo = (Wp - KW) // stride + 1

    cols = []
    for ky in range(KH):
        for kx in range(KW):
            cols.append(
                xp[:, ky:ky + stride * (Ho - 1) + 1:stride,
                      kx:kx + stride * (Wo - 1) + 1:stride, :])
    patches = jnp.concatenate(cols, axis=-1).reshape(B * Ho * Wo, KH * KW * Cin)

    res = None
    if residual is not None:
        res = residual.reshape(B * Ho * Wo, Cout)
    out = _fused_matmul(patches, w.reshape(KH * KW * Cin, Cout), b,
                        relu=relu, residual=res)
    return out.reshape(B, Ho, Wo, Cout)


def conv_transpose2d(x, w, b):
    """torch.nn.ConvTranspose2d(k=3, stride=2, padding=1, output_padding=1).

    `w` (3,3,Cin,Cout) is stored as the equivalent stride-1 conv weight over
    the zero-stuffed input (synthetic weights).  Implemented as a sub-pixel /
    phase decomposition: one dense matmul over a 2x2 window with a combined
    (4*Cin, 4*Cout) per-phase weight — no zero-stuffing, no wasted MXU FLOPs.
    """
    B, H, W, Cin = x.shape
    Cout = w.shape[-1]
    xp = jnp.pad(x, ((0, 0), (0, 1), (0, 1), (0, 0)))     # bottom/right halo
    patches = jnp.concatenate(
        [xp[:, 0:H, 0:W, :], xp[:, 0:H, 1:W + 1, :],
         xp[:, 1:H + 1, 0:W, :], xp[:, 1:H + 1, 1:W + 1, :]], axis=-1)
    patches = patches.reshape(B * H * W, 4 * Cin)

    # combined weight: rows ordered (dy, dx, Cin), cols ordered (a, b, Cout)
    Wc = jnp.zeros((2, 2, Cin, 2, 2, Cout), w.dtype)
    Wc = Wc.at[0, 0, :, 0, 0, :].set(w[1, 1])
    Wc = Wc.at[0, 0, :, 0, 1, :].set(w[1, 0])
    Wc = Wc.at[0, 1, :, 0, 1, :].set(w[1, 2])
    Wc = Wc.at[0, 0, :, 1, 0, :].set(w[0, 1])
    Wc = Wc.at[1, 0, :, 1, 0, :].set(w[2, 1])
    Wc = Wc.at[0, 0, :, 1, 1, :].set(w[0, 0])
    Wc = Wc.at[0, 1, :, 1, 1, :].set(w[0, 2])
    Wc = Wc.at[1, 0, :, 1, 1, :].set(w[2, 0])
    Wc = Wc.at[1, 1, :, 1, 1, :].set(w[2, 2])
    Wc = Wc.reshape(4 * Cin, 4 * Cout)
    bc = jnp.tile(b, 4)

    out = _fused_matmul(patches, Wc, bc, relu=False)       # (B*H*W, 4*Cout)
    out = out.reshape(B, H, W, 2, 2, Cout)
    out = out.transpose(0, 1, 3, 2, 4, 5).reshape(B, 2 * H, 2 * W, Cout)
    return out


def resblock(x, p1, p2):
    """ResBlock(n, batch_norm=False): conv3x3 -> ReLU -> conv3x3, + identity."""
    (w1, b1), (w2, b2) = p1, p2
    h = conv2d(x, w1, b1, stride=1, padding=1, relu=True)
    return conv2d(h, w2, b2, stride=1, padding=1, relu=False, residual=x)


# ----------------------------------------------------------------------------
# RNNCell / Model forward
# ----------------------------------------------------------------------------
@functools.partial(jax.jit, static_argnames=("dual_cell", "infer"))
def rnncell_forward(p, x, h_last, *, dual_cell, infer):
    # F_B
    h = conv2d(x, *p['FB'][0], stride=1, padding=2)
    h = conv2d(h, *p['FB'][1], stride=2, padding=2)
    h = conv2d(h, *p['FB'][2], stride=2, padding=2)
    # cat([h, h_last], dim=1) in NCHW == channel-axis concat in NHWC
    h = jnp.concatenate([h, h_last], axis=-1)              # (B, H/4, W/4, 80)
    # F_R: 6 ResBlocks(80)
    for blk in p['FR']:
        h = resblock(h, blk[0], blk[1])
    out = None
    if (not dual_cell) and infer:
        o = conv_transpose2d(h, *p['FL'][0])
        o = conv_transpose2d(o, *p['FL'][1])
        out = conv2d(o, *p['FL'][2], stride=1, padding=2)  # (B, H, W, 3)
    # F_h
    hc = conv2d(h, *p['FH'][0], stride=1, padding=1)
    hc = resblock(hc, p['FH'][1][0], p['FH'][1][1])
    hc = conv2d(hc, *p['FH'][2], stride=1, padding=1)      # (B, H/4, W/4, 20)
    return out, hc


RATIO = 4
ITERS = 3


def model_forward(params, x):
    # x: (B, F, H, W, 3)
    B, F, H, W, _ = x.shape
    x = x.astype(ACT_DTYPE)
    hc = jnp.zeros((B, H // RATIO, W // RATIO, 20), ACT_DTYPE)
    outputs = []
    for i in range(F):
        frame = x[:, i]
        out0, hc = rnncell_forward(params['cell0'], frame, hc,
                                   dual_cell=True, infer=True)
        assert out0 is None
        out = None
        for j in range(ITERS):
            infer = (j == ITERS - 1)
            o, hc = rnncell_forward(params['cell1'], frame, hc,
                                    dual_cell=False, infer=infer)
            if infer:
                out = o
            else:
                assert o is None
        outputs.append(out)
    return jnp.stack(outputs, axis=1).astype(jnp.float32)  # (B, F, H, W, 3)


# ----------------------------------------------------------------------------
# Deterministic parameter initialization (synthetic weights)
# ----------------------------------------------------------------------------
def _init_conv(key, kh, kw, cin, cout):
    kw_, kb_ = jax.random.split(key)
    bound = 1.0 / float(kh * kw * cin) ** 0.5
    w = jax.random.uniform(kw_, (kh, kw, cin, cout), jnp.float32, -bound, bound)
    b = jax.random.uniform(kb_, (cout,), jnp.float32, -bound, bound)
    return w, b


def init_cell(key, dual_cell):
    it = iter(jax.random.split(key, 32))
    p = {}
    p['FB'] = [_init_conv(next(it), 5, 5, 3, 20),
               _init_conv(next(it), 5, 5, 20, 40),
               _init_conv(next(it), 5, 5, 40, 60)]
    p['FR'] = [(_init_conv(next(it), 3, 3, 80, 80),
                _init_conv(next(it), 3, 3, 80, 80)) for _ in range(6)]
    if not dual_cell:
        # ConvTranspose2d params stored as their equivalent stride-1 conv weights.
        p['FL'] = [_init_conv(next(it), 3, 3, 80, 40),
                   _init_conv(next(it), 3, 3, 40, 20),
                   _init_conv(next(it), 5, 5, 20, 3)]
    p['FH'] = [_init_conv(next(it), 3, 3, 80, 20),
               (_init_conv(next(it), 3, 3, 20, 20),
                _init_conv(next(it), 3, 3, 20, 20)),
               _init_conv(next(it), 3, 3, 20, 20)]
    return p


if __name__ == "__main__":
    key = jax.random.PRNGKey(0)
    k_in, k0, k1 = jax.random.split(key, 3)

    B, F, H, W = 2, 2, 16, 16   # height/width divisible by ratio=4
    x = jax.random.normal(k_in, (B, F, H, W, 3), jnp.float32)

    params = {'cell0': init_cell(k0, dual_cell=True),
              'cell1': init_cell(k1, dual_cell=False)}

    y = model_forward(params, x)
    y = jax.block_until_ready(y)
    assert y.shape == (B, F, H, W, 3), y.shape
    assert bool(jnp.all(jnp.isfinite(y)))
    print("KERNEL_OK")
</pallas_src>

<mosaic_0001>
module attributes {stable_mosaic.version = 11 : i64} {
  func.func @_mm_tile_kernel(%arg0: i32, %arg1: memref<512x75xbf16, #tpu.memory_space<vmem>>, %arg2: memref<75x128xbf16, #tpu.memory_space<vmem>>, %arg3: memref<1x128xf32, #tpu.memory_space<vmem>>, %arg4: memref<512x128xbf16, #tpu.memory_space<vmem>>) attributes {dimension_semantics = [#tpu.dimension_semantics<parallel>], iteration_bounds = array<i64: 1>, scalar_prefetch = 0 : i64, scratch_operands = 0 : i64, tpu.core_type = #tpu.core_type<tc>, window_params = [{transform_indices = @transform_0, window_bounds = array<i64: 512, 75>}, {pipeline_mode = #tpu.pipeline_mode<synchronous>, transform_indices = @transform_1, window_bounds = array<i64: 75, 128>}, {pipeline_mode = #tpu.pipeline_mode<synchronous>, transform_indices = @transform_2, window_bounds = array<i64: 1, 128>}, {transform_indices = @transform_3, window_bounds = array<i64: 512, 128>}]} {
    %c0 = arith.constant 0 : index
    %c0_0 = arith.constant 0 : index
    %0 = vector.load %arg1[%c0, %c0_0] : memref<512x75xbf16, #tpu.memory_space<vmem>>, vector<512x75xbf16>
    %c0_1 = arith.constant 0 : index
    %c0_2 = arith.constant 0 : index
    %1 = vector.load %arg2[%c0_1, %c0_2] : memref<75x128xbf16, #tpu.memory_space<vmem>>, vector<75x128xbf16>
    %cst = arith.constant dense<0.000000e+00> : vector<512x128xf32>
    %2 = tpu.matmul %0, %1, %cst {dimension_numbers = #tpu.dot_dimension_numbers<[1], [0], [0], [1], [0, 0, 1, 1], [], []>} : vector<512x75xbf16>, vector<75x128xbf16>, vector<512x128xf32> -> vector<512x128xf32>
    %c0_3 = arith.constant 0 : index
    %c0_4 = arith.constant 0 : index
    %3 = vector.load %arg3[%c0_3, %c0_4] : memref<1x128xf32, #tpu.memory_space<vmem>>, vector<1x128xf32>
    %4 = vector.broadcast %3 : vector<1x128xf32> to vector<512x128xf32>
    %5 = arith.addf %2, %4 : vector<512x128xf32>
    %6 = arith.truncf %5 : vector<512x128xf32> to vector<512x128xbf16>
    %c0_5 = arith.constant 0 : index
    %c0_6 = arith.constant 0 : index
    %7 = vector.load %arg4[%c0_5, %c0_6] : memref<512x128xbf16, #tpu.memory_space<vmem>>, vector<512x128xbf16>
    tpu.vector_store %arg4[%c0_5, %c0_6], %6 {strides = array<i32>} : memref<512x128xbf16, #tpu.memory_space<vmem>>, vector<512x128xbf16>,
    return
  }
  func.func @transform_0(%arg0: i32) -> (i32, i32) {
    %c0_i32 = arith.constant 0 : i32
    %c0_i32_0 = arith.constant 0 : i32
    return %arg0, %c0_i32 : i32, i32
  }
  func.func @transform_1(%arg0: i32) -> (i32, i32) {
    %c0_i32 = arith.constant 0 : i32
    %c0_i32_0 = arith.constant 0 : i32
    %c0_i32_1 = arith.constant 0 : i32
    return %c0_i32, %c0_i32_0 : i32, i32
  }
  func.func @transform_2(%arg0: i32) -> (i32, i32) {
    %c0_i32 = arith.constant 0 : i32
    %c0_i32_0 = arith.constant 0 : i32
    %c0_i32_1 = arith.constant 0 : i32
    return %c0_i32, %c0_i32_0 : i32, i32
  }
  func.func @transform_3(%arg0: i32) -> (i32, i32) {
    %c0_i32 = arith.constant 0 : i32
    %c0_i32_0 = arith.constant 0 : i32
    return %arg0, %c0_i32 : i32, i32
  }
}

module attributes {stable_mosaic.version = 11 : i64} {
  func.func @_mm_tile_kernel(%arg0: i32, %arg1: memref<128x500xbf16, #tpu.memory_space<vmem>>, %arg2: memref<500x128xbf16, #tpu.memory_space<vmem>>, %arg3: memref<1x128xf32, #tpu.memory_space<vmem>>, %arg4: memref<128x128xbf16, #tpu.memory_space<vmem>>) attributes {dimension_semantics = [#tpu.dimension_semantics<parallel>], iteration_bounds = array<i64: 1>, scalar_prefetch = 0 : i64, scratch_operands = 0 : i64, tpu.core_type = #tpu.core_type<tc>, window_params = [{transform_indices = @transform_0, window_bounds = array<i64: 128, 500>}, {pipeline_mode = #tpu.pipeline_mode<synchronous>, transform_indices = @transform_1, window_bounds = array<i64: 500, 128>}, {pipeline_mode = #tpu.pipeline_mode<synchronous>, transform_indices = @transform_2, window_bounds = array<i64: 1, 128>}, {transform_indices = @transform_3, window_bounds = array<i64: 128, 128>}]} {
    %c0 = arith.constant 0 : index
    %c0_0 = arith.constant 0 : index
    %0 = vector.load %arg1[%c0, %c0_0] : memref<128x500xbf16, #tpu.memory_space<vmem>>, vector<128x500xbf16>
    %c0_1 = arith.constant 0 : index
    %c0_2 = arith.constant 0 : index
    %1 = vector.load %arg2[%c0_1, %c0_2] : memref<500x128xbf16, #tpu.memory_space<vmem>>, vector<500x128xbf16>
    %cst = arith.constant dense<0.000000e+00> : vector<128x128xf32>
    %2 = tpu.matmul %0, %1, %cst {dimension_numbers = #tpu.dot_dimension_numbers<[1], [0], [0], [1], [0, 0, 1, 1], [], []>} : vector<128x500xbf16>, vector<500x128xbf16>, vector<128x128xf32> -> vector<128x128xf32>
    %c0_3 = arith.constant 0 : index
    %c0_4 = arith.constant 0 : index
    %3 = vector.load %arg3[%c0_3, %c0_4] : memref<1x128xf32, #tpu.memory_space<vmem>>, vector<1x128xf32>
    %4 = vector.broadcast %3 : vector<1x128xf32> to vector<128x128xf32>
    %5 = arith.addf %2, %4 : vector<128x128xf32>
    %6 = arith.truncf %5 : vector<128x128xf32> to vector<128x128xbf16>
    %c0_5 = arith.constant 0 : index
    %c0_6 = arith.constant 0 : index
    %7 = vector.load %arg4[%c0_5, %c0_6] : memref<128x128xbf16, #tpu.memory_space<vmem>>, vector<128x128xbf16>
    tpu.vector_store %arg4[%c0_5, %c0_6], %6 {strides = array<i32>} : memref<128x128xbf16, #tpu.memory_space<vmem>>, vector<128x128xbf16>,
    return
  }
  func.func @transform_0(%arg0: i32) -> (i32, i32) {
    %c0_i32 = arith.constant 0 : i32
    %c0_i32_0 = arith.constant 0 : i32
    return %arg0, %c0_i32 : i32, i32
  }
  func.func @transform_1(%arg0: i32) -> (i32, i32) {
    %c0_i32 = arith.constant 0 : i32
    %c0_i32_0 = arith.constant 0 : i32
    %c0_i32_1 = arith.constant 0 : i32
    return %c0_i32, %c0_i32_0 : i32, i32
  }
  func.func @transform_2(%arg0: i32) -> (i32, i32) {
    %c0_i32 = arith.constant 0 : i32
    %c0_i32_0 = arith.constant 0 : i32
    %c0_i32_1 = arith.constant 0 : i32
    return %c0_i32, %c0_i32_0 : i32, i32
  }
  func.func @transform_3(%arg0: i32) -> (i32, i32) {
    %c0_i32 = arith.constant 0 : i32
    %c0_i32_0 = arith.constant 0 : i32
    return %arg0, %c0_i32 : i32, i32
  }
}

module attributes {stable_mosaic.version = 11 : i64} {
  func.func @_mm_tile_kernel(%arg0: i32, %arg1: memref<32x1000xbf16, #tpu.memory_space<vmem>>, %arg2: memref<1000x128xbf16, #tpu.memory_space<vmem>>, %arg3: memref<1x128xf32, #tpu.memory_space<vmem>>, %arg4: memref<32x128xbf16, #tpu.memory_space<vmem>>) attributes {dimension_semantics = [#tpu.dimension_semantics<parallel>], iteration_bounds = array<i64: 1>, scalar_prefetch = 0 : i64, scratch_operands = 0 : i64, tpu.core_type = #tpu.core_type<tc>, window_params = [{transform_indices = @transform_0, window_bounds = array<i64: 32, 1000>}, {pipeline_mode = #tpu.pipeline_mode<synchronous>, transform_indices = @transform_1, window_bounds = array<i64: 1000, 128>}, {pipeline_mode = #tpu.pipeline_mode<synchronous>, transform_indices = @transform_2, window_bounds = array<i64: 1, 128>}, {transform_indices = @transform_3, window_bounds = array<i64: 32, 128>}]} {
    %c0 = arith.constant 0 : index
    %c0_0 = arith.constant 0 : index
    %0 = vector.load %arg1[%c0, %c0_0] : memref<32x1000xbf16, #tpu.memory_space<vmem>>, vector<32x1000xbf16>
    %c0_1 = arith.constant 0 : index
    %c0_2 = arith.constant 0 : index
    %1 = vector.load %arg2[%c0_1, %c0_2] : memref<1000x128xbf16, #tpu.memory_space<vmem>>, vector<1000x128xbf16>
    %cst = arith.constant dense<0.000000e+00> : vector<32x128xf32>
    %2 = tpu.matmul %0, %1, %cst {dimension_numbers = #tpu.dot_dimension_numbers<[1], [0], [0], [1], [0, 0, 1, 1], [], []>} : vector<32x1000xbf16>, vector<1000x128xbf16>, vector<32x128xf32> -> vector<32x128xf32>
    %c0_3 = arith.constant 0 : index
    %c0_4 = arith.constant 0 : index
    %3 = vector.load %arg3[%c0_3, %c0_4] : memref<1x128xf32, #tpu.memory_space<vmem>>, vector<1x128xf32>
    %4 = vector.broadcast %3 : vector<1x128xf32> to vector<32x128xf32>
    %5 = arith.addf %2, %4 : vector<32x128xf32>
    %6 = arith.truncf %5 : vector<32x128xf32> to vector<32x128xbf16>
    %c0_5 = arith.constant 0 : index
    %c0_6 = arith.constant 0 : index
    %7 = vector.load %arg4[%c0_5, %c0_6] : memref<32x128xbf16, #tpu.memory_space<vmem>>, vector<32x128xbf16>
    tpu.vector_store %arg4[%c0_5, %c0_6], %6 {strides = array<i32>} : memref<32x128xbf16, #tpu.memory_space<vmem>>, vector<32x128xbf16>,
    return
  }
  func.func @transform_0(%arg0: i32) -> (i32, i32) {
    %c0_i32 = arith.constant 0 : i32
    %c0_i32_0 = arith.constant 0 : i32
    return %arg0, %c0_i32 : i32, i32
  }
  func.func @transform_1(%arg0: i32) -> (i32, i32) {
    %c0_i32 = arith.constant 0 : i32
    %c0_i32_0 = arith.constant 0 : i32
    %c0_i32_1 = arith.constant 0 : i32
    return %c0_i32, %c0_i32_0 : i32, i32
  }
  func.func @transform_2(%arg0: i32) -> (i32, i32) {
    %c0_i32 = arith.constant 0 : i32
    %c0_i32_0 = arith.constant 0 : i32
    %c0_i32_1 = arith.constant 0 : i32
    return %c0_i32, %c0_i32_0 : i32, i32
  }
  func.func @transform_3(%arg0: i32) -> (i32, i32) {
    %c0_i32 = arith.constant 0 : i32
    %c0_i32_0 = arith.constant 0 : i32
    return %arg0, %c0_i32 : i32, i32
  }
}

module attributes {stable_mosaic.version = 11 : i64} {
  func.func @_mm_tile_kernel(%arg0: i32, %arg1: memref<32x720xbf16, #tpu.memory_space<vmem>>, %arg2: memref<720x128xbf16, #tpu.memory_space<vmem>>, %arg3: memref<1x128xf32, #tpu.memory_space<vmem>>, %arg4: memref<32x128xbf16, #tpu.memory_space<vmem>>) attributes {dimension_semantics = [#tpu.dimension_semantics<parallel>], iteration_bounds = array<i64: 1>, scalar_prefetch = 0 : i64, scratch_operands = 0 : i64, tpu.core_type = #tpu.core_type<tc>, window_params = [{transform_indices = @transform_0, window_bounds = array<i64: 32, 720>}, {pipeline_mode = #tpu.pipeline_mode<synchronous>, transform_indices = @transform_1, window_bounds = array<i64: 720, 128>}, {pipeline_mode = #tpu.pipeline_mode<synchronous>, transform_indices = @transform_2, window_bounds = array<i64: 1, 128>}, {transform_indices = @transform_3, window_bounds = array<i64: 32, 128>}]} {
    %c0 = arith.constant 0 : index
    %c0_0 = arith.constant 0 : index
    %0 = vector.load %arg1[%c0, %c0_0] : memref<32x720xbf16, #tpu.memory_space<vmem>>, vector<32x720xbf16>
    %c0_1 = arith.constant 0 : index
    %c0_2 = arith.constant 0 : index
    %1 = vector.load %arg2[%c0_1, %c0_2] : memref<720x128xbf16, #tpu.memory_space<vmem>>, vector<720x128xbf16>
    %cst = arith.constant dense<0.000000e+00> : vector<32x128xf32>
    %2 = tpu.matmul %0, %1, %cst {dimension_numbers = #tpu.dot_dimension_numbers<[1], [0], [0], [1], [0, 0, 1, 1], [], []>} : vector<32x720xbf16>, vector<720x128xbf16>, vector<32x128xf32> -> vector<32x128xf32>
    %c0_3 = arith.constant 0 : index
    %c0_4 = arith.constant 0 : index
    %3 = vector.load %arg3[%c0_3, %c0_4] : memref<1x128xf32, #tpu.memory_space<vmem>>, vector<1x128xf32>
    %4 = vector.broadcast %3 : vector<1x128xf32> to vector<32x128xf32>
    %5 = arith.addf %2, %4 : vector<32x128xf32>
    %cst_5 = arith.constant 0.000000e+00 : f32
    %6 = vector.broadcast %cst_5 : f32 to vector<32x128xf32>
    %7 = arith.maximumf %5, %6 : vector<32x128xf32>
    %8 = arith.truncf %7 : vector<32x128xf32> to vector<32x128xbf16>
    %c0_6 = arith.constant 0 : index
    %c0_7 = arith.constant 0 : index
    %9 = vector.load %arg4[%c0_6, %c0_7] : memref<32x128xbf16, #tpu.memory_space<vmem>>, vector<32x128xbf16>
    tpu.vector_store %arg4[%c0_6, %c0_7], %8 {strides = array<i32>} : memref<32x128xbf16, #tpu.memory_space<vmem>>, vector<32x128xbf16>,
    return
  }
  func.func @transform_0(%arg0: i32) -> (i32, i32) {
    %c0_i32 = arith.constant 0 : i32
    %c0_i32_0 = arith.constant 0 : i32
    return %arg0, %c0_i32 : i32, i32
  }
  func.func @transform_1(%arg0: i32) -> (i32, i32) {
    %c0_i32 = arith.constant 0 : i32
    %c0_i32_0 = arith.constant 0 : i32
    %c0_i32_1 = arith.constant 0 : i32
    return %c0_i32, %c0_i32_0 : i32, i32
  }
  func.func @transform_2(%arg0: i32) -> (i32, i32) {
    %c0_i32 = arith.constant 0 : i32
    %c0_i32_0 = arith.constant 0 : i32
    %c0_i32_1 = arith.constant 0 : i32
    return %c0_i32, %c0_i32_0 : i32, i32
  }
  func.func @transform_3(%arg0: i32) -> (i32, i32) {
    %c0_i32 = arith.constant 0 : i32
    %c0_i32_0 = arith.constant 0 : i32
    return %arg0, %c0_i32 : i32, i32
  }
}

module attributes {stable_mosaic.version = 11 : i64} {
  func.func @_mm_tile_kernel(%arg0: i32, %arg1: memref<32x720xbf16, #tpu.memory_space<vmem>>, %arg2: memref<720x128xbf16, #tpu.memory_space<vmem>>, %arg3: memref<1x128xf32, #tpu.memory_space<vmem>>, %arg4: memref<32x128xbf16, #tpu.memory_space<vmem>>, %arg5: memref<32x128xbf16, #tpu.memory_space<vmem>>) attributes {dimension_semantics = [#tpu.dimension_semantics<parallel>], iteration_bounds = array<i64: 1>, scalar_prefetch = 0 : i64, scratch_operands = 0 : i64, tpu.core_type = #tpu.core_type<tc>, window_params = [{transform_indices = @transform_0, window_bounds = array<i64: 32, 720>}, {pipeline_mode = #tpu.pipeline_mode<synchronous>, transform_indices = @transform_1, window_bounds = array<i64: 720, 128>}, {pipeline_mode = #tpu.pipeline_mode<synchronous>, transform_indices = @transform_2, window_bounds = array<i64: 1, 128>}, {transform_indices = @transform_3, window_bounds = array<i64: 32, 128>}, {transform_indices = @transform_4, window_bounds = array<i64: 32, 128>}]} {
    %c0 = arith.constant 0 : index
    %c0_0 = arith.constant 0 : index
    %0 = vector.load %arg1[%c0, %c0_0] : memref<32x720xbf16, #tpu.memory_space<vmem>>, vector<32x720xbf16>
    %c0_1 = arith.constant 0 : index
    %c0_2 = arith.constant 0 : index
    %1 = vector.load %arg2[%c0_1, %c0_2] : memref<720x128xbf16, #tpu.memory_space<vmem>>, vector<720x128xbf16>
    %cst = arith.constant dense<0.000000e+00> : vector<32x128xf32>
    %2 = tpu.matmul %0, %1, %cst {dimension_numbers = #tpu.dot_dimension_numbers<[1], [0], [0], [1], [0, 0, 1, 1], [], []>} : vector<32x720xbf16>, vector<720x128xbf16>, vector<32x128xf32> -> vector<32x128xf32>
    %c0_3 = arith.constant 0 : index
    %c0_4 = arith.constant 0 : index
    %3 = vector.load %arg3[%c0_3, %c0_4] : memref<1x128xf32, #tpu.memory_space<vmem>>, vector<1x128xf32>
    %4 = vector.broadcast %3 : vector<1x128xf32> to vector<32x128xf32>
    %5 = arith.addf %2, %4 : vector<32x128xf32>
    %c0_5 = arith.constant 0 : index
    %c0_6 = arith.constant 0 : index
    %6 = vector.load %arg4[%c0_5, %c0_6] : memref<32x128xbf16, #tpu.memory_space<vmem>>, vector<32x128xbf16>
    %7 = arith.extf %6 : vector<32x128xbf16> to vector<32x128xf32>
    %8 = arith.addf %5, %7 : vector<32x128xf32>
    %9 = arith.truncf %8 : vector<32x128xf32> to vector<32x128xbf16>
    %c0_7 = arith.constant 0 : index
    %c0_8 = arith.constant 0 : index
    %10 = vector.load %arg5[%c0_7, %c0_8] : memref<32x128xbf16, #tpu.memory_space<vmem>>, vector<32x128xbf16>
    tpu.vector_store %arg5[%c0_7, %c0_8], %9 {strides = array<i32>} : memref<32x128xbf16, #tpu.memory_space<vmem>>, vector<32x128xbf16>,
    return
  }
  func.func @transform_0(%arg0: i32) -> (i32, i32) {
    %c0_i32 = arith.constant 0 : i32
    %c0_i32_0 = arith.constant 0 : i32
    return %arg0, %c0_i32 : i32, i32
  }
  func.func @transform_1(%arg0: i32) -> (i32, i32) {
    %c0_i32 = arith.constant 0 : i32
    %c0_i32_0 = arith.constant 0 : i32
    %c0_i32_1 = arith.constant 0 : i32
    return %c0_i32, %c0_i32_0 : i32, i32
  }
  func.func @transform_2(%arg0: i32) -> (i32, i32) {
    %c0_i32 = arith.constant 0 : i32
    %c0_i32_0 = arith.constant 0 : i32
    %c0_i32_1 = arith.constant 0 : i32
    return %c0_i32, %c0_i32_0 : i32, i32
  }
  func.func @transform_3(%arg0: i32) -> (i32, i32) {
    %c0_i32 = arith.constant 0 : i32
    %c0_i32_0 = arith.constant 0 : i32
    return %arg0, %c0_i32 : i32, i32
  }
  func.func @transform_4(%arg0: i32) -> (i32, i32) {
    %c0_i32 = arith.constant 0 : i32
    %c0_i32_0 = arith.constant 0 : i32
    return %arg0, %c0_i32 : i32, i32
  }
}

module attributes {stable_mosaic.version = 11 : i64} {
  func.func @_mm_tile_kernel(%arg0: i32, %arg1: memref<32x720xbf16, #tpu.memory_space<vmem>>, %arg2: memref<720x128xbf16, #tpu.memory_space<vmem>>, %arg3: memref<1x128xf32, #tpu.memory_space<vmem>>, %arg4: memref<32x128xbf16, #tpu.memory_space<vmem>>) attributes {dimension_semantics = [#tpu.dimension_semantics<parallel>], iteration_bounds = array<i64: 1>, scalar_prefetch = 0 : i64, scratch_operands = 0 : i64, tpu.core_type = #tpu.core_type<tc>, window_params = [{transform_indices = @transform_0, window_bounds = array<i64: 32, 720>}, {pipeline_mode = #tpu.pipeline_mode<synchronous>, transform_indices = @transform_1, window_bounds = array<i64: 720, 128>}, {pipeline_mode = #tpu.pipeline_mode<synchronous>, transform_indices = @transform_2, window_bounds = array<i64: 1, 128>}, {transform_indices = @transform_3, window_bounds = array<i64: 32, 128>}]} {
    %c0 = arith.constant 0 : index
    %c0_0 = arith.constant 0 : index
    %0 = vector.load %arg1[%c0, %c0_0] : memref<32x720xbf16, #tpu.memory_space<vmem>>, vector<32x720xbf16>
    %c0_1 = arith.constant 0 : index
    %c0_2 = arith.constant 0 : index
    %1 = vector.load %arg2[%c0_1, %c0_2] : memref<720x128xbf16, #tpu.memory_space<vmem>>, vector<720x128xbf16>
    %cst = arith.constant dense<0.000000e+00> : vector<32x128xf32>
    %2 = tpu.matmul %0, %1, %cst {dimension_numbers = #tpu.dot_dimension_numbers<[1], [0], [0], [1], [0, 0, 1, 1], [], []>} : vector<32x720xbf16>, vector<720x128xbf16>, vector<32x128xf32> -> vector<32x128xf32>
    %c0_3 = arith.constant 0 : index
    %c0_4 = arith.constant 0 : index
    %3 = vector.load %arg3[%c0_3, %c0_4] : memref<1x128xf32, #tpu.memory_space<vmem>>, vector<1x128xf32>
    %4 = vector.broadcast %3 : vector<1x128xf32> to vector<32x128xf32>
    %5 = arith.addf %2, %4 : vector<32x128xf32>
    %6 = arith.truncf %5 : vector<32x128xf32> to vector<32x128xbf16>
    %c0_5 = arith.constant 0 : index
    %c0_6 = arith.constant 0 : index
    %7 = vector.load %arg4[%c0_5, %c0_6] : memref<32x128xbf16, #tpu.memory_space<vmem>>, vector<32x128xbf16>
    tpu.vector_store %arg4[%c0_5, %c0_6], %6 {strides = array<i32>} : memref<32x128xbf16, #tpu.memory_space<vmem>>, vector<32x128xbf16>,
    return
  }
  func.func @transform_0(%arg0: i32) -> (i32, i32) {
    %c0_i32 = arith.constant 0 : i32
    %c0_i32_0 = arith.constant 0 : i32
    return %arg0, %c0_i32 : i32, i32
  }
  func.func @transform_1(%arg0: i32) -> (i32, i32) {
    %c0_i32 = arith.constant 0 : i32
    %c0_i32_0 = arith.constant 0 : i32
    %c0_i32_1 = arith.constant 0 : i32
    return %c0_i32, %c0_i32_0 : i32, i32
  }
  func.func @transform_2(%arg0: i32) -> (i32, i32) {
    %c0_i32 = arith.constant 0 : i32
    %c0_i32_0 = arith.constant 0 : i32
    %c0_i32_1 = arith.constant 0 : i32
    return %c0_i32, %c0_i32_0 : i32, i32
  }
  func.func @transform_3(%arg0: i32) -> (i32, i32) {
    %c0_i32 = arith.constant 0 : i32
    %c0_i32_0 = arith.constant 0 : i32
    return %arg0, %c0_i32 : i32, i32
  }
}

module attributes {stable_mosaic.version = 11 : i64} {
  func.func @_mm_tile_kernel(%arg0: i32, %arg1: memref<32x180xbf16, #tpu.memory_space<vmem>>, %arg2: memref<180x128xbf16, #tpu.memory_space<vmem>>, %arg3: memref<1x128xf32, #tpu.memory_space<vmem>>, %arg4: memref<32x128xbf16, #tpu.memory_space<vmem>>) attributes {dimension_semantics = [#tpu.dimension_semantics<parallel>], iteration_bounds = array<i64: 1>, scalar_prefetch = 0 : i64, scratch_operands = 0 : i64, tpu.core_type = #tpu.core_type<tc>, window_params = [{transform_indices = @transform_0, window_bounds = array<i64: 32, 180>}, {pipeline_mode = #tpu.pipeline_mode<synchronous>, transform_indices = @transform_1, window_bounds = array<i64: 180, 128>}, {pipeline_mode = #tpu.pipeline_mode<synchronous>, transform_indices = @transform_2, window_bounds = array<i64: 1, 128>}, {transform_indices = @transform_3, window_bounds = array<i64: 32, 128>}]} {
    %c0 = arith.constant 0 : index
    %c0_0 = arith.constant 0 : index
    %0 = vector.load %arg1[%c0, %c0_0] : memref<32x180xbf16, #tpu.memory_space<vmem>>, vector<32x180xbf16>
    %c0_1 = arith.constant 0 : index
    %c0_2 = arith.constant 0 : index
    %1 = vector.load %arg2[%c0_1, %c0_2] : memref<180x128xbf16, #tpu.memory_space<vmem>>, vector<180x128xbf16>
    %cst = arith.constant dense<0.000000e+00> : vector<32x128xf32>
    %2 = tpu.matmul %0, %1, %cst {dimension_numbers = #tpu.dot_dimension_numbers<[1], [0], [0], [1], [0, 0, 1, 1], [], []>} : vector<32x180xbf16>, vector<180x128xbf16>, vector<32x128xf32> -> vector<32x128xf32>
    %c0_3 = arith.constant 0 : index
    %c0_4 = arith.constant 0 : index
    %3 = vector.load %arg3[%c0_3, %c0_4] : memref<1x128xf32, #tpu.memory_space<vmem>>, vector<1x128xf32>
    %4 = vector.broadcast %3 : vector<1x128xf32> to vector<32x128xf32>
    %5 = arith.addf %2, %4 : vector<32x128xf32>
    %cst_5 = arith.constant 0.000000e+00 : f32
    %6 = vector.broadcast %cst_5 : f32 to vector<32x128xf32>
    %7 = arith.maximumf %5, %6 : vector<32x128xf32>
    %8 = arith.truncf %7 : vector<32x128xf32> to vector<32x128xbf16>
    %c0_6 = arith.constant 0 : index
    %c0_7 = arith.constant 0 : index
    %9 = vector.load %arg4[%c0_6, %c0_7] : memref<32x128xbf16, #tpu.memory_space<vmem>>, vector<32x128xbf16>
    tpu.vector_store %arg4[%c0_6, %c0_7], %8 {strides = array<i32>} : memref<32x128xbf16, #tpu.memory_space<vmem>>, vector<32x128xbf16>,
    return
  }
  func.func @transform_0(%arg0: i32) -> (i32, i32) {
    %c0_i32 = arith.constant 0 : i32
    %c0_i32_0 = arith.constant 0 : i32
    return %arg0, %c0_i32 : i32, i32
  }
  func.func @transform_1(%arg0: i32) -> (i32, i32) {
    %c0_i32 = arith.constant 0 : i32
    %c0_i32_0 = arith.constant 0 : i32
    %c0_i32_1 = arith.constant 0 : i32
    return %c0_i32, %c0_i32_0 : i32, i32
  }
  func.func @transform_2(%arg0: i32) -> (i32, i32) {
    %c0_i32 = arith.constant 0 : i32
    %c0_i32_0 = arith.constant 0 : i32
    %c0_i32_1 = arith.constant 0 : i32
    return %c0_i32, %c0_i32_0 : i32, i32
  }
  func.func @transform_3(%arg0: i32) -> (i32, i32) {
    %c0_i32 = arith.constant 0 : i32
    %c0_i32_0 = arith.constant 0 : i32
    return %arg0, %c0_i32 : i32, i32
  }
}

module attributes {stable_mosaic.version = 11 : i64} {
  func.func @_mm_tile_kernel(%arg0: i32, %arg1: memref<32x180xbf16, #tpu.memory_space<vmem>>, %arg2: memref<180x128xbf16, #tpu.memory_space<vmem>>, %arg3: memref<1x128xf32, #tpu.memory_space<vmem>>, %arg4: memref<32x128xbf16, #tpu.memory_space<vmem>>) attributes {dimension_semantics = [#tpu.dimension_semantics<parallel>], iteration_bounds = array<i64: 1>, scalar_prefetch = 0 : i64, scratch_operands = 0 : i64, tpu.core_type = #tpu.core_type<tc>, window_params = [{transform_indices = @transform_0, window_bounds = array<i64: 32, 180>}, {pipeline_mode = #tpu.pipeline_mode<synchronous>, transform_indices = @transform_1, window_bounds = array<i64: 180, 128>}, {pipeline_mode = #tpu.pipeline_mode<synchronous>, transform_indices = @transform_2, window_bounds = array<i64: 1, 128>}, {transform_indices = @transform_3, window_bounds = array<i64: 32, 128>}]} {
    %c0 = arith.constant 0 : index
    %c0_0 = arith.constant 0 : index
    %0 = vector.load %arg1[%c0, %c0_0] : memref<32x180xbf16, #tpu.memory_space<vmem>>, vector<32x180xbf16>
    %c0_1 = arith.constant 0 : index
    %c0_2 = arith.constant 0 : index
    %1 = vector.load %arg2[%c0_1, %c0_2] : memref<180x128xbf16, #tpu.memory_space<vmem>>, vector<180x128xbf16>
    %cst = arith.constant dense<0.000000e+00> : vector<32x128xf32>
    %2 = tpu.matmul %0, %1, %cst {dimension_numbers = #tpu.dot_dimension_numbers<[1], [0], [0], [1], [0, 0, 1, 1], [], []>} : vector<32x180xbf16>, vector<180x128xbf16>, vector<32x128xf32> -> vector<32x128xf32>
    %c0_3 = arith.constant 0 : index
    %c0_4 = arith.constant 0 : index
    %3 = vector.load %arg3[%c0_3, %c0_4] : memref<1x128xf32, #tpu.memory_space<vmem>>, vector<1x128xf32>
    %4 = vector.broadcast %3 : vector<1x128xf32> to vector<32x128xf32>
    %5 = arith.addf %2, %4 : vector<32x128xf32>
    %6 = arith.truncf %5 : vector<32x128xf32> to vector<32x128xbf16>
    %c0_5 = arith.constant 0 : index
    %c0_6 = arith.constant 0 : index
    %7 = vector.load %arg4[%c0_5, %c0_6] : memref<32x128xbf16, #tpu.memory_space<vmem>>, vector<32x128xbf16>
    tpu.vector_store %arg4[%c0_5, %c0_6], %6 {strides = array<i32>} : memref<32x128xbf16, #tpu.memory_space<vmem>>, vector<32x128xbf16>,
    return
  }
  func.func @transform_0(%arg0: i32) -> (i32, i32) {
    %c0_i32 = arith.constant 0 : i32
    %c0_i32_0 = arith.constant 0 : i32
    return %arg0, %c0_i32 : i32, i32
  }
  func.func @transform_1(%arg0: i32) -> (i32, i32) {
    %c0_i32 = arith.constant 0 : i32
    %c0_i32_0 = arith.constant 0 : i32
    %c0_i32_1 = arith.constant 0 : i32
    return %c0_i32, %c0_i32_0 : i32, i32
  }
  func.func @transform_2(%arg0: i32) -> (i32, i32) {
    %c0_i32 = arith.constant 0 : i32
    %c0_i32_0 = arith.constant 0 : i32
    %c0_i32_1 = arith.constant 0 : i32
    return %c0_i32, %c0_i32_0 : i32, i32
  }
  func.func @transform_3(%arg0: i32) -> (i32, i32) {
    %c0_i32 = arith.constant 0 : i32
    %c0_i32_0 = arith.constant 0 : i32
    return %arg0, %c0_i32 : i32, i32
  }
}

module attributes {stable_mosaic.version = 11 : i64} {
  func.func @_mm_tile_kernel(%arg0: i32, %arg1: memref<32x180xbf16, #tpu.memory_space<vmem>>, %arg2: memref<180x128xbf16, #tpu.memory_space<vmem>>, %arg3: memref<1x128xf32, #tpu.memory_space<vmem>>, %arg4: memref<32x128xbf16, #tpu.memory_space<vmem>>, %arg5: memref<32x128xbf16, #tpu.memory_space<vmem>>) attributes {dimension_semantics = [#tpu.dimension_semantics<parallel>], iteration_bounds = array<i64: 1>, scalar_prefetch = 0 : i64, scratch_operands = 0 : i64, tpu.core_type = #tpu.core_type<tc>, window_params = [{transform_indices = @transform_0, window_bounds = array<i64: 32, 180>}, {pipeline_mode = #tpu.pipeline_mode<synchronous>, transform_indices = @transform_1, window_bounds = array<i64: 180, 128>}, {pipeline_mode = #tpu.pipeline_mode<synchronous>, transform_indices = @transform_2, window_bounds = array<i64: 1, 128>}, {transform_indices = @transform_3, window_bounds = array<i64: 32, 128>}, {transform_indices = @transform_4, window_bounds = array<i64: 32, 128>}]} {
    %c0 = arith.constant 0 : index
    %c0_0 = arith.constant 0 : index
    %0 = vector.load %arg1[%c0, %c0_0] : memref<32x180xbf16, #tpu.memory_space<vmem>>, vector<32x180xbf16>
    %c0_1 = arith.constant 0 : index
    %c0_2 = arith.constant 0 : index
    %1 = vector.load %arg2[%c0_1, %c0_2] : memref<180x128xbf16, #tpu.memory_space<vmem>>, vector<180x128xbf16>
    %cst = arith.constant dense<0.000000e+00> : vector<32x128xf32>
    %2 = tpu.matmul %0, %1, %cst {dimension_numbers = #tpu.dot_dimension_numbers<[1], [0], [0], [1], [0, 0, 1, 1], [], []>} : vector<32x180xbf16>, vector<180x128xbf16>, vector<32x128xf32> -> vector<32x128xf32>
    %c0_3 = arith.constant 0 : index
    %c0_4 = arith.constant 0 : index
    %3 = vector.load %arg3[%c0_3, %c0_4] : memref<1x128xf32, #tpu.memory_space<vmem>>, vector<1x128xf32>
    %4 = vector.broadcast %3 : vector<1x128xf32> to vector<32x128xf32>
    %5 = arith.addf %2, %4 : vector<32x128xf32>
    %c0_5 = arith.constant 0 : index
    %c0_6 = arith.constant 0 : index
    %6 = vector.load %arg4[%c0_5, %c0_6] : memref<32x128xbf16, #tpu.memory_space<vmem>>, vector<32x128xbf16>
    %7 = arith.extf %6 : vector<32x128xbf16> to vector<32x128xf32>
    %8 = arith.addf %5, %7 : vector<32x128xf32>
    %9 = arith.truncf %8 : vector<32x128xf32> to vector<32x128xbf16>
    %c0_7 = arith.constant 0 : index
    %c0_8 = arith.constant 0 : index
    %10 = vector.load %arg5[%c0_7, %c0_8] : memref<32x128xbf16, #tpu.memory_space<vmem>>, vector<32x128xbf16>
    tpu.vector_store %arg5[%c0_7, %c0_8], %9 {strides = array<i32>} : memref<32x128xbf16, #tpu.memory_space<vmem>>, vector<32x128xbf16>,
    return
  }
  func.func @transform_0(%arg0: i32) -> (i32, i32) {
    %c0_i32 = arith.constant 0 : i32
    %c0_i32_0 = arith.constant 0 : i32
    return %arg0, %c0_i32 : i32, i32
  }
  func.func @transform_1(%arg0: i32) -> (i32, i32) {
    %c0_i32 = arith.constant 0 : i32
    %c0_i32_0 = arith.constant 0 : i32
    %c0_i32_1 = arith.constant 0 : i32
    return %c0_i32, %c0_i32_0 : i32, i32
  }
  func.func @transform_2(%arg0: i32) -> (i32, i32) {
    %c0_i32 = arith.constant 0 : i32
    %c0_i32_0 = arith.constant 0 : i32
    %c0_i32_1 = arith.constant 0 : i32
    return %c0_i32, %c0_i32_0 : i32, i32
  }
  func.func @transform_3(%arg0: i32) -> (i32, i32) {
    %c0_i32 = arith.constant 0 : i32
    %c0_i32_0 = arith.constant 0 : i32
    return %arg0, %c0_i32 : i32, i32
  }
  func.func @transform_4(%arg0: i32) -> (i32, i32) {
    %c0_i32 = arith.constant 0 : i32
    %c0_i32_0 = arith.constant 0 : i32
    return %arg0, %c0_i32 : i32, i32
  }
}

</mosaic_0001>

<llo_original>
// kernel: rnncell_forward.19
$region0: #{rnncell_forward.19}
  #allocation0 [shape = 'u32[]', space=smem, size = 0x4, offset = 0x4, fixed_abs, tag = 'smem constant byte address 0x4 - core index']
  #allocation1 [shape = 'u32[144,128]{1,0:T(1,128)}', space=vmem, size = 0x12000, scoped, tag = 'internal scratch']
  %s0 = inlined_call_operand.vmem [shape: bf16[512,75], index: 0, kind: input, shape index: {}]
  %s1 = inlined_call_operand.vmem [shape: bf16[75,128], index: 1, kind: input, shape index: {}]
  %s2 = inlined_call_operand.vmem [shape: f32[1,128], index: 2, kind: input, shape index: {}]
  %s3 = inlined_call_operand.vmem [shape: bf16[512,128], index: 3, kind: output, shape index: {}]
  %s4 = sld [smem:[#allocation0]]
  $region22: #{rnncell_forward.19} parent=0
    _
  %s6 = ssub.s32 1, %s4
  %s7 = scalar_select 0, %s6, %s4
  // Predicated region
  $region2: #{rnncell_forward.19} parent=0 // pred_check
    _
  $region3: #{rnncell_forward.19} parent=0 // pred_check_branch
    %9 = sbr.rel (0) target = $region5
  $region4: #{rnncell_forward.19} parent=0 // pred_region
    _
  $region5: #{rnncell_forward.19} parent=0 // pred_fallthru
    _
  // Predicated region
  $region6: #{rnncell_forward.19} parent=0 // pred_check
    _
  $region7: #{rnncell_forward.19} parent=0 // pred_check_branch
    %11 = sbr.rel (0) target = $region9
  $region8: #{rnncell_forward.19} parent=0 // pred_region
    _
  $region9: #{rnncell_forward.19} parent=0 // pred_fallthru
    _
  // Predicated region
  $region10: #{rnncell_forward.19} parent=0 // pred_check
    _
  $region11: #{rnncell_forward.19} parent=0 // pred_check_branch
    %13 = sbr.rel (0) target = $region13
  $region12: #{rnncell_forward.19} parent=0 // pred_region
    _
  $region13: #{rnncell_forward.19} parent=0 // pred_fallthru
    _
  %v15 = vld [vmem:[%s0] sm:$0xf]
  %v16 = vld [vmem:[%s0 + $0x4] sm:$0xf]
  %v17 = vld [vmem:[%s0 + $0x8] sm:$0xf]
  %v18 = vld [vmem:[%s0 + $0xc] sm:$0xf]
  %v19 = vld [vmem:[%s0 + $0x10] sm:$0xf]
  %v20 = vld [vmem:[%s0 + $0x14] sm:$0xf]
  %v21 = vld [vmem:[%s0 + $0x18] sm:$0xf]
  %v22 = vld [vmem:[%s0 + $0x1c] sm:$0xf]
  %v23 = vld [vmem:[%s0 + $0x20] sm:$0xf]
  %v24 = vld [vmem:[%s0 + $0x24] sm:$0xf]
  %v25 = vld [vmem:[%s0 + $0x28] sm:$0xf]
  %v26 = vld [vmem:[%s0 + $0x2c] sm:$0xf]
  %v27 = vld [vmem:[%s0 + $0x30] sm:$0xf]
  %v28 = vld [vmem:[%s0 + $0x34] sm:$0xf]
  %v29 = vld [vmem:[%s0 + $0x38] sm:$0xf]
  %v30 = vld [vmem:[%s0 + $0x3c] sm:$0xf]
  %v31 = vld [vmem:[%s0 + $0x40] sm:$0xf]
  %v32 = vld [vmem:[%s0 + $0x44] sm:$0xf]
  %v33 = vld [vmem:[%s0 + $0x48] sm:$0xf]
  %v34 = vld [vmem:[%s0 + $0x4c] sm:$0xf]
  %v35 = vld [vmem:[%s0 + $0x50] sm:$0xf]
  %v36 = vld [vmem:[%s0 + $0x54] sm:$0xf]
  %v37 = vld [vmem:[%s0 + $0x58] sm:$0xf]
  %v38 = vld [vmem:[%s0 + $0x5c] sm:$0xf]
  %v39 = vld [vmem:[%s0 + $0x60] sm:$0xf]
  %v40 = vld [vmem:[%s0 + $0x64] sm:$0xf]
  %v41 = vld [vmem:[%s0 + $0x68] sm:$0xf]
  %v42 = vld [vmem:[%s0 + $0x6c] sm:$0xf]
  %v43 = vld [vmem:[%s0 + $0x70] sm:$0xf]
  %v44 = vld [vmem:[%s0 + $0x74] sm:$0xf]
  %v45 = vld [vmem:[%s0 + $0x78] sm:$0xf]
  %v46 = vld [vmem:[%s0 + $0x7c] sm:$0xf]
  %v47 = vld [vmem:[%s0 + $0x80] sm:$0xf]
  %v48 = vld [vmem:[%s0 + $0x84] sm:$0xf]
  %v49 = vld [vmem:[%s0 + $0x88] sm:$0xf]
  %v50 = vld [vmem:[%s0 + $0x8c] sm:$0xf]
  %v51 = vld [vmem:[%s0 + $0x90] sm:$0xf]
  %v52 = vld [vmem:[%s0 + $0x94] sm:$0xf]
  %v53 = vld [vmem:[%s0 + $0x98] sm:$0xf]
  %v54 = vld [vmem:[%s0 + $0x9c] sm:$0xf]
  %v55 = vld [vmem:[%s0 + $0xa0] sm:$0xf]
  %v56 = vld [vmem:[%s0 + $0xa4] sm:$0xf]
  %v57 = vld [vmem:[%s0 + $0xa8] sm:$0xf]
  %v58 = vld [vmem:[%s0 + $0xac] sm:$0xf]
  %v59 = vld [vmem:[%s0 + $0xb0] sm:$0xf]
  %v60 = vld [vmem:[%s0 + $0xb4] sm:$0xf]
  %v61 = vld [vmem:[%s0 + $0xb8] sm:$0xf]
  %v62 = vld [vmem:[%s0 + $0xbc] sm:$0xf]
  %v63 = vld [vmem:[%s0 + $0xc0] sm:$0xf]
  %v64 = vld [vmem:[%s0 + $0xc4] sm:$0xf]
  %v65 = vld [vmem:[%s0 + $0xc8] sm:$0xf]
  %v66 = vld [vmem:[%s0 + $0xcc] sm:$0xf]
  %v67 = vld [vmem:[%s0 + $0xd0] sm:$0xf]
  %v68 = vld [vmem:[%s0 + $0xd4] sm:$0xf]
  %v69 = vld [vmem:[%s0 + $0xd8] sm:$0xf]
  %v70 = vld [vmem:[%s0 + $0xdc] sm:$0xf]
  %v71 = vld [vmem:[%s0 + $0xe0] sm:$0xf]
  %v72 = vld [vmem:[%s0 + $0xe4] sm:$0xf]
  %v73 = vld [vmem:[%s0 + $0xe8] sm:$0xf]
  %v74 = vld [vmem:[%s0 + $0xec] sm:$0xf]
  %v75 = vld [vmem:[%s0 + $0xf0] sm:$0xf]
  %v76 = vld [vmem:[%s0 + $0xf4] sm:$0xf]
  %v77 = vld [vmem:[%s0 + $0xf8] sm:$0xf]
  %v78 = vld [vmem:[%s0 + $0xfc] sm:$0xf]
  %v79 = vld [vmem:[%s1] sm:$0xf]
  %v80 = vld [vmem:[%s1 + $0x4] sm:$0xf]
  %v81 = vld [vmem:[%s1 + $0x8] sm:$0xf]
  %v82 = vld [vmem:[%s1 + $0xc] sm:$0xf]
  %v83 = vld [vmem:[%s1 + $0x10] sm:$0xf]
  %v84 = vld [vmem:[%s1 + $0x14] sm:$0xf]
  %v85 = vld [vmem:[%s1 + $0x18] sm:$0xf]
  %v86 = vld [vmem:[%s1 + $0x1c] sm:$0xf]
  %v87 = vld [vmem:[%s1 + $0x20] sm:$0xf]
  %v88 = vld [vmem:[%s1 + $0x24] sm:$0x3]
  %v89 = vld [vmem:[%s2] sm:$0x1]
  %v91 = vlaneseq
  %v92 = vshrl.u32 %v91, 7
  %v93 = vsub.s32 0, %v92
  %v94 = vrot.slane %v89, %v93
  %v160 = vunpack.c.l.b16 %v15
  %v161 = vunpack.c.l.b16 %v16
  %v162 = vunpack.c.l.b16 %v17
  %v163 = vunpack.c.l.b16 %v18
  %v164 = vunpack.c.l.b16 %v19
  %v165 = vunpack.c.l.b16 %v20
  %v166 = vunpack.c.l.b16 %v21
  %v167 = vunpack.c.l.b16 %v22
  %v168 = vunpack.c.l.b16 %v23
  %v169 = vunpack.c.l.b16 %v24
  %v170 = vunpack.c.l.b16 %v25
  %v171 = vunpack.c.l.b16 %v26
  %v172 = vunpack.c.l.b16 %v27
  %v173 = vunpack.c.l.b16 %v28
  %v174 = vunpack.c.l.b16 %v29
  %v175 = vunpack.c.l.b16 %v30
  %v176 = vunpack.c.l.b16 %v31
  %v177 = vunpack.c.l.b16 %v32
  %v178 = vunpack.c.l.b16 %v33
  %v179 = vunpack.c.l.b16 %v34
  %v180 = vunpack.c.l.b16 %v35
  %v181 = vunpack.c.l.b16 %v36
  %v182 = vunpack.c.l.b16 %v37
  %v183 = vunpack.c.l.b16 %v38
  %v184 = vunpack.c.l.b16 %v39
  %v185 = vunpack.c.l.b16 %v40
  %v186 = vunpack.c.l.b16 %v41
  %v187 = vunpack.c.l.b16 %v42
  %v188 = vunpack.c.l.b16 %v43
  %v189 = vunpack.c.l.b16 %v44
  %v190 = vunpack.c.l.b16 %v45
  %v191 = vunpack.c.l.b16 %v46
  %v192 = vunpack.c.l.b16 %v47
  %v193 = vunpack.c.l.b16 %v48
  %v194 = vunpack.c.l.b16 %v49
  %v195 = vunpack.c.l.b16 %v50
  %v196 = vunpack.c.l.b16 %v51
  %v197 = vunpack.c.l.b16 %v52
  %v198 = vunpack.c.l.b16 %v53
  %v199 = vunpack.c.l.b16 %v54
  %v200 = vunpack.c.l.b16 %v55
  %v201 = vunpack.c.l.b16 %v56
  %v202 = vunpack.c.l.b16 %v57
  %v203 = vunpack.c.l.b16 %v58
  %v204 = vunpack.c.l.b16 %v59
  %v205 = vunpack.c.l.b16 %v60
  %v206 = vunpack.c.l.b16 %v61
  %v207 = vunpack.c.l.b16 %v62
  %v208 = vunpack.c.l.b16 %v63
  %v209 = vunpack.c.l.b16 %v64
  %v210 = vunpack.c.l.b16 %v65
  %v211 = vunpack.c.l.b16 %v66
  %v212 = vunpack.c.l.b16 %v67
  %v213 = vunpack.c.l.b16 %v68
  %v214 = vunpack.c.l.b16 %v69
  %v215 = vunpack.c.l.b16 %v70
  %v216 = vunpack.c.l.b16 %v71
  %v217 = vunpack.c.l.b16 %v72
  %v218 = vunpack.c.l.b16 %v73
  %v219 = vunpack.c.l.b16 %v74
  %v220 = vunpack.c.l.b16 %v75
  %v221 = vunpack.c.l.b16 %v76
  %v222 = vunpack.c.l.b16 %v77
  %v223 = vunpack.c.l.b16 %v78
  %v224 = vpack.c.b16 %v161, %v160
  %v225 = vpack.c.b16 %v163, %v162
  %v226 = vpack.c.b16 %v165, %v164
  %v227 = vpack.c.b16 %v167, %v166
  %v228 = vpack.c.b16 %v169, %v168
  %v229 = vpack.c.b16 %v171, %v170
  %v230 = vpack.c.b16 %v173, %v172
  %v231 = vpack.c.b16 %v175, %v174
  %v232 = vpack.c.b16 %v177, %v176
  %v233 = vpack.c.b16 %v179, %v178
  %v234 = vpack.c.b16 %v181, %v180
  %v235 = vpack.c.b16 %v183, %v182
  %v236 = vpack.c.b16 %v185, %v184
  %v237 = vpack.c.b16 %v187, %v186
  %v238 = vpack.c.b16 %v189, %v188
  %v239 = vpack.c.b16 %v191, %v190
  %v240 = vpack.c.b16 %v193, %v192
  %v241 = vpack.c.b16 %v195, %v194
  %v242 = vpack.c.b16 %v197, %v196
  %v243 = vpack.c.b16 %v199, %v198
  %v244 = vpack.c.b16 %v201, %v200
  %v245 = vpack.c.b16 %v203, %v202
  %v246 = vpack.c.b16 %v205, %v204
  %v247 = vpack.c.b16 %v207, %v206
  %v248 = vpack.c.b16 %v209, %v208
  %v249 = vpack.c.b16 %v211, %v210
  %v250 = vpack.c.b16 %v213, %v212
  %v251 = vpack.c.b16 %v215, %v214
  %v252 = vpack.c.b16 %v217, %v216
  %v253 = vpack.c.b16 %v219, %v218
  %v254 = vpack.c.b16 %v221, %v220
  %v255 = vpack.c.b16 %v223, %v222
  %v266 = vunpack.c.l.b16 %v79
  %v267 = vunpack.c.l.b16 %v80
  %v268 = vunpack.c.l.b16 %v81
  %v269 = vunpack.c.l.b16 %v82
  %v270 = vunpack.c.l.b16 %v83
  %v271 = vunpack.c.l.b16 %v84
  %v272 = vunpack.c.l.b16 %v85
  %v273 = vunpack.c.l.b16 %v86
  %v274 = vunpack.c.l.b16 %v87
  %v275 = vunpack.c.l.b16 %v88
  %v276 = vpack.c.b16 %v267, %v266
  %v277 = vpack.c.b16 %v269, %v268
  %v278 = vpack.c.b16 %v271, %v270
  %v279 = vpack.c.b16 %v273, %v272
  %v280 = vpack.c.b16 %v275, %v274
  %vm285 = vcmask 613376
  %v287 = vsel %vm285, %v224, 0
  %v290 = vsel %vm285, %v225, 0
  %v293 = vsel %vm285, %v226, 0
  %v296 = vsel %vm285, %v227, 0
  %v299 = vsel %vm285, %v228, 0
  %v302 = vsel %vm285, %v229, 0
  %v305 = vsel %vm285, %v230, 0
  %v308 = vsel %vm285, %v231, 0
  %v311 = vsel %vm285, %v232, 0
  %v314 = vsel %vm285, %v233, 0
  %v317 = vsel %vm285, %v234, 0
  %v320 = vsel %vm285, %v235, 0
  %v323 = vsel %vm285, %v236, 0
  %v326 = vsel %vm285, %v237, 0
  %v329 = vsel %vm285, %v238, 0
  %v332 = vsel %vm285, %v239, 0
  %v335 = vsel %vm285, %v240, 0
  %v338 = vsel %vm285, %v241, 0
  %v341 = vsel %vm285, %v242, 0
  %v344 = vsel %vm285, %v243, 0
  %v347 = vsel %vm285, %v244, 0
  %v350 = vsel %vm285, %v245, 0
  %v353 = vsel %vm285, %v246, 0
  %v356 = vsel %vm285, %v247, 0
  %v359 = vsel %vm285, %v248, 0
  %v362 = vsel %vm285, %v249, 0
  %v365 = vsel %vm285, %v250, 0
  %v368 = vsel %vm285, %v251, 0
  %v371 = vsel %vm285, %v252, 0
  %v374 = vsel %vm285, %v253, 0
  %v377 = vsel %vm285, %v254, 0
  %v380 = vsel %vm285, %v255, 0
  %vm382 = vcmask 1044480
  %vm383 = vcmask 1045504
  %v384 = vsel %vm382, 4294967295, 65535
  %v385 = vsel %vm383, %v384, 0
  %v387 = vand.u32 %v280, %v385
  %389 = vmatprep.subr.bf16.mxu0 0
  %390 = vmatpush1.bf16.msra.mxu0 %v276
  %391 = vmatprep.subr.bf16.mxu0 0
  %392 = vmatpush1.bf16.msra.mxu0 %v277
  %393 = vmatprep.subr.bf16.mxu0 0
  %394 = vmatpush1.bf16.msra.mxu0 %v278
  %395 = vmatprep.subr.bf16.mxu0 0
  %396 = vmatpush1.bf16.msra.mxu0 %v279
  %397 = vmatprep.subr.bf16.mxu0 0
  %398 = vmatpush1.bf16.msra.mxu0 %v387
  %399 = vmatprep.subr.bf16.mxu0 0
  %400 = vmatpush1.bf16.msra.mxu0 0
  %401 = vmatprep.subr.bf16.mxu0 0
  %402 = vmatpush1.bf16.msra.mxu0 0
  %403 = vmatprep.subr.bf16.mxu0 0
  %404 = vmatpush1.bf16.msra.mxu0 0
  %405 = vmatprep.subr.bf16.mxu0 0
  %406 = vmatpush1.bf16.msra.mxu0 0
  %407 = vmatprep.subr.bf16.mxu0 0
  %408 = vmatpush1.bf16.msra.mxu0 0
  %409 = vmatprep.subr.bf16.mxu0 0
  %410 = vmatpush1.bf16.msra.mxu0 0
  %411 = vmatprep.subr.bf16.mxu0 0
  %412 = vmatpush1.bf16.msra.mxu0 0
  %413 = vmatprep.subr.bf16.mxu0 0
  %414 = vmatpush1.bf16.msra.mxu0 0
  %415 = vmatprep.subr.bf16.mxu0 0
  %416 = vmatpush1.bf16.msra.mxu0 0
  %417 = vmatprep.subr.bf16.mxu0 0
  %418 = vmatpush1.bf16.msra.mxu0 0
  %419 = vmatprep.subr.bf16.mxu0 0
  %420 = vmatpush1.bf16.msra.mxu0 0
  %421 = vmatprep.mubr.bf16.mxu0 0
  %422 = vmatmul.mubr.bf16.gmra.mrb[0].mxu0 %v287
  %v423 = vpop.f32.mrb[0].mxu0
  %v424 = vadd.f32 %v94, %v423
  %v425 = vpop.f32.mrb[0].mxu0
  %v426 = vpop.f32.mrb[0].mxu0
  %v427 = vadd.f32 %v94, %v426
  %v428 = vpop.f32.mrb[0].mxu0
  %429 = vmatprep.mubr.bf16.mxu0 0
  %430 = vmatmul.mubr.bf16.gmra.mrb[0].mxu0 %v290
  %v431 = vpop.f32.mrb[0].mxu0
  %v432 = vadd.f32 %v94, %v431
  %v433 = vpop.f32.mrb[0].mxu0
  %v434 = vpop.f32.mrb[0].mxu0
  %v435 = vadd.f32 %v94, %v434
  %v436 = vpop.f32.mrb[0].mxu0
  %437 = vmatprep.mubr.bf16.mxu0 0
  %438 = vmatmul.mubr.bf16.gmra.mrb[0].mxu0 %v293
  %v439 = vpop.f32.mrb[0].mxu0
  %v440 = vadd.f32 %v94, %v439
  %v441 = vpop.f32.mrb[0].mxu0
  %v442 = vpop.f32.mrb[0].mxu0
  %v443 = vadd.f32 %v94, %v442
  %v444 = vpop.f32.mrb[0].mxu0
  %445 = vmatprep.mubr.bf16.mxu0 0
  %446 = vmatmul.mubr.bf16.gmra.mrb[0].mxu0 %v296
  %v447 = vpop.f32.mrb[0].mxu0
  %v448 = vadd.f32 %v94, %v447
  %v449 = vpop.f32.mrb[0].mxu0
  %v450 = vpop.f32.mrb[0].mxu0
  %v451 = vadd.f32 %v94, %v450
  %v452 = vpop.f32.mrb[0].mxu0
  %453 = vmatprep.mubr.bf16.mxu0 0
  %454 = vmatmul.mubr.bf16.gmra.mrb[0].mxu0 %v299
  %v455 = vpop.f32.mrb[0].mxu0
  %v456 = vadd.f32 %v94, %v455
  %v457 = vpop.f32.mrb[0].mxu0
  %v458 = vpop.f32.mrb[0].mxu0
  %v459 = vadd.f32 %v94, %v458
  %v460 = vpop.f32.mrb[0].mxu0
  %461 = vmatprep.mubr.bf16.mxu0 0
  %462 = vmatmul.mubr.bf16.gmra.mrb[0].mxu0 %v302
  %v463 = vpop.f32.mrb[0].mxu0
  %v464 = vadd.f32 %v94, %v463
  %v465 = vpop.f32.mrb[0].mxu0
  %v466 = vpop.f32.mrb[0].mxu0
  %v467 = vadd.f32 %v94, %v466
  %v468 = vpop.f32.mrb[0].mxu0
  %469 = vmatprep.mubr.bf16.mxu0 0
  %470 = vmatmul.mubr.bf16.gmra.mrb[0].mxu0 %v305
  %v471 = vpop.f32.mrb[0].mxu0
  %v472 = vadd.f32 %v94, %v471
  %v473 = vpop.f32.mrb[0].mxu0
  %v474 = vpop.f32.mrb[0].mxu0
  %v475 = vadd.f32 %v94, %v474
  %v476 = vpop.f32.mrb[0].mxu0
  %477 = vmatprep.mubr.bf16.mxu0 0
  %478 = vmatmul.mubr.bf16.gmra.mrb[0].mxu0 %v308
  %v479 = vpop.f32.mrb[0].mxu0
  %v480 = vadd.f32 %v94, %v479
  %v481 = vpop.f32.mrb[0].mxu0
  %v482 = vpop.f32.mrb[0].mxu0
  %v483 = vadd.f32 %v94, %v482
  %v484 = vpop.f32.mrb[0].mxu0
  %485 = vmatprep.mubr.bf16.mxu0 0
  %486 = vmatmul.mubr.bf16.gmra.mrb[0].mxu0 %v311
  %v487 = vpop.f32.mrb[0].mxu0
  %v488 = vadd.f32 %v94, %v487
  %v489 = vpop.f32.mrb[0].mxu0
  %v490 = vpop.f32.mrb[0].mxu0
  %v491 = vadd.f32 %v94, %v490
  %v492 = vpop.f32.mrb[0].mxu0
  %493 = vmatprep.mubr.bf16.mxu0 0
  %494 = vmatmul.mubr.bf16.gmra.mrb[0].mxu0 %v314
  %v495 = vpop.f32.mrb[0].mxu0
  %v496 = vadd.f32 %v94, %v495
  %v497 = vpop.f32.mrb[0].mxu0
  %v498 = vpop.f32.mrb[0].mxu0
  %v499 = vadd.f32 %v94, %v498
  %v500 = vpop.f32.mrb[0].mxu0
  %501 = vmatprep.mubr.bf16.mxu0 0
  %502 = vmatmul.mubr.bf16.gmra.mrb[0].mxu0 %v317
  %v503 = vpop.f32.mrb[0].mxu0
  %v504 = vadd.f32 %v94, %v503
  %v505 = vpop.f32.mrb[0].mxu0
  %v506 = vpop.f32.mrb[0].mxu0
  %v507 = vadd.f32 %v94, %v506
  %v508 = vpop.f32.mrb[0].mxu0
  %509 = vmatprep.mubr.bf16.mxu0 0
  %510 = vmatmul.mubr.bf16.gmra.mrb[0].mxu0 %v320
  %v511 = vpop.f32.mrb[0].mxu0
  %v512 = vadd.f32 %v94, %v511
  %v513 = vpop.f32.mrb[0].mxu0
  %v514 = vpop.f32.mrb[0].mxu0
  %v515 = vadd.f32 %v94, %v514
  %v516 = vpop.f32.mrb[0].mxu0
  %517 = vmatprep.mubr.bf16.mxu0 0
  %518 = vmatmul.mubr.bf16.gmra.mrb[0].mxu0 %v323
  %v519 = vpop.f32.mrb[0].mxu0
  %v520 = vadd.f32 %v94, %v519
  %v521 = vpop.f32.mrb[0].mxu0
  %v522 = vpop.f32.mrb[0].mxu0
  %v523 = vadd.f32 %v94, %v522
  %v524 = vpop.f32.mrb[0].mxu0
  %525 = vmatprep.mubr.bf16.mxu0 0
  %526 = vmatmul.mubr.bf16.gmra.mrb[0].mxu0 %v326
  %v527 = vpop.f32.mrb[0].mxu0
  %v528 = vadd.f32 %v94, %v527
  %v529 = vpop.f32.mrb[0].mxu0
  %v530 = vpop.f32.mrb[0].mxu0
  %v531 = vadd.f32 %v94, %v530
  %v532 = vpop.f32.mrb[0].mxu0
  %533 = vmatprep.mubr.bf16.mxu0 0
  %534 = vmatmul.mubr.bf16.gmra.mrb[0].mxu0 %v329
  %v535 = vpop.f32.mrb[0].mxu0
  %v536 = vadd.f32 %v94, %v535
  %v537 = vpop.f32.mrb[0].mxu0
  %v538 = vpop.f32.mrb[0].mxu0
  %v539 = vadd.f32 %v94, %v538
  %v540 = vpop.f32.mrb[0].mxu0
  %541 = vmatprep.mubr.bf16.mxu0 0
  %542 = vmatmul.mubr.bf16.gmra.mrb[0].mxu0 %v332
  %v543 = vpop.f32.mrb[0].mxu0
  %v544 = vadd.f32 %v94, %v543
  %v545 = vpop.f32.mrb[0].mxu0
  %v546 = vpop.f32.mrb[0].mxu0
  %v547 = vadd.f32 %v94, %v546
  %v548 = vpop.f32.mrb[0].mxu0
  %549 = vmatprep.mubr.bf16.mxu0 0
  %550 = vmatmul.mubr.bf16.gmra.mrb[0].mxu0 %v335
  %v551 = vpop.f32.mrb[0].mxu0
  %v552 = vadd.f32 %v94, %v551
  %v553 = vpop.f32.mrb[0].mxu0
  %v554 = vpop.f32.mrb[0].mxu0
  %v555 = vadd.f32 %v94, %v554
  %v556 = vpop.f32.mrb[0].mxu0
  %557 = vmatprep.mubr.bf16.mxu0 0
  %558 = vmatmul.mubr.bf16.gmra.mrb[0].mxu0 %v338
  %v559 = vpop.f32.mrb[0].mxu0
  %v560 = vadd.f32 %v94, %v559
  %v561 = vpop.f32.mrb[0].mxu0
  %v562 = vpop.f32.mrb[0].mxu0
  %v563 = vadd.f32 %v94, %v562
  %v564 = vpop.f32.mrb[0].mxu0
  %565 = vmatprep.mubr.bf16.mxu0 0
  %566 = vmatmul.mubr.bf16.gmra.mrb[0].mxu0 %v341
  %v567 = vpop.f32.mrb[0].mxu0
  %v568 = vadd.f32 %v94, %v567
  %v569 = vpop.f32.mrb[0].mxu0
  %v570 = vpop.f32.mrb[0].mxu0
  %v571 = vadd.f32 %v94, %v570
  %v572 = vpop.f32.mrb[0].mxu0
  %573 = vmatprep.mubr.bf16.mxu0 0
  %574 = vmatmul.mubr.bf16.gmra.mrb[0].mxu0 %v344
  %v575 = vpop.f32.mrb[0].mxu0
  %v576 = vadd.f32 %v94, %v575
  %v577 = vpop.f32.mrb[0].mxu0
  %v578 = vpop.f32.mrb[0].mxu0
  %v579 = vadd.f32 %v94, %v578
  %v580 = vpop.f32.mrb[0].mxu0
  %581 = vmatprep.mubr.bf16.mxu0 0
  %582 = vmatmul.mubr.bf16.gmra.mrb[0].mxu0 %v347
  %v583 = vpop.f32.mrb[0].mxu0
  %v584 = vadd.f32 %v94, %v583
  %v585 = vpop.f32.mrb[0].mxu0
  %v586 = vpop.f32.mrb[0].mxu0
  %v587 = vadd.f32 %v94, %v586
  %v588 = vpop.f32.mrb[0].mxu0
  %589 = vmatprep.mubr.bf16.mxu0 0
  %590 = vmatmul.mubr.bf16.gmra.mrb[0].mxu0 %v350
  %v591 = vpop.f32.mrb[0].mxu0
  %v592 = vadd.f32 %v94, %v591
  %v593 = vpop.f32.mrb[0].mxu0
  %v594 = vpop.f32.mrb[0].mxu0
  %v595 = vadd.f32 %v94, %v594
  %v596 = vpop.f32.mrb[0].mxu0
  %597 = vmatprep.mubr.bf16.mxu0 0
  %598 = vmatmul.mubr.bf16.gmra.mrb[0].mxu0 %v353
  %v599 = vpop.f32.mrb[0].mxu0
  %v600 = vadd.f32 %v94, %v599
  %v601 = vpop.f32.mrb[0].mxu0
  %v602 = vpop.f32.mrb[0].mxu0
  %v603 = vadd.f32 %v94, %v602
  %v604 = vpop.f32.mrb[0].mxu0
  %605 = vmatprep.mubr.bf16.mxu0 0
  %606 = vmatmul.mubr.bf16.gmra.mrb[0].mxu0 %v356
  %v607 = vpop.f32.mrb[0].mxu0
  %v608 = vadd.f32 %v94, %v607
  %v609 = vpop.f32.mrb[0].mxu0
  %v610 = vpop.f32.mrb[0].mxu0
  %v611 = vadd.f32 %v94, %v610
  %v612 = vpop.f32.mrb[0].mxu0
  %613 = vmatprep.mubr.bf16.mxu0 0
  %614 = vmatmul.mubr.bf16.gmra.mrb[0].mxu0 %v359
  %v615 = vpop.f32.mrb[0].mxu0
  %v616 = vadd.f32 %v94, %v615
  %v617 = vpop.f32.mrb[0].mxu0
  %v618 = vpop.f32.mrb[0].mxu0
  %v619 = vadd.f32 %v94, %v618
  %v620 = vpop.f32.mrb[0].mxu0
  %621 = vmatprep.mubr.bf16.mxu0 0
  %622 = vmatmul.mubr.bf16.gmra.mrb[0].mxu0 %v362
  %v623 = vpop.f32.mrb[0].mxu0
  %v624 = vadd.f32 %v94, %v623
  %v625 = vpop.f32.mrb[0].mxu0
  %v626 = vpop.f32.mrb[0].mxu0
  %v627 = vadd.f32 %v94, %v626
  %v628 = vpop.f32.mrb[0].mxu0
  %629 = vmatprep.mubr.bf16.mxu0 0
  %630 = vmatmul.mubr.bf16.gmra.mrb[0].mxu0 %v365
  %v631 = vpop.f32.mrb[0].mxu0
  %v632 = vadd.f32 %v94, %v631
  %v633 = vpop.f32.mrb[0].mxu0
  %v634 = vpop.f32.mrb[0].mxu0
  %v635 = vadd.f32 %v94, %v634
  %v636 = vpop.f32.mrb[0].mxu0
  %637 = vmatprep.mubr.bf16.mxu0 0
  %638 = vmatmul.mubr.bf16.gmra.mrb[0].mxu0 %v368
  %v639 = vpop.f32.mrb[0].mxu0
  %v640 = vadd.f32 %v94, %v639
  %v641 = vpop.f32.mrb[0].mxu0
  %v642 = vpop.f32.mrb[0].mxu0
  %v643 = vadd.f32 %v94, %v642
  %v644 = vpop.f32.mrb[0].mxu0
  %645 = vmatprep.mubr.bf16.mxu0 0
  %646 = vmatmul.mubr.bf16.gmra.mrb[0].mxu0 %v371
  %v647 = vpop.f32.mrb[0].mxu0
  %v648 = vadd.f32 %v94, %v647
  %v649 = vpop.f32.mrb[0].mxu0
  %v650 = vpop.f32.mrb[0].mxu0
  %v651 = vadd.f32 %v94, %v650
  %v652 = vpop.f32.mrb[0].mxu0
  %653 = vmatprep.mubr.bf16.mxu0 0
  %654 = vmatmul.mubr.bf16.gmra.mrb[0].mxu0 %v374
  %v655 = vpop.f32.mrb[0].mxu0
  %v656 = vadd.f32 %v94, %v655
  %v657 = vpop.f32.mrb[0].mxu0
  %v658 = vpop.f32.mrb[0].mxu0
  %v659 = vadd.f32 %v94, %v658
  %v660 = vpop.f32.mrb[0].mxu0
  %661 = vmatprep.mubr.bf16.mxu0 0
  %662 = vmatmul.mubr.bf16.gmra.mrb[0].mxu0 %v377
  %v663 = vpop.f32.mrb[0].mxu0
  %v664 = vadd.f32 %v94, %v663
  %v665 = vpop.f32.mrb[0].mxu0
  %v666 = vpop.f32.mrb[0].mxu0
  %v667 = vadd.f32 %v94, %v666
  %v668 = vpop.f32.mrb[0].mxu0
  %669 = vmatprep.mubr.bf16.mxu0 0
  %670 = vmatmul.mubr.bf16.gmra.mrb[0].mxu0 %v380
  %v671 = vpop.f32.mrb[0].mxu0
  %v672 = vadd.f32 %v94, %v671
  %v673 = vpop.f32.mrb[0].mxu0
  %v674 = vpop.f32.mrb[0].mxu0
  %v675 = vadd.f32 %v94, %v674
  %v676 = vpop.f32.mrb[0].mxu0
  %677 = vdwg.mxu0
  %v678 = vpack.c.bf16 %v427, %v424
  %v679 = vpack.c.bf16 %v435, %v432
  %v680 = vpack.c.bf16 %v443, %v440
  %v681 = vpack.c.bf16 %v451, %v448
  %v682 = vpack.c.bf16 %v459, %v456
  %v683 = vpack.c.bf16 %v467, %v464
  %v684 = vpack.c.bf16 %v475, %v472
  %v685 = vpack.c.bf16 %v483, %v480
  %v686 = vpack.c.bf16 %v491, %v488
  %v687 = vpack.c.bf16 %v499, %v496
  %v688 = vpack.c.bf16 %v507, %v504
  %v689 = vpack.c.bf16 %v515, %v512
  %v690 = vpack.c.bf16 %v523, %v520
  %v691 = vpack.c.bf16 %v531, %v528
  %v692 = vpack.c.bf16 %v539, %v536
  %v693 = vpack.c.bf16 %v547, %v544
  %v694 = vpack.c.bf16 %v555, %v552
  %v695 = vpack.c.bf16 %v563, %v560
  %v696 = vpack.c.bf16 %v571, %v568
  %v697 = vpack.c.bf16 %v579, %v576
  %v698 = vpack.c.bf16 %v587, %v584
  %v699 = vpack.c.bf16 %v595, %v592
  %v700 = vpack.c.bf16 %v603, %v600
  %v701 = vpack.c.bf16 %v611, %v608
  %v702 = vpack.c.bf16 %v619, %v616
  %v703 = vpack.c.bf16 %v627, %v624
  %v704 = vpack.c.bf16 %v635, %v632
  %v705 = vpack.c.bf16 %v643, %v640
  %v706 = vpack.c.bf16 %v651, %v648
  %v707 = vpack.c.bf16 %v659, %v656
  %v708 = vpack.c.bf16 %v667, %v664
  %v709 = vpack.c.bf16 %v675, %v672
  %v742 = vunpack.c.l.b16 %v678
  %v743 = vunpack.c.h.b16 %v678
  %v744 = vunpack.c.l.b16 %v679
  %v745 = vunpack.c.h.b16 %v679
  %v746 = vunpack.c.l.b16 %v680
  %v747 = vunpack.c.h.b16 %v680
  %v748 = vunpack.c.l.b16 %v681
  %v749 = vunpack.c.h.b16 %v681
  %v750 = vunpack.c.l.b16 %v682
  %v751 = vunpack.c.h.b16 %v682
  %v752 = vunpack.c.l.b16 %v683
  %v753 = vunpack.c.h.b16 %v683
  %v754 = vunpack.c.l.b16 %v684
  %v755 = vunpack.c.h.b16 %v684
  %v756 = vunpack.c.l.b16 %v685
  %v757 = vunpack.c.h.b16 %v685
  %v758 = vunpack.c.l.b16 %v686
  %v759 = vunpack.c.h.b16 %v686
  %v760 = vunpack.c.l.b16 %v687
  %v761 = vunpack.c.h.b16 %v687
  %v762 = vunpack.c.l.b16 %v688
  %v763 = vunpack.c.h.b16 %v688
  %v764 = vunpack.c.l.b16 %v689
  %v765 = vunpack.c.h.b16 %v689
  %v766 = vunpack.c.l.b16 %v690
  %v767 = vunpack.c.h.b16 %v690
  %v768 = vunpack.c.l.b16 %v691
  %v769 = vunpack.c.h.b16 %v691
  %v770 = vunpack.c.l.b16 %v692
  %v771 = vunpack.c.h.b16 %v692
  %v772 = vunpack.c.l.b16 %v693
  %v773 = vunpack.c.h.b16 %v693
  %v774 = vunpack.c.l.b16 %v694
  %v775 = vunpack.c.h.b16 %v694
  %v776 = vunpack.c.l.b16 %v695
  %v777 = vunpack.c.h.b16 %v695
  %v778 = vunpack.c.l.b16 %v696
  %v779 = vunpack.c.h.b16 %v696
  %v780 = vunpack.c.l.b16 %v697
  %v781 = vunpack.c.h.b16 %v697
  %v782 = vunpack.c.l.b16 %v698
  %v783 = vunpack.c.h.b16 %v698
  %v784 = vunpack.c.l.b16 %v699
  %v785 = vunpack.c.h.b16 %v699
  %v786 = vunpack.c.l.b16 %v700
  %v787 = vunpack.c.h.b16 %v700
  %v788 = vunpack.c.l.b16 %v701
  %v789 = vunpack.c.h.b16 %v701
  %v790 = vunpack.c.l.b16 %v702
  %v791 = vunpack.c.h.b16 %v702
  %v792 = vunpack.c.l.b16 %v703
  %v793 = vunpack.c.h.b16 %v703
  %v794 = vunpack.c.l.b16 %v704
  %v795 = vunpack.c.h.b16 %v704
  %v796 = vunpack.c.l.b16 %v705
  %v797 = vunpack.c.h.b16 %v705
  %v798 = vunpack.c.l.b16 %v706
  %v799 = vunpack.c.h.b16 %v706
  %v800 = vunpack.c.l.b16 %v707
  %v801 = vunpack.c.h.b16 %v707
  %v802 = vunpack.c.l.b16 %v708
  %v803 = vunpack.c.h.b16 %v708
  %v804 = vunpack.c.l.b16 %v709
  %v805 = vunpack.c.h.b16 %v709
  %v806 = vpack.c.b16 %v742, %v742
  %v807 = vpack.c.b16 %v743, %v743
  %v808 = vpack.c.b16 %v744, %v744
  %v809 = vpack.c.b16 %v745, %v745
  %v810 = vpack.c.b16 %v746, %v746
  %v811 = vpack.c.b16 %v747, %v747
  %v812 = vpack.c.b16 %v748, %v748
  %v813 = vpack.c.b16 %v749, %v749
  %v814 = vpack.c.b16 %v750, %v750
  %v815 = vpack.c.b16 %v751, %v751
  %v816 = vpack.c.b16 %v752, %v752
  %v817 = vpack.c.b16 %v753, %v753
  %v818 = vpack.c.b16 %v754, %v754
  %v819 = vpack.c.b16 %v755, %v755
  %v820 = vpack.c.b16 %v756, %v756
  %v821 = vpack.c.b16 %v757, %v757
  %v822 = vpack.c.b16 %v758, %v758
  %v823 = vpack.c.b16 %v759, %v759
  %v824 = vpack.c.b16 %v760, %v760
  %v825 = vpack.c.b16 %v761, %v761
  %v826 = vpack.c.b16 %v762, %v762
  %v827 = vpack.c.b16 %v763, %v763
  %v828 = vpack.c.b16 %v764, %v764
  %v829 = vpack.c.b16 %v765, %v765
  %v830 = vpack.c.b16 %v766, %v766
  %v831 = vpack.c.b16 %v767, %v767
  %v832 = vpack.c.b16 %v768, %v768
  %v833 = vpack.c.b16 %v769, %v769
  %v834 = vpack.c.b16 %v770, %v770
  %v835 = vpack.c.b16 %v771, %v771
  %v836 = vpack.c.b16 %v772, %v772
  %v837 = vpack.c.b16 %v773, %v773
  %v838 = vpack.c.b16 %v774, %v774
  %v839 = vpack.c.b16 %v775, %v775
  %v840 = vpack.c.b16 %v776, %v776
  %v841 = vpack.c.b16 %v777, %v777
  %v842 = vpack.c.b16 %v778, %v778
  %v843 = vpack.c.b16 %v779, %v779
  %v844 = vpack.c.b16 %v780, %v780
  %v845 = vpack.c.b16 %v781, %v781
  %v846 = vpack.c.b16 %v782, %v782
  %v847 = vpack.c.b16 %v783, %v783
  %v848 = vpack.c.b16 %v784, %v784
  %v849 = vpack.c.b16 %v785, %v785
  %v850 = vpack.c.b16 %v786, %v786
  %v851 = vpack.c.b16 %v787, %v787
  %v852 = vpack.c.b16 %v788, %v788
  %v853 = vpack.c.b16 %v789, %v789
  %v854 = vpack.c.b16 %v790, %v790
  %v855 = vpack.c.b16 %v791, %v791
  %v856 = vpack.c.b16 %v792, %v792
  %v857 = vpack.c.b16 %v793, %v793
  %v858 = vpack.c.b16 %v794, %v794
  %v859 = vpack.c.b16 %v795, %v795
  %v860 = vpack.c.b16 %v796, %v796
  %v861 = vpack.c.b16 %v797, %v797
  %v862 = vpack.c.b16 %v798, %v798
  %v863 = vpack.c.b16 %v799, %v799
  %v864 = vpack.c.b16 %v800, %v800
  %v865 = vpack.c.b16 %v801, %v801
  %v866 = vpack.c.b16 %v802, %v802
  %v867 = vpack.c.b16 %v803, %v803
  %v868 = vpack.c.b16 %v804, %v804
  %v869 = vpack.c.b16 %v805, %v805
  %934 = vst [vmem:[%s3] sm:$0xf] %v806
  %935 = vst [vmem:[%s3 + $0x4] sm:$0xf] %v807
  %936 = vst [vmem:[%s3 + $0x8] sm:$0xf] %v808
  %937 = vst [vmem:[%s3 + $0xc] sm:$0xf] %v809
  %938 = vst [vmem:[%s3 + $0x10] sm:$0xf] %v810
  %939 = vst [vmem:[%s3 + $0x14] sm:$0xf] %v811
  %940 = vst [vmem:[%s3 + $0x18] sm:$0xf] %v812
  %941 = vst [vmem:[%s3 + $0x1c] sm:$0xf] %v813
  %942 = vst [vmem:[%s3 + $0x20] sm:$0xf] %v814
  %943 = vst [vmem:[%s3 + $0x24] sm:$0xf] %v815
  %944 = vst [vmem:[%s3 + $0x28] sm:$0xf] %v816
  %945 = vst [vmem:[%s3 + $0x2c] sm:$0xf] %v817
  %946 = vst [vmem:[%s3 + $0x30] sm:$0xf] %v818
  %947 = vst [vmem:[%s3 + $0x34] sm:$0xf] %v819
  %948 = vst [vmem:[%s3 + $0x38] sm:$0xf] %v820
  %949 = vst [vmem:[%s3 + $0x3c] sm:$0xf] %v821
  %950 = vst [vmem:[%s3 + $0x40] sm:$0xf] %v822
  %951 = vst [vmem:[%s3 + $0x44] sm:$0xf] %v823
  %952 = vst [vmem:[%s3 + $0x48] sm:$0xf] %v824
  %953 = vst [vmem:[%s3 + $0x4c] sm:$0xf] %v825
  %954 = vst [vmem:[%s3 + $0x50] sm:$0xf] %v826
  %955 = vst [vmem:[%s3 + $0x54] sm:$0xf] %v827
  %956 = vst [vmem:[%s3 + $0x58] sm:$0xf] %v828
  %957 = vst [vmem:[%s3 + $0x5c] sm:$0xf] %v829
  %958 = vst [vmem:[%s3 + $0x60] sm:$0xf] %v830
  %959 = vst [vmem:[%s3 + $0x64] sm:$0xf] %v831
  %960 = vst [vmem:[%s3 + $0x68] sm:$0xf] %v832
  %961 = vst [vmem:[%s3 + $0x6c] sm:$0xf] %v833
  %962 = vst [vmem:[%s3 + $0x70] sm:$0xf] %v834
  %963 = vst [vmem:[%s3 + $0x74] sm:$0xf] %v835
  %964 = vst [vmem:[%s3 + $0x78] sm:$0xf] %v836
  %965 = vst [vmem:[%s3 + $0x7c] sm:$0xf] %v837
  %966 = vst [vmem:[%s3 + $0x80] sm:$0xf] %v838
  %967 = vst [vmem:[%s3 + $0x84] sm:$0xf] %v839
  %968 = vst [vmem:[%s3 + $0x88] sm:$0xf] %v840
  %969 = vst [vmem:[%s3 + $0x8c] sm:$0xf] %v841
  %970 = vst [vmem:[%s3 + $0x90] sm:$0xf] %v842
  %971 = vst [vmem:[%s3 + $0x94] sm:$0xf] %v843
  %972 = vst [vmem:[%s3 + $0x98] sm:$0xf] %v844
  %973 = vst [vmem:[%s3 + $0x9c] sm:$0xf] %v845
  %974 = vst [vmem:[%s3 + $0xa0] sm:$0xf] %v846
  %975 = vst [vmem:[%s3 + $0xa4] sm:$0xf] %v847
  %976 = vst [vmem:[%s3 + $0xa8] sm:$0xf] %v848
  %977 = vst [vmem:[%s3 + $0xac] sm:$0xf] %v849
  %978 = vst [vmem:[%s3 + $0xb0] sm:$0xf] %v850
  %979 = vst [vmem:[%s3 + $0xb4] sm:$0xf] %v851
  %980 = vst [vmem:[%s3 + $0xb8] sm:$0xf] %v852
  %981 = vst [vmem:[%s3 + $0xbc] sm:$0xf] %v853
  %982 = vst [vmem:[%s3 + $0xc0] sm:$0xf] %v854
  %983 = vst [vmem:[%s3 + $0xc4] sm:$0xf] %v855
  %984 = vst [vmem:[%s3 + $0xc8] sm:$0xf] %v856
  %985 = vst [vmem:[%s3 + $0xcc] sm:$0xf] %v857
  %986 = vst [vmem:[%s3 + $0xd0] sm:$0xf] %v858
  %987 = vst [vmem:[%s3 + $0xd4] sm:$0xf] %v859
  %988 = vst [vmem:[%s3 + $0xd8] sm:$0xf] %v860
  %989 = vst [vmem:[%s3 + $0xdc] sm:$0xf] %v861
  %990 = vst [vmem:[%s3 + $0xe0] sm:$0xf] %v862
  %991 = vst [vmem:[%s3 + $0xe4] sm:$0xf] %v863
  %992 = vst [vmem:[%s3 + $0xe8] sm:$0xf] %v864
  %993 = vst [vmem:[%s3 + $0xec] sm:$0xf] %v865
  %994 = vst [vmem:[%s3 + $0xf0] sm:$0xf] %v866
  %995 = vst [vmem:[%s3 + $0xf4] sm:$0xf] %v867
  %996 = vst [vmem:[%s3 + $0xf8] sm:$0xf] %v868
  %997 = vst [vmem:[%s3 + $0xfc] sm:$0xf] %v869
  // Predicated region
  $region14: #{rnncell_forward.19} parent=0 // pred_check
    _
  $region15: #{rnncell_forward.19} parent=0 // pred_check_branch
    %999 = sbr.rel (0) target = $region17
  $region16: #{rnncell_forward.19} parent=0 // pred_region
    _
  $region17: #{rnncell_forward.19} parent=0 // pred_fallthru
    _
  // Predicated region
  $region18: #{rnncell_forward.19} parent=0 // pred_check
    _
  $region19: #{rnncell_forward.19} parent=0 // pred_check_branch
    %1001 = sbr.rel (0) target = $region21
  $region20: #{rnncell_forward.19} parent=0 // pred_region
    _
  $region21: #{rnncell_forward.19} parent=0 // pred_fallthru
    _

// kernel: rnncell_forward.20
$region0: #{rnncell_forward.20}
  #allocation0 [shape = 'u32[]', space=smem, size = 0x4, offset = 0x4, fixed_abs, tag = 'smem constant byte address 0x4 - core index']
  #allocation1 [shape = 'u32[144,128]{1,0:T(1,128)}', space=vmem, size = 0x12000, scoped, tag = 'internal scratch']
  %s0 = inlined_call_operand.vmem [shape: bf16[128,500], index: 0, kind: input, shape index: {}]
  %s1 = inlined_call_operand.vmem [shape: bf16[500,128], index: 1, kind: input, shape index: {}]
  %s2 = inlined_call_operand.vmem [shape: f32[1,128], index: 2, kind: input, shape index: {}]
  %s3 = inlined_call_operand.vmem [shape: bf16[128,128], index: 3, kind: output, shape index: {}]
  %s4 = sld [smem:[#allocation0]]
  $region22: #{rnncell_forward.20} parent=0
    _
  %s6 = ssub.s32 1, %s4
  %s7 = scalar_select 0, %s6, %s4
  // Predicated region
  $region2: #{rnncell_forward.20} parent=0 // pred_check
    _
  $region3: #{rnncell_forward.20} parent=0 // pred_check_branch
    %9 = sbr.rel (0) target = $region5
  $region4: #{rnncell_forward.20} parent=0 // pred_region
    _
  $region5: #{rnncell_forward.20} parent=0 // pred_fallthru
    _
  // Predicated region
  $region6: #{rnncell_forward.20} parent=0 // pred_check
    _
  $region7: #{rnncell_forward.20} parent=0 // pred_check_branch
    %11 = sbr.rel (0) target = $region9
  $region8: #{rnncell_forward.20} parent=0 // pred_region
    _
  $region9: #{rnncell_forward.20} parent=0 // pred_fallthru
    _
  // Predicated region
  $region10: #{rnncell_forward.20} parent=0 // pred_check
    _
  $region11: #{rnncell_forward.20} parent=0 // pred_check_branch
    %13 = sbr.rel (0) target = $region13
  $region12: #{rnncell_forward.20} parent=0 // pred_region
    _
  $region13: #{rnncell_forward.20} parent=0 // pred_fallthru
    _
  %v15 = vld [vmem:[%s0] sm:$0xff]
  %v16 = vld [vmem:[%s0 + $0x8] sm:$0xff]
  %v17 = vld [vmem:[%s0 + $0x10] sm:$0xff]
  %v18 = vld [vmem:[%s0 + $0x18] sm:$0xff]
  %v19 = vld [vmem:[%s0 + $0x20] sm:$0xff]
  %v20 = vld [vmem:[%s0 + $0x28] sm:$0xff]
  %v21 = vld [vmem:[%s0 + $0x30] sm:$0xff]
  %v22 = vld [vmem:[%s0 + $0x38] sm:$0xff]
  %v23 = vld [vmem:[%s0 + $0x40] sm:$0xff]
  %v24 = vld [vmem:[%s0 + $0x48] sm:$0xff]
  %v25 = vld [vmem:[%s0 + $0x50] sm:$0xff]
  %v26 = vld [vmem:[%s0 + $0x58] sm:$0xff]
  %v27 = vld [vmem:[%s0 + $0x60] sm:$0xff]
  %v28 = vld [vmem:[%s0 + $0x68] sm:$0xff]
  %v29 = vld [vmem:[%s0 + $0x70] sm:$0xff]
  %v30 = vld [vmem:[%s0 + $0x78] sm:$0xff]
  %v31 = vld [vmem:[%s0 + $0x80] sm:$0xff]
  %v32 = vld [vmem:[%s0 + $0x88] sm:$0xff]
  %v33 = vld [vmem:[%s0 + $0x90] sm:$0xff]
  %v34 = vld [vmem:[%s0 + $0x98] sm:$0xff]
  %v35 = vld [vmem:[%s0 + $0xa0] sm:$0xff]
  %v36 = vld [vmem:[%s0 + $0xa8] sm:$0xff]
  %v37 = vld [vmem:[%s0 + $0xb0] sm:$0xff]
  %v38 = vld [vmem:[%s0 + $0xb8] sm:$0xff]
  %v39 = vld [vmem:[%s0 + $0xc0] sm:$0xff]
  %v40 = vld [vmem:[%s0 + $0xc8] sm:$0xff]
  %v41 = vld [vmem:[%s0 + $0xd0] sm:$0xff]
  %v42 = vld [vmem:[%s0 + $0xd8] sm:$0xff]
  %v43 = vld [vmem:[%s0 + $0xe0] sm:$0xff]
  %v44 = vld [vmem:[%s0 + $0xe8] sm:$0xff]
  %v45 = vld [vmem:[%s0 + $0xf0] sm:$0xff]
  %v46 = vld [vmem:[%s0 + $0xf8] sm:$0xff]
  %v47 = vld [vmem:[%s1] sm:$0xf]
  %v48 = vld [vmem:[%s1 + $0x4] sm:$0xf]
  %v49 = vld [vmem:[%s1 + $0x8] sm:$0xf]
  %v50 = vld [vmem:[%s1 + $0xc] sm:$0xf]
  %v51 = vld [vmem:[%s1 + $0x10] sm:$0xf]
  %v52 = vld [vmem:[%s1 + $0x14] sm:$0xf]
  %v53 = vld [vmem:[%s1 + $0x18] sm:$0xf]
  %v54 = vld [vmem:[%s1 + $0x1c] sm:$0xf]
  %v55 = vld [vmem:[%s1 + $0x20] sm:$0xf]
  %v56 = vld [vmem:[%s1 + $0x24] sm:$0xf]
  %v57 = vld [vmem:[%s1 + $0x28] sm:$0xf]
  %v58 = vld [vmem:[%s1 + $0x2c] sm:$0xf]
  %v59 = vld [vmem:[%s1 + $0x30] sm:$0xf]
  %v60 = vld [vmem:[%s1 + $0x34] sm:$0xf]
  %v61 = vld [vmem:[%s1 + $0x38] sm:$0xf]
  %v62 = vld [vmem:[%s1 + $0x3c] sm:$0xf]
  %v63 = vld [vmem:[%s1 + $0x40] sm:$0xf]
  %v64 = vld [vmem:[%s1 + $0x44] sm:$0xf]
  %v65 = vld [vmem:[%s1 + $0x48] sm:$0xf]
  %v66 = vld [vmem:[%s1 + $0x4c] sm:$0xf]
  %v67 = vld [vmem:[%s1 + $0x50] sm:$0xf]
  %v68 = vld [vmem:[%s1 + $0x54] sm:$0xf]
  %v69 = vld [vmem:[%s1 + $0x58] sm:$0xf]
  %v70 = vld [vmem:[%s1 + $0x5c] sm:$0xf]
  %v71 = vld [vmem:[%s1 + $0x60] sm:$0xf]
  %v72 = vld [vmem:[%s1 + $0x64] sm:$0xf]
  %v73 = vld [vmem:[%s1 + $0x68] sm:$0xf]
  %v74 = vld [vmem:[%s1 + $0x6c] sm:$0xf]
  %v75 = vld [vmem:[%s1 + $0x70] sm:$0xf]
  %v76 = vld [vmem:[%s1 + $0x74] sm:$0xf]
  %v77 = vld [vmem:[%s1 + $0x78] sm:$0xf]
  %v78 = vld [vmem:[%s1 + $0x7c] sm:$0xf]
  %v79 = vld [vmem:[%s1 + $0x80] sm:$0xf]
  %v80 = vld [vmem:[%s1 + $0x84] sm:$0xf]
  %v81 = vld [vmem:[%s1 + $0x88] sm:$0xf]
  %v82 = vld [vmem:[%s1 + $0x8c] sm:$0xf]
  %v83 = vld [vmem:[%s1 + $0x90] sm:$0xf]
  %v84 = vld [vmem:[%s1 + $0x94] sm:$0xf]
  %v85 = vld [vmem:[%s1 + $0x98] sm:$0xf]
  %v86 = vld [vmem:[%s1 + $0x9c] sm:$0xf]
  %v87 = vld [vmem:[%s1 + $0xa0] sm:$0xf]
  %v88 = vld [vmem:[%s1 + $0xa4] sm:$0xf]
  %v89 = vld [vmem:[%s1 + $0xa8] sm:$0xf]
  %v90 = vld [vmem:[%s1 + $0xac] sm:$0xf]
  %v91 = vld [vmem:[%s1 + $0xb0] sm:$0xf]
  %v92 = vld [vmem:[%s1 + $0xb4] sm:$0xf]
  %v93 = vld [vmem:[%s1 + $0xb8] sm:$0xf]
  %v94 = vld [vmem:[%s1 + $0xbc] sm:$0xf]
  %v95 = vld [vmem:[%s1 + $0xc0] sm:$0xf]
  %v96 = vld [vmem:[%s1 + $0xc4] sm:$0xf]
  %v97 = vld [vmem:[%s1 + $0xc8] sm:$0xf]
  %v98 = vld [vmem:[%s1 + $0xcc] sm:$0xf]
  %v99 = vld [vmem:[%s1 + $0xd0] sm:$0xf]
  %v100 = vld [vmem:[%s1 + $0xd4] sm:$0xf]
  %v101 = vld [vmem:[%s1 + $0xd8] sm:$0xf]
  %v102 = vld [vmem:[%s1 + $0xdc] sm:$0xf]
  %v103 = vld [vmem:[%s1 + $0xe0] sm:$0xf]
  %v104 = vld [vmem:[%s1 + $0xe4] sm:$0xf]
  %v105 = vld [vmem:[%s1 + $0xe8] sm:$0xf]
  %v106 = vld [vmem:[%s1 + $0xec] sm:$0xf]
  %v107 = vld [vmem:[%s1 + $0xf0] sm:$0xf]
  %v108 = vld [vmem:[%s1 + $0xf4] sm:$0xf]
  %v109 = vld [vmem:[%s1 + $0xf8] sm:$0x3]
  %v110 = vld [vmem:[%s2] sm:$0x1]
  %v112 = vlaneseq
  %v113 = vshrl.u32 %v112, 7
  %v114 = vsub.s32 0, %v113
  %v115 = vrot.slane %v110, %v114
  %v149 = vunpack.c.l.b16 %v15
  %v150 = vunpack.c.h.b16 %v15
  %v151 = vunpack.c.l.b16 %v16
  %v152 = vunpack.c.h.b16 %v16
  %v153 = vunpack.c.l.b16 %v17
  %v154 = vunpack.c.h.b16 %v17
  %v155 = vunpack.c.l.b16 %v18
  %v156 = vunpack.c.h.b16 %v18
  %v157 = vunpack.c.l.b16 %v19
  %v158 = vunpack.c.h.b16 %v19
  %v159 = vunpack.c.l.b16 %v20
  %v160 = vunpack.c.h.b16 %v20
  %v161 = vunpack.c.l.b16 %v21
  %v162 = vunpack.c.h.b16 %v21
  %v163 = vunpack.c.l.b16 %v22
  %v164 = vunpack.c.h.b16 %v22
  %v165 = vunpack.c.l.b16 %v23
  %v166 = vunpack.c.h.b16 %v23
  %v167 = vunpack.c.l.b16 %v24
  %v168 = vunpack.c.h.b16 %v24
  %v169 = vunpack.c.l.b16 %v25
  %v170 = vunpack.c.h.b16 %v25
  %v171 = vunpack.c.l.b16 %v26
  %v172 = vunpack.c.h.b16 %v26
  %v173 = vunpack.c.l.b16 %v27
  %v174 = vunpack.c.h.b16 %v27
  %v175 = vunpack.c.l.b16 %v28
  %v176 = vunpack.c.h.b16 %v28
  %v177 = vunpack.c.l.b16 %v29
  %v178 = vunpack.c.h.b16 %v29
  %v179 = vunpack.c.l.b16 %v30
  %v180 = vunpack.c.h.b16 %v30
  %v181 = vunpack.c.l.b16 %v31
  %v182 = vunpack.c.h.b16 %v31
  %v183 = vunpack.c.l.b16 %v32
  %v184 = vunpack.c.h.b16 %v32
  %v185 = vunpack.c.l.b16 %v33
  %v186 = vunpack.c.h.b16 %v33
  %v187 = vunpack.c.l.b16 %v34
  %v188 = vunpack.c.h.b16 %v34
  %v189 = vunpack.c.l.b16 %v35
  %v190 = vunpack.c.h.b16 %v35
  %v191 = vunpack.c.l.b16 %v36
  %v192 = vunpack.c.h.b16 %v36
  %v193 = vunpack.c.l.b16 %v37
  %v194 = vunpack.c.h.b16 %v37
  %v195 = vunpack.c.l.b16 %v38
  %v196 = vunpack.c.h.b16 %v38
  %v197 = vunpack.c.l.b16 %v39
  %v198 = vunpack.c.h.b16 %v39
  %v199 = vunpack.c.l.b16 %v40
  %v200 = vunpack.c.h.b16 %v40
  %v201 = vunpack.c.l.b16 %v41
  %v202 = vunpack.c.h.b16 %v41
  %v203 = vunpack.c.l.b16 %v42
  %v204 = vunpack.c.h.b16 %v42
  %v205 = vunpack.c.l.b16 %v43
  %v206 = vunpack.c.h.b16 %v43
  %v207 = vunpack.c.l.b16 %v44
  %v208 = vunpack.c.h.b16 %v44
  %v209 = vunpack.c.l.b16 %v45
  %v210 = vunpack.c.h.b16 %v45
  %v211 = vunpack.c.l.b16 %v46
  %v212 = vunpack.c.h.b16 %v46
  %v213 = vpack.c.b16 %v153, %v149
  %v214 = vpack.c.b16 %v154, %v150
  %v215 = vpack.c.b16 %v155, %v151
  %v216 = vpack.c.b16 %v156, %v152
  %v217 = vpack.c.b16 %v161, %v157
  %v218 = vpack.c.b16 %v162, %v158
  %v219 = vpack.c.b16 %v163, %v159
  %v220 = vpack.c.b16 %v164, %v160
  %v221 = vpack.c.b16 %v169, %v165
  %v222 = vpack.c.b16 %v170, %v166
  %v223 = vpack.c.b16 %v171, %v167
  %v224 = vpack.c.b16 %v172, %v168
  %v225 = vpack.c.b16 %v177, %v173
  %v226 = vpack.c.b16 %v178, %v174
  %v227 = vpack.c.b16 %v179, %v175
  %v228 = vpack.c.b16 %v180, %v176
  %v229 = vpack.c.b16 %v185, %v181
  %v230 = vpack.c.b16 %v186, %v182
  %v231 = vpack.c.b16 %v187, %v183
  %v232 = vpack.c.b16 %v188, %v184
  %v233 = vpack.c.b16 %v193, %v189
  %v234 = vpack.c.b16 %v194, %v190
  %v235 = vpack.c.b16 %v195, %v191
  %v236 = vpack.c.b16 %v196, %v192
  %v237 = vpack.c.b16 %v201, %v197
  %v238 = vpack.c.b16 %v202, %v198
  %v239 = vpack.c.b16 %v203, %v199
  %v240 = vpack.c.b16 %v204, %v200
  %v241 = vpack.c.b16 %v209, %v205
  %v242 = vpack.c.b16 %v210, %v206
  %v243 = vpack.c.b16 %v211, %v207
  %v244 = vpack.c.b16 %v212, %v208
  %v332 = vunpack.c.l.b16 %v47
  %v333 = vunpack.c.l.b16 %v48
  %v334 = vunpack.c.l.b16 %v49
  %v335 = vunpack.c.l.b16 %v50
  %v336 = vunpack.c.l.b16 %v51
  %v337 = vunpack.c.l.b16 %v52
  %v338 = vunpack.c.l.b16 %v53
  %v339 = vunpack.c.l.b16 %v54
  %v340 = vunpack.c.l.b16 %v55
  %v341 = vunpack.c.l.b16 %v56
  %v342 = vunpack.c.l.b16 %v57
  %v343 = vunpack.c.l.b16 %v58
  %v344 = vunpack.c.l.b16 %v59
  %v345 = vunpack.c.l.b16 %v60
  %v346 = vunpack.c.l.b16 %v61
  %v347 = vunpack.c.l.b16 %v62
  %v348 = vunpack.c.l.b16 %v63
  %v349 = vunpack.c.l.b16 %v64
  %v350 = vunpack.c.l.b16 %v65
  %v351 = vunpack.c.l.b16 %v66
  %v352 = vunpack.c.l.b16 %v67
  %v353 = vunpack.c.l.b16 %v68
  %v354 = vunpack.c.l.b16 %v69
  %v355 = vunpack.c.l.b16 %v70
  %v356 = vunpack.c.l.b16 %v71
  %v357 = vunpack.c.l.b16 %v72
  %v358 = vunpack.c.l.b16 %v73
  %v359 = vunpack.c.l.b16 %v74
  %v360 = vunpack.c.l.b16 %v75
  %v361 = vunpack.c.l.b16 %v76
  %v362 = vunpack.c.l.b16 %v77
  %v363 = vunpack.c.l.b16 %v78
  %v364 = vunpack.c.l.b16 %v79
  %v365 = vunpack.c.l.b16 %v80
  %v366 = vunpack.c.l.b16 %v81
  %v367 = vunpack.c.l.b16 %v82
  %v368 = vunpack.c.l.b16 %v83
  %v369 = vunpack.c.l.b16 %v84
  %v370 = vunpack.c.l.b16 %v85
  %v371 = vunpack.c.l.b16 %v86
  %v372 = vunpack.c.l.b16 %v87
  %v373 = vunpack.c.l.b16 %v88
  %v374 = vunpack.c.l.b16 %v89
  %v375 = vunpack.c.l.b16 %v90
  %v376 = vunpack.c.l.b16 %v91
  %v377 = vunpack.c.l.b16 %v92
  %v378 = vunpack.c.l.b16 %v93
  %v379 = vunpack.c.l.b16 %v94
  %v380 = vunpack.c.l.b16 %v95
  %v381 = vunpack.c.l.b16 %v96
  %v382 = vunpack.c.l.b16 %v97
  %v383 = vunpack.c.l.b16 %v98
  %v384 = vunpack.c.l.b16 %v99
  %v385 = vunpack.c.l.b16 %v100
  %v386 = vunpack.c.l.b16 %v101
  %v387 = vunpack.c.l.b16 %v102
  %v388 = vunpack.c.l.b16 %v103
  %v389 = vunpack.c.l.b16 %v104
  %v390 = vunpack.c.l.b16 %v105
  %v391 = vunpack.c.l.b16 %v106
  %v392 = vunpack.c.l.b16 %v107
  %v393 = vunpack.c.l.b16 %v108
  %v394 = vunpack.c.l.b16 %v109
  %v395 = vpack.c.b16 %v333, %v332
  %v396 = vpack.c.b16 %v335, %v334
  %v397 = vpack.c.b16 %v337, %v336
  %v398 = vpack.c.b16 %v339, %v338
  %v399 = vpack.c.b16 %v341, %v340
  %v400 = vpack.c.b16 %v343, %v342
  %v401 = vpack.c.b16 %v345, %v344
  %v402 = vpack.c.b16 %v347, %v346
  %v403 = vpack.c.b16 %v349, %v348
  %v404 = vpack.c.b16 %v351, %v350
  %v405 = vpack.c.b16 %v353, %v352
  %v406 = vpack.c.b16 %v355, %v354
  %v407 = vpack.c.b16 %v357, %v356
  %v408 = vpack.c.b16 %v359, %v358
  %v409 = vpack.c.b16 %v361, %v360
  %v410 = vpack.c.b16 %v363, %v362
  %v411 = vpack.c.b16 %v365, %v364
  %v412 = vpack.c.b16 %v367, %v366
  %v413 = vpack.c.b16 %v369, %v368
  %v414 = vpack.c.b16 %v371, %v370
  %v415 = vpack.c.b16 %v373, %v372
  %v416 = vpack.c.b16 %v375, %v374
  %v417 = vpack.c.b16 %v377, %v376
  %v418 = vpack.c.b16 %v379, %v378
  %v419 = vpack.c.b16 %v381, %v380
  %v420 = vpack.c.b16 %v383, %v382
  %v421 = vpack.c.b16 %v385, %v384
  %v422 = vpack.c.b16 %v387, %v386
  %v423 = vpack.c.b16 %v389, %v388
  %v424 = vpack.c.b16 %v391, %v390
  %v425 = vpack.c.b16 %v393, %v392
  %v426 = vpack.c.b16 %v394, %v394
  %vm458 = vcmask 949248
  %v460 = vsel %vm458, %v216, 0
  %v463 = vsel %vm458, %v220, 0
  %v466 = vsel %vm458, %v224, 0
  %v469 = vsel %vm458, %v228, 0
  %v472 = vsel %vm458, %v232, 0
  %v475 = vsel %vm458, %v236, 0
  %v478 = vsel %vm458, %v240, 0
  %v481 = vsel %vm458, %v244, 0
  %vm483 = vcmask 1041408
  %v485 = vsel %vm483, %v426, 0
  %487 = vmatprep.subr.bf16.mxu0 0
  %488 = vmatpush1.bf16.msra.mxu0 %v395
  %489 = vmatprep.subr.bf16.mxu0 0
  %490 = vmatpush1.bf16.msra.mxu0 %v396
  %491 = vmatprep.subr.bf16.mxu0 0
  %492 = vmatpush1.bf16.msra.mxu0 %v397
  %493 = vmatprep.subr.bf16.mxu0 0
  %494 = vmatpush1.bf16.msra.mxu0 %v398
  %495 = vmatprep.subr.bf16.mxu0 0
  %496 = vmatpush1.bf16.msra.mxu0 %v399
  %497 = vmatprep.subr.bf16.mxu0 0
  %498 = vmatpush1.bf16.msra.mxu0 %v400
  %499 = vmatprep.subr.bf16.mxu0 0
  %500 = vmatpush1.bf16.msra.mxu0 %v401
  %501 = vmatprep.subr.bf16.mxu0 0
  %502 = vmatpush1.bf16.msra.mxu0 %v402
  %503 = vmatprep.subr.bf16.mxu0 0
  %504 = vmatpush1.bf16.msra.mxu0 %v403
  %505 = vmatprep.subr.bf16.mxu0 0
  %506 = vmatpush1.bf16.msra.mxu0 %v404
  %507 = vmatprep.subr.bf16.mxu0 0
  %508 = vmatpush1.bf16.msra.mxu0 %v405
  %509 = vmatprep.subr.bf16.mxu0 0
  %510 = vmatpush1.bf16.msra.mxu0 %v406
  %511 = vmatprep.subr.bf16.mxu0 0
  %512 = vmatpush1.bf16.msra.mxu0 %v407
  %513 = vmatprep.subr.bf16.mxu0 0
  %514 = vmatpush1.bf16.msra.mxu0 %v408
  %515 = vmatprep.subr.bf16.mxu0 0
  %516 = vmatpush1.bf16.msra.mxu0 %v409
  %517 = vmatprep.subr.bf16.mxu0 0
  %518 = vmatpush1.bf16.msra.mxu0 %v410
  %519 = vmatprep.mubr.bf16.mxu0 %v214
  %520 = vmatmul.mubr.bf16.gmra.mrb[0].mxu0 %v213
  %v521 = vpop.f32.mrb[0].mxu0
  %v522 = vadd.f32 %v115, %v521
  %v523 = vpop.f32.mrb[0].mxu0
  %v524 = vpop.f32.mrb[0].mxu0
  %v525 = vadd.f32 %v115, %v524
  %v526 = vpop.f32.mrb[0].mxu0
  %527 = vmatprep.mubr.bf16.mxu0 %v218
  %528 = vmatmul.mubr.bf16.gmra.mrb[0].mxu0 %v217
  %v529 = vpop.f32.mrb[0].mxu0
  %v530 = vadd.f32 %v115, %v529
  %v531 = vpop.f32.mrb[0].mxu0
  %v532 = vpop.f32.mrb[0].mxu0
  %v533 = vadd.f32 %v115, %v532
  %v534 = vpop.f32.mrb[0].mxu0
  %535 = vmatprep.mubr.bf16.mxu0 %v222
  %536 = vmatmul.mubr.bf16.gmra.mrb[0].mxu0 %v221
  %v537 = vpop.f32.mrb[0].mxu0
  %v538 = vadd.f32 %v115, %v537
  %v539 = vpop.f32.mrb[0].mxu0
  %v540 = vpop.f32.mrb[0].mxu0
  %v541 = vadd.f32 %v115, %v540
  %v542 = vpop.f32.mrb[0].mxu0
  %543 = vmatprep.mubr.bf16.mxu0 %v226
  %544 = vmatmul.mubr.bf16.gmra.mrb[0].mxu0 %v225
  %v545 = vpop.f32.mrb[0].mxu0
  %v546 = vadd.f32 %v115, %v545
  %v547 = vpop.f32.mrb[0].mxu0
  %v548 = vpop.f32.mrb[0].mxu0
  %v549 = vadd.f32 %v115, %v548
  %v550 = vpop.f32.mrb[0].mxu0
  %551 = vmatprep.mubr.bf16.mxu0 %v230
  %552 = vmatmul.mubr.bf16.gmra.mrb[0].mxu0 %v229
  %v553 = vpop.f32.mrb[0].mxu0
  %v554 = vadd.f32 %v115, %v553
  %v555 = vpop.f32.mrb[0].mxu0
  %v556 = vpop.f32.mrb[0].mxu0
  %v557 = vadd.f32 %v115, %v556
  %v558 = vpop.f32.mrb[0].mxu0
  %559 = vmatprep.mubr.bf16.mxu0 %v234
  %560 = vmatmul.mubr.bf16.gmra.mrb[0].mxu0 %v233
  %v561 = vpop.f32.mrb[0].mxu0
  %v562 = vadd.f32 %v115, %v561
  %v563 = vpop.f32.mrb[0].mxu0
  %v564 = vpop.f32.mrb[0].mxu0
  %v565 = vadd.f32 %v115, %v564
  %v566 = vpop.f32.mrb[0].mxu0
  %567 = vmatprep.mubr.bf16.mxu0 %v238
  %568 = vmatmul.mubr.bf16.gmra.mrb[0].mxu0 %v237
  %v569 = vpop.f32.mrb[0].mxu0
  %v570 = vadd.f32 %v115, %v569
  %v571 = vpop.f32.mrb[0].mxu0
  %v572 = vpop.f32.mrb[0].mxu0
  %v573 = vadd.f32 %v115, %v572
  %v574 = vpop.f32.mrb[0].mxu0
  %575 = vmatprep.mubr.bf16.mxu0 %v242
  %576 = vmatmul.mubr.bf16.gmra.mrb[0].mxu0 %v241
  %v577 = vpop.f32.mrb[0].mxu0
  %v578 = vadd.f32 %v115, %v577
  %v579 = vpop.f32.mrb[0].mxu0
  %v580 = vpop.f32.mrb[0].mxu0
  %v581 = vadd.f32 %v115, %v580
  %v582 = vpop.f32.mrb[0].mxu0
  %583 = vdwg.mxu0
  %584 = vmatprep.subr.bf16.mxu0 0
  %585 = vmatpush1.bf16.msra.mxu0 %v411
  %586 = vmatprep.subr.bf16.mxu0 0
  %587 = vmatpush1.bf16.msra.mxu0 %v412
  %588 = vmatprep.subr.bf16.mxu0 0
  %589 = vmatpush1.bf16.msra.mxu0 %v413
  %590 = vmatprep.subr.bf16.mxu0 0
  %591 = vmatpush1.bf16.msra.mxu0 %v414
  %592 = vmatprep.subr.bf16.mxu0 0
  %593 = vmatpush1.bf16.msra.mxu0 %v415
  %594 = vmatprep.subr.bf16.mxu0 0
  %595 = vmatpush1.bf16.msra.mxu0 %v416
  %596 = vmatprep.subr.bf16.mxu0 0
  %597 = vmatpush1.bf16.msra.mxu0 %v417
  %598 = vmatprep.subr.bf16.mxu0 0
  %599 = vmatpush1.bf16.msra.mxu0 %v418
  %600 = vmatprep.subr.bf16.mxu0 0
  %601 = vmatpush1.bf16.msra.mxu0 %v419
  %602 = vmatprep.subr.bf16.mxu0 0
  %603 = vmatpush1.bf16.msra.mxu0 %v420
  %604 = vmatprep.subr.bf16.mxu0 0
  %605 = vmatpush1.bf16.msra.mxu0 %v421
  %606 = vmatprep.subr.bf16.mxu0 0
  %607 = vmatpush1.bf16.msra.mxu0 %v422
  %608 = vmatprep.subr.bf16.mxu0 0
  %609 = vmatpush1.bf16.msra.mxu0 %v423
  %610 = vmatprep.subr.bf16.mxu0 0
  %611 = vmatpush1.bf16.msra.mxu0 %v424
  %612 = vmatprep.subr.bf16.mxu0 0
  %613 = vmatpush1.bf16.msra.mxu0 %v425
  %614 = vmatprep.subr.bf16.mxu0 0
  %615 = vmatpush1.bf16.msra.mxu0 %v485
  %616 = vmatprep.mubr.bf16.mxu0 %v460
  %617 = vmatmul.mubr.bf16.gmra.mrb[0].mxu0 %v215
  %v618 = vpop.f32.mrb[0].mxu0
  %v619 = vadd.f32 %v522, %v618
  %v620 = vpop.f32.mrb[0].mxu0
  %v621 = vpop.f32.mrb[0].mxu0
  %v622 = vadd.f32 %v525, %v621
  %v623 = vpop.f32.mrb[0].mxu0
  %624 = vmatprep.mubr.bf16.mxu0 %v463
  %625 = vmatmul.mubr.bf16.gmra.mrb[0].mxu0 %v219
  %v626 = vpop.f32.mrb[0].mxu0
  %v627 = vadd.f32 %v530, %v626
  %v628 = vpop.f32.mrb[0].mxu0
  %v629 = vpop.f32.mrb[0].mxu0
  %v630 = vadd.f32 %v533, %v629
  %v631 = vpop.f32.mrb[0].mxu0
  %632 = vmatprep.mubr.bf16.mxu0 %v466
  %633 = vmatmul.mubr.bf16.gmra.mrb[0].mxu0 %v223
  %v634 = vpop.f32.mrb[0].mxu0
  %v635 = vadd.f32 %v538, %v634
  %v636 = vpop.f32.mrb[0].mxu0
  %v637 = vpop.f32.mrb[0].mxu0
  %v638 = vadd.f32 %v541, %v637
  %v639 = vpop.f32.mrb[0].mxu0
  %640 = vmatprep.mubr.bf16.mxu0 %v469
  %641 = vmatmul.mubr.bf16.gmra.mrb[0].mxu0 %v227
  %v642 = vpop.f32.mrb[0].mxu0
  %v643 = vadd.f32 %v546, %v642
  %v644 = vpop.f32.mrb[0].mxu0
  %v645 = vpop.f32.mrb[0].mxu0
  %v646 = vadd.f32 %v549, %v645
  %v647 = vpop.f32.mrb[0].mxu0
  %648 = vmatprep.mubr.bf16.mxu0 %v472
  %649 = vmatmul.mubr.bf16.gmra.mrb[0].mxu0 %v231
  %v650 = vpop.f32.mrb[0].mxu0
  %v651 = vadd.f32 %v554, %v650
  %v652 = vpop.f32.mrb[0].mxu0
  %v653 = vpop.f32.mrb[0].mxu0
  %v654 = vadd.f32 %v557, %v653
  %v655 = vpop.f32.mrb[0].mxu0
  %656 = vmatprep.mubr.bf16.mxu0 %v475
  %657 = vmatmul.mubr.bf16.gmra.mrb[0].mxu0 %v235
  %v658 = vpop.f32.mrb[0].mxu0
  %v659 = vadd.f32 %v562, %v658
  %v660 = vpop.f32.mrb[0].mxu0
  %v661 = vpop.f32.mrb[0].mxu0
  %v662 = vadd.f32 %v565, %v661
  %v663 = vpop.f32.mrb[0].mxu0
  %664 = vmatprep.mubr.bf16.mxu0 %v478
  %665 = vmatmul.mubr.bf16.gmra.mrb[0].mxu0 %v239
  %v666 = vpop.f32.mrb[0].mxu0
  %v667 = vadd.f32 %v570, %v666
  %v668 = vpop.f32.mrb[0].mxu0
  %v669 = vpop.f32.mrb[0].mxu0
  %v670 = vadd.f32 %v573, %v669
  %v671 = vpop.f32.mrb[0].mxu0
  %672 = vmatprep.mubr.bf16.mxu0 %v481
  %673 = vmatmul.mubr.bf16.gmra.mrb[0].mxu0 %v243
  %v674 = vpop.f32.mrb[0].mxu0
  %v675 = vadd.f32 %v578, %v674
  %v676 = vpop.f32.mrb[0].mxu0
  %v677 = vpop.f32.mrb[0].mxu0
  %v678 = vadd.f32 %v581, %v677
  %v679 = vpop.f32.mrb[0].mxu0
  %680 = vdwg.mxu0
  %v681 = vpack.c.bf16 %v622, %v619
  %v682 = vpack.c.bf16 %v630, %v627
  %v683 = vpack.c.bf16 %v638, %v635
  %v684 = vpack.c.bf16 %v646, %v643
  %v685 = vpack.c.bf16 %v654, %v651
  %v686 = vpack.c.bf16 %v662, %v659
  %v687 = vpack.c.bf16 %v670, %v667
  %v688 = vpack.c.bf16 %v678, %v675
  %v697 = vunpack.c.l.b16 %v681
  %v698 = vunpack.c.h.b16 %v681
  %v699 = vunpack.c.l.b16 %v682
  %v700 = vunpack.c.h.b16 %v682
  %v701 = vunpack.c.l.b16 %v683
  %v702 = vunpack.c.h.b16 %v683
  %v703 = vunpack.c.l.b16 %v684
  %v704 = vunpack.c.h.b16 %v684
  %v705 = vunpack.c.l.b16 %v685
  %v706 = vunpack.c.h.b16 %v685
  %v707 = vunpack.c.l.b16 %v686
  %v708 = vunpack.c.h.b16 %v686
  %v709 = vunpack.c.l.b16 %v687
  %v710 = vunpack.c.h.b16 %v687
  %v711 = vunpack.c.l.b16 %v688
  %v712 = vunpack.c.h.b16 %v688
  %v713 = vpack.c.b16 %v697, %v697
  %v714 = vpack.c.b16 %v698, %v698
  %v715 = vpack.c.b16 %v699, %v699
  %v716 = vpack.c.b16 %v700, %v700
  %v717 = vpack.c.b16 %v701, %v701
  %v718 = vpack.c.b16 %v702, %v702
  %v719 = vpack.c.b16 %v703, %v703
  %v720 = vpack.c.b16 %v704, %v704
  %v721 = vpack.c.b16 %v705, %v705
  %v722 = vpack.c.b16 %v706, %v706
  %v723 = vpack.c.b16 %v707, %v707
  %v724 = vpack.c.b16 %v708, %v708
  %v725 = vpack.c.b16 %v709, %v709
  %v726 = vpack.c.b16 %v710, %v710
  %v727 = vpack.c.b16 %v711, %v711
  %v728 = vpack.c.b16 %v712, %v712
  %745 = vst [vmem:[%s3] sm:$0xf] %v713
  %746 = vst [vmem:[%s3 + $0x4] sm:$0xf] %v714
  %747 = vst [vmem:[%s3 + $0x8] sm:$0xf] %v715
  %748 = vst [vmem:[%s3 + $0xc] sm:$0xf] %v716
  %749 = vst [vmem:[%s3 + $0x10] sm:$0xf] %v717
  %750 = vst [vmem:[%s3 + $0x14] sm:$0xf] %v718
  %751 = vst [vmem:[%s3 + $0x18] sm:$0xf] %v719
  %752 = vst [vmem:[%s3 + $0x1c] sm:$0xf] %v720
  %753 = vst [vmem:[%s3 + $0x20] sm:$0xf] %v721
  %754 = vst [vmem:[%s3 + $0x24] sm:$0xf] %v722
  %755 = vst [vmem:[%s3 + $0x28] sm:$0xf] %v723
  %756 = vst [vmem:[%s3 + $0x2c] sm:$0xf] %v724
  %757 = vst [vmem:[%s3 + $0x30] sm:$0xf] %v725
  %758 = vst [vmem:[%s3 + $0x34] sm:$0xf] %v726
  %759 = vst [vmem:[%s3 + $0x38] sm:$0xf] %v727
  %760 = vst [vmem:[%s3 + $0x3c] sm:$0xf] %v728
  // Predicated region
  $region14: #{rnncell_forward.20} parent=0 // pred_check
    _
  $region15: #{rnncell_forward.20} parent=0 // pred_check_branch
    %762 = sbr.rel (0) target = $region17
  $region16: #{rnncell_forward.20} parent=0 // pred_region
    _
  $region17: #{rnncell_forward.20} parent=0 // pred_fallthru
    _
  // Predicated region
  $region18: #{rnncell_forward.20} parent=0 // pred_check
    _
  $region19: #{rnncell_forward.20} parent=0 // pred_check_branch
    %764 = sbr.rel (0) target = $region21
  $region20: #{rnncell_forward.20} parent=0 // pred_region
    _
  $region21: #{rnncell_forward.20} parent=0 // pred_fallthru
    _

// kernel: rnncell_forward.21
$region0: #{rnncell_forward.21}
  #allocation0 [shape = 'u32[]', space=smem, size = 0x4, offset = 0x4, fixed_abs, tag = 'smem constant byte address 0x4 - core index']
  #allocation1 [shape = 'u32[144,128]{1,0:T(1,128)}', space=vmem, size = 0x12000, scoped, tag = 'internal scratch']
  %s0 = inlined_call_operand.vmem [shape: bf16[32,1000], index: 0, kind: input, shape index: {}]
  %s1 = inlined_call_operand.vmem [shape: bf16[1000,128], index: 1, kind: input, shape index: {}]
  %s2 = inlined_call_operand.vmem [shape: f32[1,128], index: 2, kind: input, shape index: {}]
  %s3 = inlined_call_operand.vmem [shape: bf16[32,128], index: 3, kind: output, shape index: {}]
  %s4 = sld [smem:[#allocation0]]
  $region22: #{rnncell_forward.21} parent=0
    _
  %s6 = ssub.s32 1, %s4
  %s7 = scalar_select 0, %s6, %s4
  // Predicated region
  $region2: #{rnncell_forward.21} parent=0 // pred_check
    _
  $region3: #{rnncell_forward.21} parent=0 // pred_check_branch
    %9 = sbr.rel (0) target = $region5
  $region4: #{rnncell_forward.21} parent=0 // pred_region
    _
  $region5: #{rnncell_forward.21} parent=0 // pred_fallthru
    _
  // Predicated region
  $region6: #{rnncell_forward.21} parent=0 // pred_check
    _
  $region7: #{rnncell_forward.21} parent=0 // pred_check_branch
    %11 = sbr.rel (0) target = $region9
  $region8: #{rnncell_forward.21} parent=0 // pred_region
    _
  $region9: #{rnncell_forward.21} parent=0 // pred_fallthru
    _
  // Predicated region
  $region10: #{rnncell_forward.21} parent=0 // pred_check
    _
  $region11: #{rnncell_forward.21} parent=0 // pred_check_branch
    %13 = sbr.rel (0) target = $region13
  $region12: #{rnncell_forward.21} parent=0 // pred_region
    _
  $region13: #{rnncell_forward.21} parent=0 // pred_fallthru
    _
  %v15 = vld [vmem:[%s0] sm:$0xff]
  %v16 = vld [vmem:[%s0 + $0x8] sm:$0xff]
  %v17 = vld [vmem:[%s0 + $0x10] sm:$0xff]
  %v18 = vld [vmem:[%s0 + $0x18] sm:$0xff]
  %v19 = vld [vmem:[%s0 + $0x20] sm:$0xff]
  %v20 = vld [vmem:[%s0 + $0x28] sm:$0xff]
  %v21 = vld [vmem:[%s0 + $0x30] sm:$0xff]
  %v22 = vld [vmem:[%s0 + $0x38] sm:$0xff]
  %v23 = vld [vmem:[%s0 + $0x40] sm:$0xff]
  %v24 = vld [vmem:[%s0 + $0x48] sm:$0xff]
  %v25 = vld [vmem:[%s0 + $0x50] sm:$0xff]
  %v26 = vld [vmem:[%s0 + $0x58] sm:$0xff]
  %v27 = vld [vmem:[%s0 + $0x60] sm:$0xff]
  %v28 = vld [vmem:[%s0 + $0x68] sm:$0xff]
  %v29 = vld [vmem:[%s0 + $0x70] sm:$0xff]
  %v30 = vld [vmem:[%s0 + $0x78] sm:$0xff]
  %v31 = vld [vmem:[%s1] sm:$0xf]
  %v32 = vld [vmem:[%s1 + $0x4] sm:$0xf]
  %v33 = vld [vmem:[%s1 + $0x8] sm:$0xf]
  %v34 = vld [vmem:[%s1 + $0xc] sm:$0xf]
  %v35 = vld [vmem:[%s1 + $0x10] sm:$0xf]
  %v36 = vld [vmem:[%s1 + $0x14] sm:$0xf]
  %v37 = vld [vmem:[%s1 + $0x18] sm:$0xf]
  %v38 = vld [vmem:[%s1 + $0x1c] sm:$0xf]
  %v39 = vld [vmem:[%s1 + $0x20] sm:$0xf]
  %v40 = vld [vmem:[%s1 + $0x24] sm:$0xf]
  %v41 = vld [vmem:[%s1 + $0x28] sm:$0xf]
  %v42 = vld [vmem:[%s1 + $0x2c] sm:$0xf]
  %v43 = vld [vmem:[%s1 + $0x30] sm:$0xf]
  %v44 = vld [vmem:[%s1 + $0x34] sm:$0xf]
  %v45 = vld [vmem:[%s1 + $0x38] sm:$0xf]
  %v46 = vld [vmem:[%s1 + $0x3c] sm:$0xf]
  %v47 = vld [vmem:[%s1 + $0x40] sm:$0xf]
  %v48 = vld [vmem:[%s1 + $0x44] sm:$0xf]
  %v49 = vld [vmem:[%s1 + $0x48] sm:$0xf]
  %v50 = vld [vmem:[%s1 + $0x4c] sm:$0xf]
  %v51 = vld [vmem:[%s1 + $0x50] sm:$0xf]
  %v52 = vld [vmem:[%s1 + $0x54] sm:$0xf]
  %v53 = vld [vmem:[%s1 + $0x58] sm:$0xf]
  %v54 = vld [vmem:[%s1 + $0x5c] sm:$0xf]
  %v55 = vld [vmem:[%s1 + $0x60] sm:$0xf]
  %v56 = vld [vmem:[%s1 + $0x64] sm:$0xf]
  %v57 = vld [vmem:[%s1 + $0x68] sm:$0xf]
  %v58 = vld [vmem:[%s1 + $0x6c] sm:$0xf]
  %v59 = vld [vmem:[%s1 + $0x70] sm:$0xf]
  %v60 = vld [vmem:[%s1 + $0x74] sm:$0xf]
  %v61 = vld [vmem:[%s1 + $0x78] sm:$0xf]
  %v62 = vld [vmem:[%s1 + $0x7c] sm:$0xf]
  %v63 = vld [vmem:[%s1 + $0x80] sm:$0xf]
  %v64 = vld [vmem:[%s1 + $0x84] sm:$0xf]
  %v65 = vld [vmem:[%s1 + $0x88] sm:$0xf]
  %v66 = vld [vmem:[%s1 + $0x8c] sm:$0xf]
  %v67 = vld [vmem:[%s1 + $0x90] sm:$0xf]
  %v68 = vld [vmem:[%s1 + $0x94] sm:$0xf]
  %v69 = vld [vmem:[%s1 + $0x98] sm:$0xf]
  %v70 = vld [vmem:[%s1 + $0x9c] sm:$0xf]
  %v71 = vld [vmem:[%s1 + $0xa0] sm:$0xf]
  %v72 = vld [vmem:[%s1 + $0xa4] sm:$0xf]
  %v73 = vld [vmem:[%s1 + $0xa8] sm:$0xf]
  %v74 = vld [vmem:[%s1 + $0xac] sm:$0xf]
  %v75 = vld [vmem:[%s1 + $0xb0] sm:$0xf]
  %v76 = vld [vmem:[%s1 + $0xb4] sm:$0xf]
  %v77 = vld [vmem:[%s1 + $0xb8] sm:$0xf]
  %v78 = vld [vmem:[%s1 + $0xbc] sm:$0xf]
  %v79 = vld [vmem:[%s1 + $0xc0] sm:$0xf]
  %v80 = vld [vmem:[%s1 + $0xc4] sm:$0xf]
  %v81 = vld [vmem:[%s1 + $0xc8] sm:$0xf]
  %v82 = vld [vmem:[%s1 + $0xcc] sm:$0xf]
  %v83 = vld [vmem:[%s1 + $0xd0] sm:$0xf]
  %v84 = vld [vmem:[%s1 + $0xd4] sm:$0xf]
  %v85 = vld [vmem:[%s1 + $0xd8] sm:$0xf]
  %v86 = vld [vmem:[%s1 + $0xdc] sm:$0xf]
  %v87 = vld [vmem:[%s1 + $0xe0] sm:$0xf]
  %v88 = vld [vmem:[%s1 + $0xe4] sm:$0xf]
  %v89 = vld [vmem:[%s1 + $0xe8] sm:$0xf]
  %v90 = vld [vmem:[%s1 + $0xec] sm:$0xf]
  %v91 = vld [vmem:[%s1 + $0xf0] sm:$0xf]
  %v92 = vld [vmem:[%s1 + $0xf4] sm:$0xf]
  %v93 = vld [vmem:[%s1 + $0xf8] sm:$0xf]
  %v94 = vld [vmem:[%s1 + $0xfc] sm:$0xf]
  %v95 = vld [vmem:[%s1 + $0x100] sm:$0xf]
  %v96 = vld [vmem:[%s1 + $0x104] sm:$0xf]
  %v97 = vld [vmem:[%s1 + $0x108] sm:$0xf]
  %v98 = vld [vmem:[%s1 + $0x10c] sm:$0xf]
  %v99 = vld [vmem:[%s1 + $0x110] sm:$0xf]
  %v100 = vld [vmem:[%s1 + $0x114] sm:$0xf]
  %v101 = vld [vmem:[%s1 + $0x118] sm:$0xf]
  %v102 = vld [vmem:[%s1 + $0x11c] sm:$0xf]
  %v103 = vld [vmem:[%s1 + $0x120] sm:$0xf]
  %v104 = vld [vmem:[%s1 + $0x124] sm:$0xf]
  %v105 = vld [vmem:[%s1 + $0x128] sm:$0xf]
  %v106 = vld [vmem:[%s1 + $0x12c] sm:$0xf]
  %v107 = vld [vmem:[%s1 + $0x130] sm:$0xf]
  %v108 = vld [vmem:[%s1 + $0x134] sm:$0xf]
  %v109 = vld [vmem:[%s1 + $0x138] sm:$0xf]
  %v110 = vld [vmem:[%s1 + $0x13c] sm:$0xf]
  %v111 = vld [vmem:[%s1 + $0x140] sm:$0xf]
  %v112 = vld [vmem:[%s1 + $0x144] sm:$0xf]
  %v113 = vld [vmem:[%s1 + $0x148] sm:$0xf]
  %v114 = vld [vmem:[%s1 + $0x14c] sm:$0xf]
  %v115 = vld [vmem:[%s1 + $0x150] sm:$0xf]
  %v116 = vld [vmem:[%s1 + $0x154] sm:$0xf]
  %v117 = vld [vmem:[%s1 + $0x158] sm:$0xf]
  %v118 = vld [vmem:[%s1 + $0x15c] sm:$0xf]
  %v119 = vld [vmem:[%s1 + $0x160] sm:$0xf]
  %v120 = vld [vmem:[%s1 + $0x164] sm:$0xf]
  %v121 = vld [vmem:[%s1 + $0x168] sm:$0xf]
  %v122 = vld [vmem:[%s1 + $0x16c] sm:$0xf]
  %v123 = vld [vmem:[%s1 + $0x170] sm:$0xf]
  %v124 = vld [vmem:[%s1 + $0x174] sm:$0xf]
  %v125 = vld [vmem:[%s1 + $0x178] sm:$0xf]
  %v126 = vld [vmem:[%s1 + $0x17c] sm:$0xf]
  %v127 = vld [vmem:[%s1 + $0x180] sm:$0xf]
  %v128 = vld [vmem:[%s1 + $0x184] sm:$0xf]
  %v129 = vld [vmem:[%s1 + $0x188] sm:$0xf]
  %v130 = vld [vmem:[%s1 + $0x18c] sm:$0xf]
  %v131 = vld [vmem:[%s1 + $0x190] sm:$0xf]
  %v132 = vld [vmem:[%s1 + $0x194] sm:$0xf]
  %v133 = vld [vmem:[%s1 + $0x198] sm:$0xf]
  %v134 = vld [vmem:[%s1 + $0x19c] sm:$0xf]
  %v135 = vld [vmem:[%s1 + $0x1a0] sm:$0xf]
  %v136 = vld [vmem:[%s1 + $0x1a4] sm:$0xf]
  %v137 = vld [vmem:[%s1 + $0x1a8] sm:$0xf]
  %v138 = vld [vmem:[%s1 + $0x1ac] sm:$0xf]
  %v139 = vld [vmem:[%s1 + $0x1b0] sm:$0xf]
  %v140 = vld [vmem:[%s1 + $0x1b4] sm:$0xf]
  %v141 = vld [vmem:[%s1 + $0x1b8] sm:$0xf]
  %v142 = vld [vmem:[%s1 + $0x1bc] sm:$0xf]
  %v143 = vld [vmem:[%s1 + $0x1c0] sm:$0xf]
  %v144 = vld [vmem:[%s1 + $0x1c4] sm:$0xf]
  %v145 = vld [vmem:[%s1 + $0x1c8] sm:$0xf]
  %v146 = vld [vmem:[%s1 + $0x1cc] sm:$0xf]
  %v147 = vld [vmem:[%s1 + $0x1d0] sm:$0xf]
  %v148 = vld [vmem:[%s1 + $0x1d4] sm:$0xf]
  %v149 = vld [vmem:[%s1 + $0x1d8] sm:$0xf]
  %v150 = vld [vmem:[%s1 + $0x1dc] sm:$0xf]
  %v151 = vld [vmem:[%s1 + $0x1e0] sm:$0xf]
  %v152 = vld [vmem:[%s1 + $0x1e4] sm:$0xf]
  %v153 = vld [vmem:[%s1 + $0x1e8] sm:$0xf]
  %v154 = vld [vmem:[%s1 + $0x1ec] sm:$0xf]
  %v155 = vld [vmem:[%s1 + $0x1f0] sm:$0xf]
  %v156 = vld [vmem:[%s2] sm:$0x1]
  %v158 = vlaneseq
  %v159 = vshrl.u32 %v158, 7
  %v160 = vsub.s32 0, %v159
  %v161 = vrot.slane %v156, %v160
  %v179 = vunpack.c.l.b16 %v15
  %v180 = vunpack.c.h.b16 %v15
  %v181 = vunpack.c.l.b16 %v16
  %v182 = vunpack.c.h.b16 %v16
  %v183 = vunpack.c.l.b16 %v17
  %v184 = vunpack.c.h.b16 %v17
  %v185 = vunpack.c.l.b16 %v18
  %v186 = vunpack.c.h.b16 %v18
  %v187 = vunpack.c.l.b16 %v19
  %v188 = vunpack.c.h.b16 %v19
  %v189 = vunpack.c.l.b16 %v20
  %v190 = vunpack.c.h.b16 %v20
  %v191 = vunpack.c.l.b16 %v21
  %v192 = vunpack.c.h.b16 %v21
  %v193 = vunpack.c.l.b16 %v22
  %v194 = vunpack.c.h.b16 %v22
  %v195 = vunpack.c.l.b16 %v23
  %v196 = vunpack.c.h.b16 %v23
  %v197 = vunpack.c.l.b16 %v24
  %v198 = vunpack.c.h.b16 %v24
  %v199 = vunpack.c.l.b16 %v25
  %v200 = vunpack.c.h.b16 %v25
  %v201 = vunpack.c.l.b16 %v26
  %v202 = vunpack.c.h.b16 %v26
  %v203 = vunpack.c.l.b16 %v27
  %v204 = vunpack.c.h.b16 %v27
  %v205 = vunpack.c.l.b16 %v28
  %v206 = vunpack.c.h.b16 %v28
  %v207 = vunpack.c.l.b16 %v29
  %v208 = vunpack.c.h.b16 %v29
  %v209 = vunpack.c.l.b16 %v30
  %v210 = vunpack.c.h.b16 %v30
  %v211 = vpack.c.b16 %v187, %v179
  %v212 = vpack.c.b16 %v188, %v180
  %v213 = vpack.c.b16 %v189, %v181
  %v214 = vpack.c.b16 %v190, %v182
  %v215 = vpack.c.b16 %v191, %v183
  %v216 = vpack.c.b16 %v192, %v184
  %v217 = vpack.c.b16 %v193, %v185
  %v218 = vpack.c.b16 %v194, %v186
  %v219 = vpack.c.b16 %v203, %v195
  %v220 = vpack.c.b16 %v204, %v196
  %v221 = vpack.c.b16 %v205, %v197
  %v222 = vpack.c.b16 %v206, %v198
  %v223 = vpack.c.b16 %v207, %v199
  %v224 = vpack.c.b16 %v208, %v200
  %v225 = vpack.c.b16 %v209, %v201
  %v226 = vpack.c.b16 %v210, %v202
  %v366 = vunpack.c.l.b16 %v31
  %v367 = vunpack.c.l.b16 %v32
  %v368 = vunpack.c.l.b16 %v33
  %v369 = vunpack.c.l.b16 %v34
  %v370 = vunpack.c.l.b16 %v35
  %v371 = vunpack.c.l.b16 %v36
  %v372 = vunpack.c.l.b16 %v37
  %v373 = vunpack.c.l.b16 %v38
  %v374 = vunpack.c.l.b16 %v39
  %v375 = vunpack.c.l.b16 %v40
  %v376 = vunpack.c.l.b16 %v41
  %v377 = vunpack.c.l.b16 %v42
  %v378 = vunpack.c.l.b16 %v43
  %v379 = vunpack.c.l.b16 %v44
  %v380 = vunpack.c.l.b16 %v45
  %v381 = vunpack.c.l.b16 %v46
  %v382 = vunpack.c.l.b16 %v47
  %v383 = vunpack.c.l.b16 %v48
  %v384 = vunpack.c.l.b16 %v49
  %v385 = vunpack.c.l.b16 %v50
  %v386 = vunpack.c.l.b16 %v51
  %v387 = vunpack.c.l.b16 %v52
  %v388 = vunpack.c.l.b16 %v53
  %v389 = vunpack.c.l.b16 %v54
  %v390 = vunpack.c.l.b16 %v55
  %v391 = vunpack.c.l.b16 %v56
  %v392 = vunpack.c.l.b16 %v57
  %v393 = vunpack.c.l.b16 %v58
  %v394 = vunpack.c.l.b16 %v59
  %v395 = vunpack.c.l.b16 %v60
  %v396 = vunpack.c.l.b16 %v61
  %v397 = vunpack.c.l.b16 %v62
  %v398 = vunpack.c.l.b16 %v63
  %v399 = vunpack.c.l.b16 %v64
  %v400 = vunpack.c.l.b16 %v65
  %v401 = vunpack.c.l.b16 %v66
  %v402 = vunpack.c.l.b16 %v67
  %v403 = vunpack.c.l.b16 %v68
  %v404 = vunpack.c.l.b16 %v69
  %v405 = vunpack.c.l.b16 %v70
  %v406 = vunpack.c.l.b16 %v71
  %v407 = vunpack.c.l.b16 %v72
  %v408 = vunpack.c.l.b16 %v73
  %v409 = vunpack.c.l.b16 %v74
  %v410 = vunpack.c.l.b16 %v75
  %v411 = vunpack.c.l.b16 %v76
  %v412 = vunpack.c.l.b16 %v77
  %v413 = vunpack.c.l.b16 %v78
  %v414 = vunpack.c.l.b16 %v79
  %v415 = vunpack.c.l.b16 %v80
  %v416 = vunpack.c.l.b16 %v81
  %v417 = vunpack.c.l.b16 %v82
  %v418 = vunpack.c.l.b16 %v83
  %v419 = vunpack.c.l.b16 %v84
  %v420 = vunpack.c.l.b16 %v85
  %v421 = vunpack.c.l.b16 %v86
  %v422 = vunpack.c.l.b16 %v87
  %v423 = vunpack.c.l.b16 %v88
  %v424 = vunpack.c.l.b16 %v89
  %v425 = vunpack.c.l.b16 %v90
  %v426 = vunpack.c.l.b16 %v91
  %v427 = vunpack.c.l.b16 %v92
  %v428 = vunpack.c.l.b16 %v93
  %v429 = vunpack.c.l.b16 %v94
  %v430 = vunpack.c.l.b16 %v95
  %v431 = vunpack.c.l.b16 %v96
  %v432 = vunpack.c.l.b16 %v97
  %v433 = vunpack.c.l.b16 %v98
  %v434 = vunpack.c.l.b16 %v99
  %v435 = vunpack.c.l.b16 %v100
  %v436 = vunpack.c.l.b16 %v101
  %v437 = vunpack.c.l.b16 %v102
  %v438 = vunpack.c.l.b16 %v103
  %v439 = vunpack.c.l.b16 %v104
  %v440 = vunpack.c.l.b16 %v105
  %v441 = vunpack.c.l.b16 %v106
  %v442 = vunpack.c.l.b16 %v107
  %v443 = vunpack.c.l.b16 %v108
  %v444 = vunpack.c.l.b16 %v109
  %v445 = vunpack.c.l.b16 %v110
  %v446 = vunpack.c.l.b16 %v111
  %v447 = vunpack.c.l.b16 %v112
  %v448 = vunpack.c.l.b16 %v113
  %v449 = vunpack.c.l.b16 %v114
  %v450 = vunpack.c.l.b16 %v115
  %v451 = vunpack.c.l.b16 %v116
  %v452 = vunpack.c.l.b16 %v117
  %v453 = vunpack.c.l.b16 %v118
  %v454 = vunpack.c.l.b16 %v119
  %v455 = vunpack.c.l.b16 %v120
  %v456 = vunpack.c.l.b16 %v121
  %v457 = vunpack.c.l.b16 %v122
  %v458 = vunpack.c.l.b16 %v123
  %v459 = vunpack.c.l.b16 %v124
  %v460 = vunpack.c.l.b16 %v125
  %v461 = vunpack.c.l.b16 %v126
  %v462 = vunpack.c.l.b16 %v127
  %v463 = vunpack.c.l.b16 %v128
  %v464 = vunpack.c.l.b16 %v129
  %v465 = vunpack.c.l.b16 %v130
  %v466 = vunpack.c.l.b16 %v131
  %v467 = vunpack.c.l.b16 %v132
  %v468 = vunpack.c.l.b16 %v133
  %v469 = vunpack.c.l.b16 %v134
  %v470 = vunpack.c.l.b16 %v135
  %v471 = vunpack.c.l.b16 %v136
  %v472 = vunpack.c.l.b16 %v137
  %v473 = vunpack.c.l.b16 %v138
  %v474 = vunpack.c.l.b16 %v139
  %v475 = vunpack.c.l.b16 %v140
  %v476 = vunpack.c.l.b16 %v141
  %v477 = vunpack.c.l.b16 %v142
  %v478 = vunpack.c.l.b16 %v143
  %v479 = vunpack.c.l.b16 %v144
  %v480 = vunpack.c.l.b16 %v145
  %v481 = vunpack.c.l.b16 %v146
  %v482 = vunpack.c.l.b16 %v147
  %v483 = vunpack.c.l.b16 %v148
  %v484 = vunpack.c.l.b16 %v149
  %v485 = vunpack.c.l.b16 %v150
  %v486 = vunpack.c.l.b16 %v151
  %v487 = vunpack.c.l.b16 %v152
  %v488 = vunpack.c.l.b16 %v153
  %v489 = vunpack.c.l.b16 %v154
  %v490 = vunpack.c.l.b16 %v155
  %v491 = vpack.c.b16 %v367, %v366
  %v492 = vpack.c.b16 %v369, %v368
  %v493 = vpack.c.b16 %v371, %v370
  %v494 = vpack.c.b16 %v373, %v372
  %v495 = vpack.c.b16 %v375, %v374
  %v496 = vpack.c.b16 %v377, %v376
  %v497 = vpack.c.b16 %v379, %v378
  %v498 = vpack.c.b16 %v381, %v380
  %v499 = vpack.c.b16 %v383, %v382
  %v500 = vpack.c.b16 %v385, %v384
  %v501 = vpack.c.b16 %v387, %v386
  %v502 = vpack.c.b16 %v389, %v388
  %v503 = vpack.c.b16 %v391, %v390
  %v504 = vpack.c.b16 %v393, %v392
  %v505 = vpack.c.b16 %v395, %v394
  %v506 = vpack.c.b16 %v397, %v396
  %v507 = vpack.c.b16 %v399, %v398
  %v508 = vpack.c.b16 %v401, %v400
  %v509 = vpack.c.b16 %v403, %v402
  %v510 = vpack.c.b16 %v405, %v404
  %v511 = vpack.c.b16 %v407, %v406
  %v512 = vpack.c.b16 %v409, %v408
  %v513 = vpack.c.b16 %v411, %v410
  %v514 = vpack.c.b16 %v413, %v412
  %v515 = vpack.c.b16 %v415, %v414
  %v516 = vpack.c.b16 %v417, %v416
  %v517 = vpack.c.b16 %v419, %v418
  %v518 = vpack.c.b16 %v421, %v420
  %v519 = vpack.c.b16 %v423, %v422
  %v520 = vpack.c.b16 %v425, %v424
  %v521 = vpack.c.b16 %v427, %v426
  %v522 = vpack.c.b16 %v429, %v428
  %v523 = vpack.c.b16 %v431, %v430
  %v524 = vpack.c.b16 %v433, %v432
  %v525 = vpack.c.b16 %v435, %v434
  %v526 = vpack.c.b16 %v437, %v436
  %v527 = vpack.c.b16 %v439, %v438
  %v528 = vpack.c.b16 %v441, %v440
  %v529 = vpack.c.b16 %v443, %v442
  %v530 = vpack.c.b16 %v445, %v444
  %v531 = vpack.c.b16 %v447, %v446
  %v532 = vpack.c.b16 %v449, %v448
  %v533 = vpack.c.b16 %v451, %v450
  %v534 = vpack.c.b16 %v453, %v452
  %v535 = vpack.c.b16 %v455, %v454
  %v536 = vpack.c.b16 %v457, %v456
  %v537 = vpack.c.b16 %v459, %v458
  %v538 = vpack.c.b16 %v461, %v460
  %v539 = vpack.c.b16 %v463, %v462
  %v540 = vpack.c.b16 %v465, %v464
  %v541 = vpack.c.b16 %v467, %v466
  %v542 = vpack.c.b16 %v469, %v468
  %v543 = vpack.c.b16 %v471, %v470
  %v544 = vpack.c.b16 %v473, %v472
  %v545 = vpack.c.b16 %v475, %v474
  %v546 = vpack.c.b16 %v477, %v476
  %v547 = vpack.c.b16 %v479, %v478
  %v548 = vpack.c.b16 %v481, %v480
  %v549 = vpack.c.b16 %v483, %v482
  %v550 = vpack.c.b16 %v485, %v484
  %v551 = vpack.c.b16 %v487, %v486
  %v552 = vpack.c.b16 %v489, %v488
  %v553 = vpack.c.b16 %v490, %v490
  %vm616 = vcmask 850944
  %v618 = vsel %vm616, %v218, 0
  %v621 = vsel %vm616, %v226, 0
  %vm623 = vcmask 1043456
  %v625 = vsel %vm623, %v553, 0
  %627 = vmatprep.subr.bf16.mxu0 0
  %628 = vmatpush1.bf16.msra.mxu0 %v491
  %629 = vmatprep.subr.bf16.mxu0 0
  %630 = vmatpush1.bf16.msra.mxu0 %v492
  %631 = vmatprep.subr.bf16.mxu0 0
  %632 = vmatpush1.bf16.msra.mxu0 %v493
  %633 = vmatprep.subr.bf16.mxu0 0
  %634 = vmatpush1.bf16.msra.mxu0 %v494
  %635 = vmatprep.subr.bf16.mxu0 0
  %636 = vmatpush1.bf16.msra.mxu0 %v495
  %637 = vmatprep.subr.bf16.mxu0 0
  %638 = vmatpush1.bf16.msra.mxu0 %v496
  %639 = vmatprep.subr.bf16.mxu0 0
  %640 = vmatpush1.bf16.msra.mxu0 %v497
  %641 = vmatprep.subr.bf16.mxu0 0
  %642 = vmatpush1.bf16.msra.mxu0 %v498
  %643 = vmatprep.subr.bf16.mxu0 0
  %644 = vmatpush1.bf16.msra.mxu0 %v499
  %645 = vmatprep.subr.bf16.mxu0 0
  %646 = vmatpush1.bf16.msra.mxu0 %v500
  %647 = vmatprep.subr.bf16.mxu0 0
  %648 = vmatpush1.bf16.msra.mxu0 %v501
  %649 = vmatprep.subr.bf16.mxu0 0
  %650 = vmatpush1.bf16.msra.mxu0 %v502
  %651 = vmatprep.subr.bf16.mxu0 0
  %652 = vmatpush1.bf16.msra.mxu0 %v503
  %653 = vmatprep.subr.bf16.mxu0 0
  %654 = vmatpush1.bf16.msra.mxu0 %v504
  %655 = vmatprep.subr.bf16.mxu0 0
  %656 = vmatpush1.bf16.msra.mxu0 %v505
  %657 = vmatprep.subr.bf16.mxu0 0
  %658 = vmatpush1.bf16.msra.mxu0 %v506
  %659 = vmatprep.mubr.bf16.mxu0 %v212
  %660 = vmatmul.mubr.bf16.gmra.mrb[0].mxu0 %v211
  %v661 = vpop.f32.mrb[0].mxu0
  %v662 = vadd.f32 %v161, %v661
  %v663 = vpop.f32.mrb[0].mxu0
  %v664 = vpop.f32.mrb[0].mxu0
  %v665 = vadd.f32 %v161, %v664
  %v666 = vpop.f32.mrb[0].mxu0
  %667 = vmatprep.mubr.bf16.mxu0 %v220
  %668 = vmatmul.mubr.bf16.gmra.mrb[0].mxu0 %v219
  %v669 = vpop.f32.mrb[0].mxu0
  %v670 = vadd.f32 %v161, %v669
  %v671 = vpop.f32.mrb[0].mxu0
  %v672 = vpop.f32.mrb[0].mxu0
  %v673 = vadd.f32 %v161, %v672
  %v674 = vpop.f32.mrb[0].mxu0
  %675 = vdwg.mxu0
  %676 = vmatprep.subr.bf16.mxu0 0
  %677 = vmatpush1.bf16.msra.mxu0 %v507
  %678 = vmatprep.subr.bf16.mxu0 0
  %679 = vmatpush1.bf16.msra.mxu0 %v508
  %680 = vmatprep.subr.bf16.mxu0 0
  %681 = vmatpush1.bf16.msra.mxu0 %v509
  %682 = vmatprep.subr.bf16.mxu0 0
  %683 = vmatpush1.bf16.msra.mxu0 %v510
  %684 = vmatprep.subr.bf16.mxu0 0
  %685 = vmatpush1.bf16.msra.mxu0 %v511
  %686 = vmatprep.subr.bf16.mxu0 0
  %687 = vmatpush1.bf16.msra.mxu0 %v512
  %688 = vmatprep.subr.bf16.mxu0 0
  %689 = vmatpush1.bf16.msra.mxu0 %v513
  %690 = vmatprep.subr.bf16.mxu0 0
  %691 = vmatpush1.bf16.msra.mxu0 %v514
  %692 = vmatprep.subr.bf16.mxu0 0
  %693 = vmatpush1.bf16.msra.mxu0 %v515
  %694 = vmatprep.subr.bf16.mxu0 0
  %695 = vmatpush1.bf16.msra.mxu0 %v516
  %696 = vmatprep.subr.bf16.mxu0 0
  %697 = vmatpush1.bf16.msra.mxu0 %v517
  %698 = vmatprep.subr.bf16.mxu0 0
  %699 = vmatpush1.bf16.msra.mxu0 %v518
  %700 = vmatprep.subr.bf16.mxu0 0
  %701 = vmatpush1.bf16.msra.mxu0 %v519
  %702 = vmatprep.subr.bf16.mxu0 0
  %703 = vmatpush1.bf16.msra.mxu0 %v520
  %704 = vmatprep.subr.bf16.mxu0 0
  %705 = vmatpush1.bf16.msra.mxu0 %v521
  %706 = vmatprep.subr.bf16.mxu0 0
  %707 = vmatpush1.bf16.msra.mxu0 %v522
  %708 = vmatprep.mubr.bf16.mxu0 %v214
  %709 = vmatmul.mubr.bf16.gmra.mrb[0].mxu0 %v213
  %v710 = vpop.f32.mrb[0].mxu0
  %v711 = vadd.f32 %v662, %v710
  %v712 = vpop.f32.mrb[0].mxu0
  %v713 = vpop.f32.mrb[0].mxu0
  %v714 = vadd.f32 %v665, %v713
  %v715 = vpop.f32.mrb[0].mxu0
  %716 = vmatprep.mubr.bf16.mxu0 %v222
  %717 = vmatmul.mubr.bf16.gmra.mrb[0].mxu0 %v221
  %v718 = vpop.f32.mrb[0].mxu0
  %v719 = vadd.f32 %v670, %v718
  %v720 = vpop.f32.mrb[0].mxu0
  %v721 = vpop.f32.mrb[0].mxu0
  %v722 = vadd.f32 %v673, %v721
  %v723 = vpop.f32.mrb[0].mxu0
  %724 = vdwg.mxu0
  %725 = vmatprep.subr.bf16.mxu0 0
  %726 = vmatpush1.bf16.msra.mxu0 %v523
  %727 = vmatprep.subr.bf16.mxu0 0
  %728 = vmatpush1.bf16.msra.mxu0 %v524
  %729 = vmatprep.subr.bf16.mxu0 0
  %730 = vmatpush1.bf16.msra.mxu0 %v525
  %731 = vmatprep.subr.bf16.mxu0 0
  %732 = vmatpush1.bf16.msra.mxu0 %v526
  %733 = vmatprep.subr.bf16.mxu0 0
  %734 = vmatpush1.bf16.msra.mxu0 %v527
  %735 = vmatprep.subr.bf16.mxu0 0
  %736 = vmatpush1.bf16.msra.mxu0 %v528
  %737 = vmatprep.subr.bf16.mxu0 0
  %738 = vmatpush1.bf16.msra.mxu0 %v529
  %739 = vmatprep.subr.bf16.mxu0 0
  %740 = vmatpush1.bf16.msra.mxu0 %v530
  %741 = vmatprep.subr.bf16.mxu0 0
  %742 = vmatpush1.bf16.msra.mxu0 %v531
  %743 = vmatprep.subr.bf16.mxu0 0
  %744 = vmatpush1.bf16.msra.mxu0 %v532
  %745 = vmatprep.subr.bf16.mxu0 0
  %746 = vmatpush1.bf16.msra.mxu0 %v533
  %747 = vmatprep.subr.bf16.mxu0 0
  %748 = vmatpush1.bf16.msra.mxu0 %v534
  %749 = vmatprep.subr.bf16.mxu0 0
  %750 = vmatpush1.bf16.msra.mxu0 %v535
  %751 = vmatprep.subr.bf16.mxu0 0
  %752 = vmatpush1.bf16.msra.mxu0 %v536
  %753 = vmatprep.subr.bf16.mxu0 0
  %754 = vmatpush1.bf16.msra.mxu0 %v537
  %755 = vmatprep.subr.bf16.mxu0 0
  %756 = vmatpush1.bf16.msra.mxu0 %v538
  %757 = vmatprep.mubr.bf16.mxu0 %v216
  %758 = vmatmul.mubr.bf16.gmra.mrb[0].mxu0 %v215
  %v759 = vpop.f32.mrb[0].mxu0
  %v760 = vadd.f32 %v711, %v759
  %v761 = vpop.f32.mrb[0].mxu0
  %v762 = vpop.f32.mrb[0].mxu0
  %v763 = vadd.f32 %v714, %v762
  %v764 = vpop.f32.mrb[0].mxu0
  %765 = vmatprep.mubr.bf16.mxu0 %v224
  %766 = vmatmul.mubr.bf16.gmra.mrb[0].mxu0 %v223
  %v767 = vpop.f32.mrb[0].mxu0
  %v768 = vadd.f32 %v719, %v767
  %v769 = vpop.f32.mrb[0].mxu0
  %v770 = vpop.f32.mrb[0].mxu0
  %v771 = vadd.f32 %v722, %v770
  %v772 = vpop.f32.mrb[0].mxu0
  %773 = vdwg.mxu0
  %774 = vmatprep.subr.bf16.mxu0 0
  %775 = vmatpush1.bf16.msra.mxu0 %v539
  %776 = vmatprep.subr.bf16.mxu0 0
  %777 = vmatpush1.bf16.msra.mxu0 %v540
  %778 = vmatprep.subr.bf16.mxu0 0
  %779 = vmatpush1.bf16.msra.mxu0 %v541
  %780 = vmatprep.subr.bf16.mxu0 0
  %781 = vmatpush1.bf16.msra.mxu0 %v542
  %782 = vmatprep.subr.bf16.mxu0 0
  %783 = vmatpush1.bf16.msra.mxu0 %v543
  %784 = vmatprep.subr.bf16.mxu0 0
  %785 = vmatpush1.bf16.msra.mxu0 %v544
  %786 = vmatprep.subr.bf16.mxu0 0
  %787 = vmatpush1.bf16.msra.mxu0 %v545
  %788 = vmatprep.subr.bf16.mxu0 0
  %789 = vmatpush1.bf16.msra.mxu0 %v546
  %790 = vmatprep.subr.bf16.mxu0 0
  %791 = vmatpush1.bf16.msra.mxu0 %v547
  %792 = vmatprep.subr.bf16.mxu0 0
  %793 = vmatpush1.bf16.msra.mxu0 %v548
  %794 = vmatprep.subr.bf16.mxu0 0
  %795 = vmatpush1.bf16.msra.mxu0 %v549
  %796 = vmatprep.subr.bf16.mxu0 0
  %797 = vmatpush1.bf16.msra.mxu0 %v550
  %798 = vmatprep.subr.bf16.mxu0 0
  %799 = vmatpush1.bf16.msra.mxu0 %v551
  %800 = vmatprep.subr.bf16.mxu0 0
  %801 = vmatpush1.bf16.msra.mxu0 %v552
  %802 = vmatprep.subr.bf16.mxu0 0
  %803 = vmatpush1.bf16.msra.mxu0 %v625
  %804 = vmatprep.subr.bf16.mxu0 0
  %805 = vmatpush1.bf16.msra.mxu0 0
  %806 = vmatprep.mubr.bf16.mxu0 %v618
  %807 = vmatmul.mubr.bf16.gmra.mrb[0].mxu0 %v217
  %v808 = vpop.f32.mrb[0].mxu0
  %v809 = vadd.f32 %v760, %v808
  %v810 = vpop.f32.mrb[0].mxu0
  %v811 = vpop.f32.mrb[0].mxu0
  %v812 = vadd.f32 %v763, %v811
  %v813 = vpop.f32.mrb[0].mxu0
  %814 = vmatprep.mubr.bf16.mxu0 %v621
  %815 = vmatmul.mubr.bf16.gmra.mrb[0].mxu0 %v225
  %v816 = vpop.f32.mrb[0].mxu0
  %v817 = vadd.f32 %v768, %v816
  %v818 = vpop.f32.mrb[0].mxu0
  %v819 = vpop.f32.mrb[0].mxu0
  %v820 = vadd.f32 %v771, %v819
  %v821 = vpop.f32.mrb[0].mxu0
  %822 = vdwg.mxu0
  %v823 = vpack.c.bf16 %v812, %v809
  %v824 = vpack.c.bf16 %v820, %v817
  %v827 = vunpack.c.l.b16 %v823
  %v828 = vunpack.c.h.b16 %v823
  %v829 = vunpack.c.l.b16 %v824
  %v830 = vunpack.c.h.b16 %v824
  %v831 = vpack.c.b16 %v827, %v827
  %v832 = vpack.c.b16 %v828, %v828
  %v833 = vpack.c.b16 %v829, %v829
  %v834 = vpack.c.b16 %v830, %v830
  %839 = vst [vmem:[%s3] sm:$0xf] %v831
  %840 = vst [vmem:[%s3 + $0x4] sm:$0xf] %v832
  %841 = vst [vmem:[%s3 + $0x8] sm:$0xf] %v833
  %842 = vst [vmem:[%s3 + $0xc] sm:$0xf] %v834
  // Predicated region
  $region14: #{rnncell_forward.21} parent=0 // pred_check
    _
  $region15: #{rnncell_forward.21} parent=0 // pred_check_branch
    %844 = sbr.rel (0) target = $region17
  $region16: #{rnncell_forward.21} parent=0 // pred_region
    _
  $region17: #{rnncell_forward.21} parent=0 // pred_fallthru
    _
  // Predicated region
  $region18: #{rnncell_forward.21} parent=0 // pred_check
    _
  $region19: #{rnncell_forward.21} parent=0 // pred_check_branch
    %846 = sbr.rel (0) target = $region21
  $region20: #{rnncell_forward.21} parent=0 // pred_region
    _
  $region21: #{rnncell_forward.21} parent=0 // pred_fallthru
    _

// kernel: rnncell_forward.22
$region0: #{rnncell_forward.22}
  #allocation0 [shape = 'u32[]', space=smem, size = 0x4, offset = 0x4, fixed_abs, tag = 'smem constant byte address 0x4 - core index']
  #allocation1 [shape = 'u32[144,128]{1,0:T(1,128)}', space=vmem, size = 0x12000, scoped, tag = 'internal scratch']
  %s0 = inlined_call_operand.vmem [shape: bf16[32,720], index: 0, kind: input, shape index: {}]
  %s1 = inlined_call_operand.vmem [shape: bf16[720,128], index: 1, kind: input, shape index: {}]
  %s2 = inlined_call_operand.vmem [shape: f32[1,128], index: 2, kind: input, shape index: {}]
  %s3 = inlined_call_operand.vmem [shape: bf16[32,128], index: 3, kind: output, shape index: {}]
  %s4 = sld [smem:[#allocation0]]
  $region22: #{rnncell_forward.22} parent=0
    _
  %s6 = ssub.s32 1, %s4
  %s7 = scalar_select 0, %s6, %s4
  // Predicated region
  $region2: #{rnncell_forward.22} parent=0 // pred_check
    _
  $region3: #{rnncell_forward.22} parent=0 // pred_check_branch
    %9 = sbr.rel (0) target = $region5
  $region4: #{rnncell_forward.22} parent=0 // pred_region
    _
  $region5: #{rnncell_forward.22} parent=0 // pred_fallthru
    _
  // Predicated region
  $region6: #{rnncell_forward.22} parent=0 // pred_check
    _
  $region7: #{rnncell_forward.22} parent=0 // pred_check_branch
    %11 = sbr.rel (0) target = $region9
  $region8: #{rnncell_forward.22} parent=0 // pred_region
    _
  $region9: #{rnncell_forward.22} parent=0 // pred_fallthru
    _
  // Predicated region
  $region10: #{rnncell_forward.22} parent=0 // pred_check
    _
  $region11: #{rnncell_forward.22} parent=0 // pred_check_branch
    %13 = sbr.rel (0) target = $region13
  $region12: #{rnncell_forward.22} parent=0 // pred_region
    _
  $region13: #{rnncell_forward.22} parent=0 // pred_fallthru
    _
  %v15 = vld [vmem:[%s0] sm:$0xff]
  %v16 = vld [vmem:[%s0 + $0x8] sm:$0xff]
  %v17 = vld [vmem:[%s0 + $0x10] sm:$0xff]
  %v18 = vld [vmem:[%s0 + $0x18] sm:$0xff]
  %v19 = vld [vmem:[%s0 + $0x20] sm:$0xff]
  %v20 = vld [vmem:[%s0 + $0x28] sm:$0xff]
  %v21 = vld [vmem:[%s0 + $0x30] sm:$0xff]
  %v22 = vld [vmem:[%s0 + $0x38] sm:$0xff]
  %v23 = vld [vmem:[%s0 + $0x40] sm:$0xff]
  %v24 = vld [vmem:[%s0 + $0x48] sm:$0xff]
  %v25 = vld [vmem:[%s0 + $0x50] sm:$0xff]
  %v26 = vld [vmem:[%s0 + $0x58] sm:$0xff]
  %v27 = vld [vmem:[%s1] sm:$0xf]
  %v28 = vld [vmem:[%s1 + $0x4] sm:$0xf]
  %v29 = vld [vmem:[%s1 + $0x8] sm:$0xf]
  %v30 = vld [vmem:[%s1 + $0xc] sm:$0xf]
  %v31 = vld [vmem:[%s1 + $0x10] sm:$0xf]
  %v32 = vld [vmem:[%s1 + $0x14] sm:$0xf]
  %v33 = vld [vmem:[%s1 + $0x18] sm:$0xf]
  %v34 = vld [vmem:[%s1 + $0x1c] sm:$0xf]
  %v35 = vld [vmem:[%s1 + $0x20] sm:$0xf]
  %v36 = vld [vmem:[%s1 + $0x24] sm:$0xf]
  %v37 = vld [vmem:[%s1 + $0x28] sm:$0xf]
  %v38 = vld [vmem:[%s1 + $0x2c] sm:$0xf]
  %v39 = vld [vmem:[%s1 + $0x30] sm:$0xf]
  %v40 = vld [vmem:[%s1 + $0x34] sm:$0xf]
  %v41 = vld [vmem:[%s1 + $0x38] sm:$0xf]
  %v42 = vld [vmem:[%s1 + $0x3c] sm:$0xf]
  %v43 = vld [vmem:[%s1 + $0x40] sm:$0xf]
  %v44 = vld [vmem:[%s1 + $0x44] sm:$0xf]
  %v45 = vld [vmem:[%s1 + $0x48] sm:$0xf]
  %v46 = vld [vmem:[%s1 + $0x4c] sm:$0xf]
  %v47 = vld [vmem:[%s1 + $0x50] sm:$0xf]
  %v48 = vld [vmem:[%s1 + $0x54] sm:$0xf]
  %v49 = vld [vmem:[%s1 + $0x58] sm:$0xf]
  %v50 = vld [vmem:[%s1 + $0x5c] sm:$0xf]
  %v51 = vld [vmem:[%s1 + $0x60] sm:$0xf]
  %v52 = vld [vmem:[%s1 + $0x64] sm:$0xf]
  %v53 = vld [vmem:[%s1 + $0x68] sm:$0xf]
  %v54 = vld [vmem:[%s1 + $0x6c] sm:$0xf]
  %v55 = vld [vmem:[%s1 + $0x70] sm:$0xf]
  %v56 = vld [vmem:[%s1 + $0x74] sm:$0xf]
  %v57 = vld [vmem:[%s1 + $0x78] sm:$0xf]
  %v58 = vld [vmem:[%s1 + $0x7c] sm:$0xf]
  %v59 = vld [vmem:[%s1 + $0x80] sm:$0xf]
  %v60 = vld [vmem:[%s1 + $0x84] sm:$0xf]
  %v61 = vld [vmem:[%s1 + $0x88] sm:$0xf]
  %v62 = vld [vmem:[%s1 + $0x8c] sm:$0xf]
  %v63 = vld [vmem:[%s1 + $0x90] sm:$0xf]
  %v64 = vld [vmem:[%s1 + $0x94] sm:$0xf]
  %v65 = vld [vmem:[%s1 + $0x98] sm:$0xf]
  %v66 = vld [vmem:[%s1 + $0x9c] sm:$0xf]
  %v67 = vld [vmem:[%s1 + $0xa0] sm:$0xf]
  %v68 = vld [vmem:[%s1 + $0xa4] sm:$0xf]
  %v69 = vld [vmem:[%s1 + $0xa8] sm:$0xf]
  %v70 = vld [vmem:[%s1 + $0xac] sm:$0xf]
  %v71 = vld [vmem:[%s1 + $0xb0] sm:$0xf]
  %v72 = vld [vmem:[%s1 + $0xb4] sm:$0xf]
  %v73 = vld [vmem:[%s1 + $0xb8] sm:$0xf]
  %v74 = vld [vmem:[%s1 + $0xbc] sm:$0xf]
  %v75 = vld [vmem:[%s1 + $0xc0] sm:$0xf]
  %v76 = vld [vmem:[%s1 + $0xc4] sm:$0xf]
  %v77 = vld [vmem:[%s1 + $0xc8] sm:$0xf]
  %v78 = vld [vmem:[%s1 + $0xcc] sm:$0xf]
  %v79 = vld [vmem:[%s1 + $0xd0] sm:$0xf]
  %v80 = vld [vmem:[%s1 + $0xd4] sm:$0xf]
  %v81 = vld [vmem:[%s1 + $0xd8] sm:$0xf]
  %v82 = vld [vmem:[%s1 + $0xdc] sm:$0xf]
  %v83 = vld [vmem:[%s1 + $0xe0] sm:$0xf]
  %v84 = vld [vmem:[%s1 + $0xe4] sm:$0xf]
  %v85 = vld [vmem:[%s1 + $0xe8] sm:$0xf]
  %v86 = vld [vmem:[%s1 + $0xec] sm:$0xf]
  %v87 = vld [vmem:[%s1 + $0xf0] sm:$0xf]
  %v88 = vld [vmem:[%s1 + $0xf4] sm:$0xf]
  %v89 = vld [vmem:[%s1 + $0xf8] sm:$0xf]
  %v90 = vld [vmem:[%s1 + $0xfc] sm:$0xf]
  %v91 = vld [vmem:[%s1 + $0x100] sm:$0xf]
  %v92 = vld [vmem:[%s1 + $0x104] sm:$0xf]
  %v93 = vld [vmem:[%s1 + $0x108] sm:$0xf]
  %v94 = vld [vmem:[%s1 + $0x10c] sm:$0xf]
  %v95 = vld [vmem:[%s1 + $0x110] sm:$0xf]
  %v96 = vld [vmem:[%s1 + $0x114] sm:$0xf]
  %v97 = vld [vmem:[%s1 + $0x118] sm:$0xf]
  %v98 = vld [vmem:[%s1 + $0x11c] sm:$0xf]
  %v99 = vld [vmem:[%s1 + $0x120] sm:$0xf]
  %v100 = vld [vmem:[%s1 + $0x124] sm:$0xf]
  %v101 = vld [vmem:[%s1 + $0x128] sm:$0xf]
  %v102 = vld [vmem:[%s1 + $0x12c] sm:$0xf]
  %v103 = vld [vmem:[%s1 + $0x130] sm:$0xf]
  %v104 = vld [vmem:[%s1 + $0x134] sm:$0xf]
  %v105 = vld [vmem:[%s1 + $0x138] sm:$0xf]
  %v106 = vld [vmem:[%s1 + $0x13c] sm:$0xf]
  %v107 = vld [vmem:[%s1 + $0x140] sm:$0xf]
  %v108 = vld [vmem:[%s1 + $0x144] sm:$0xf]
  %v109 = vld [vmem:[%s1 + $0x148] sm:$0xf]
  %v110 = vld [vmem:[%s1 + $0x14c] sm:$0xf]
  %v111 = vld [vmem:[%s1 + $0x150] sm:$0xf]
  %v112 = vld [vmem:[%s1 + $0x154] sm:$0xf]
  %v113 = vld [vmem:[%s1 + $0x158] sm:$0xf]
  %v114 = vld [vmem:[%s1 + $0x15c] sm:$0xf]
  %v115 = vld [vmem:[%s1 + $0x160] sm:$0xf]
  %v116 = vld [vmem:[%s1 + $0x164] sm:$0xf]
  %v117 = vld [vmem:[%s2] sm:$0x1]
  %v119 = vlaneseq
  %v120 = vshrl.u32 %v119, 7
  %v121 = vsub.s32 0, %v120
  %v122 = vrot.slane %v117, %v121
  %v136 = vunpack.c.l.b16 %v15
  %v137 = vunpack.c.h.b16 %v15
  %v138 = vunpack.c.l.b16 %v16
  %v139 = vunpack.c.h.b16 %v16
  %v140 = vunpack.c.l.b16 %v17
  %v141 = vunpack.c.h.b16 %v17
  %v142 = vunpack.c.l.b16 %v18
  %v143 = vunpack.c.h.b16 %v18
  %v144 = vunpack.c.l.b16 %v19
  %v145 = vunpack.c.h.b16 %v19
  %v146 = vunpack.c.l.b16 %v20
  %v147 = vunpack.c.h.b16 %v20
  %v148 = vunpack.c.l.b16 %v21
  %v149 = vunpack.c.h.b16 %v21
  %v150 = vunpack.c.l.b16 %v22
  %v151 = vunpack.c.h.b16 %v22
  %v152 = vunpack.c.l.b16 %v23
  %v153 = vunpack.c.h.b16 %v23
  %v154 = vunpack.c.l.b16 %v24
  %v155 = vunpack.c.h.b16 %v24
  %v156 = vunpack.c.l.b16 %v25
  %v157 = vunpack.c.h.b16 %v25
  %v158 = vunpack.c.l.b16 %v26
  %v159 = vunpack.c.h.b16 %v26
  %v160 = vpack.c.b16 %v142, %v136
  %v161 = vpack.c.b16 %v143, %v137
  %v162 = vpack.c.b16 %v144, %v138
  %v163 = vpack.c.b16 %v145, %v139
  %v164 = vpack.c.b16 %v146, %v140
  %v165 = vpack.c.b16 %v147, %v141
  %v166 = vpack.c.b16 %v154, %v148
  %v167 = vpack.c.b16 %v155, %v149
  %v168 = vpack.c.b16 %v156, %v150
  %v169 = vpack.c.b16 %v157, %v151
  %v170 = vpack.c.b16 %v158, %v152
  %v171 = vpack.c.b16 %v159, %v153
  %v272 = vunpack.c.l.b16 %v27
  %v273 = vunpack.c.l.b16 %v28
  %v274 = vunpack.c.l.b16 %v29
  %v275 = vunpack.c.l.b16 %v30
  %v276 = vunpack.c.l.b16 %v31
  %v277 = vunpack.c.l.b16 %v32
  %v278 = vunpack.c.l.b16 %v33
  %v279 = vunpack.c.l.b16 %v34
  %v280 = vunpack.c.l.b16 %v35
  %v281 = vunpack.c.l.b16 %v36
  %v282 = vunpack.c.l.b16 %v37
  %v283 = vunpack.c.l.b16 %v38
  %v284 = vunpack.c.l.b16 %v39
  %v285 = vunpack.c.l.b16 %v40
  %v286 = vunpack.c.l.b16 %v41
  %v287 = vunpack.c.l.b16 %v42
  %v288 = vunpack.c.l.b16 %v43
  %v289 = vunpack.c.l.b16 %v44
  %v290 = vunpack.c.l.b16 %v45
  %v291 = vunpack.c.l.b16 %v46
  %v292 = vunpack.c.l.b16 %v47
  %v293 = vunpack.c.l.b16 %v48
  %v294 = vunpack.c.l.b16 %v49
  %v295 = vunpack.c.l.b16 %v50
  %v296 = vunpack.c.l.b16 %v51
  %v297 = vunpack.c.l.b16 %v52
  %v298 = vunpack.c.l.b16 %v53
  %v299 = vunpack.c.l.b16 %v54
  %v300 = vunpack.c.l.b16 %v55
  %v301 = vunpack.c.l.b16 %v56
  %v302 = vunpack.c.l.b16 %v57
  %v303 = vunpack.c.l.b16 %v58
  %v304 = vunpack.c.l.b16 %v59
  %v305 = vunpack.c.l.b16 %v60
  %v306 = vunpack.c.l.b16 %v61
  %v307 = vunpack.c.l.b16 %v62
  %v308 = vunpack.c.l.b16 %v63
  %v309 = vunpack.c.l.b16 %v64
  %v310 = vunpack.c.l.b16 %v65
  %v311 = vunpack.c.l.b16 %v66
  %v312 = vunpack.c.l.b16 %v67
  %v313 = vunpack.c.l.b16 %v68
  %v314 = vunpack.c.l.b16 %v69
  %v315 = vunpack.c.l.b16 %v70
  %v316 = vunpack.c.l.b16 %v71
  %v317 = vunpack.c.l.b16 %v72
  %v318 = vunpack.c.l.b16 %v73
  %v319 = vunpack.c.l.b16 %v74
  %v320 = vunpack.c.l.b16 %v75
  %v321 = vunpack.c.l.b16 %v76
  %v322 = vunpack.c.l.b16 %v77
  %v323 = vunpack.c.l.b16 %v78
  %v324 = vunpack.c.l.b16 %v79
  %v325 = vunpack.c.l.b16 %v80
  %v326 = vunpack.c.l.b16 %v81
  %v327 = vunpack.c.l.b16 %v82
  %v328 = vunpack.c.l.b16 %v83
  %v329 = vunpack.c.l.b16 %v84
  %v330 = vunpack.c.l.b16 %v85
  %v331 = vunpack.c.l.b16 %v86
  %v332 = vunpack.c.l.b16 %v87
  %v333 = vunpack.c.l.b16 %v88
  %v334 = vunpack.c.l.b16 %v89
  %v335 = vunpack.c.l.b16 %v90
  %v336 = vunpack.c.l.b16 %v91
  %v337 = vunpack.c.l.b16 %v92
  %v338 = vunpack.c.l.b16 %v93
  %v339 = vunpack.c.l.b16 %v94
  %v340 = vunpack.c.l.b16 %v95
  %v341 = vunpack.c.l.b16 %v96
  %v342 = vunpack.c.l.b16 %v97
  %v343 = vunpack.c.l.b16 %v98
  %v344 = vunpack.c.l.b16 %v99
  %v345 = vunpack.c.l.b16 %v100
  %v346 = vunpack.c.l.b16 %v101
  %v347 = vunpack.c.l.b16 %v102
  %v348 = vunpack.c.l.b16 %v103
  %v349 = vunpack.c.l.b16 %v104
  %v350 = vunpack.c.l.b16 %v105
  %v351 = vunpack.c.l.b16 %v106
  %v352 = vunpack.c.l.b16 %v107
  %v353 = vunpack.c.l.b16 %v108
  %v354 = vunpack.c.l.b16 %v109
  %v355 = vunpack.c.l.b16 %v110
  %v356 = vunpack.c.l.b16 %v111
  %v357 = vunpack.c.l.b16 %v112
  %v358 = vunpack.c.l.b16 %v113
  %v359 = vunpack.c.l.b16 %v114
  %v360 = vunpack.c.l.b16 %v115
  %v361 = vunpack.c.l.b16 %v116
  %v362 = vpack.c.b16 %v273, %v272
  %v363 = vpack.c.b16 %v275, %v274
  %v364 = vpack.c.b16 %v277, %v276
  %v365 = vpack.c.b16 %v279, %v278
  %v366 = vpack.c.b16 %v281, %v280
  %v367 = vpack.c.b16 %v283, %v282
  %v368 = vpack.c.b16 %v285, %v284
  %v369 = vpack.c.b16 %v287, %v286
  %v370 = vpack.c.b16 %v289, %v288
  %v371 = vpack.c.b16 %v291, %v290
  %v372 = vpack.c.b16 %v293, %v292
  %v373 = vpack.c.b16 %v295, %v294
  %v374 = vpack.c.b16 %v297, %v296
  %v375 = vpack.c.b16 %v299, %v298
  %v376 = vpack.c.b16 %v301, %v300
  %v377 = vpack.c.b16 %v303, %v302
  %v378 = vpack.c.b16 %v305, %v304
  %v379 = vpack.c.b16 %v307, %v306
  %v380 = vpack.c.b16 %v309, %v308
  %v381 = vpack.c.b16 %v311, %v310
  %v382 = vpack.c.b16 %v313, %v312
  %v383 = vpack.c.b16 %v315, %v314
  %v384 = vpack.c.b16 %v317, %v316
  %v385 = vpack.c.b16 %v319, %v318
  %v386 = vpack.c.b16 %v321, %v320
  %v387 = vpack.c.b16 %v323, %v322
  %v388 = vpack.c.b16 %v325, %v324
  %v389 = vpack.c.b16 %v327, %v326
  %v390 = vpack.c.b16 %v329, %v328
  %v391 = vpack.c.b16 %v331, %v330
  %v392 = vpack.c.b16 %v333, %v332
  %v393 = vpack.c.b16 %v335, %v334
  %v394 = vpack.c.b16 %v337, %v336
  %v395 = vpack.c.b16 %v339, %v338
  %v396 = vpack.c.b16 %v341, %v340
  %v397 = vpack.c.b16 %v343, %v342
  %v398 = vpack.c.b16 %v345, %v344
  %v399 = vpack.c.b16 %v347, %v346
  %v400 = vpack.c.b16 %v349, %v348
  %v401 = vpack.c.b16 %v351, %v350
  %v402 = vpack.c.b16 %v353, %v352
  %v403 = vpack.c.b16 %v355, %v354
  %v404 = vpack.c.b16 %v357, %v356
  %v405 = vpack.c.b16 %v359, %v358
  %v406 = vpack.c.b16 %v361, %v360
  %vm452 = vcmask 654336
  %v454 = vsel %vm452, %v165, 0
  %v457 = vsel %vm452, %v171, 0
  %459 = vmatprep.subr.bf16.mxu0 0
  %460 = vmatpush1.bf16.msra.mxu0 %v362
  %461 = vmatprep.subr.bf16.mxu0 0
  %462 = vmatpush1.bf16.msra.mxu0 %v363
  %463 = vmatprep.subr.bf16.mxu0 0
  %464 = vmatpush1.bf16.msra.mxu0 %v364
  %465 = vmatprep.subr.bf16.mxu0 0
  %466 = vmatpush1.bf16.msra.mxu0 %v365
  %467 = vmatprep.subr.bf16.mxu0 0
  %468 = vmatpush1.bf16.msra.mxu0 %v366
  %469 = vmatprep.subr.bf16.mxu0 0
  %470 = vmatpush1.bf16.msra.mxu0 %v367
  %471 = vmatprep.subr.bf16.mxu0 0
  %472 = vmatpush1.bf16.msra.mxu0 %v368
  %473 = vmatprep.subr.bf16.mxu0 0
  %474 = vmatpush1.bf16.msra.mxu0 %v369
  %475 = vmatprep.subr.bf16.mxu0 0
  %476 = vmatpush1.bf16.msra.mxu0 %v370
  %477 = vmatprep.subr.bf16.mxu0 0
  %478 = vmatpush1.bf16.msra.mxu0 %v371
  %479 = vmatprep.subr.bf16.mxu0 0
  %480 = vmatpush1.bf16.msra.mxu0 %v372
  %481 = vmatprep.subr.bf16.mxu0 0
  %482 = vmatpush1.bf16.msra.mxu0 %v373
  %483 = vmatprep.subr.bf16.mxu0 0
  %484 = vmatpush1.bf16.msra.mxu0 %v374
  %485 = vmatprep.subr.bf16.mxu0 0
  %486 = vmatpush1.bf16.msra.mxu0 %v375
  %487 = vmatprep.subr.bf16.mxu0 0
  %488 = vmatpush1.bf16.msra.mxu0 %v376
  %489 = vmatprep.subr.bf16.mxu0 0
  %490 = vmatpush1.bf16.msra.mxu0 %v377
  %491 = vmatprep.mubr.bf16.mxu0 %v161
  %492 = vmatmul.mubr.bf16.gmra.mrb[0].mxu0 %v160
  %v493 = vpop.f32.mrb[0].mxu0
  %v494 = vadd.f32 %v122, %v493
  %v495 = vpop.f32.mrb[0].mxu0
  %v496 = vpop.f32.mrb[0].mxu0
  %v497 = vadd.f32 %v122, %v496
  %v498 = vpop.f32.mrb[0].mxu0
  %499 = vmatprep.mubr.bf16.mxu0 %v167
  %500 = vmatmul.mubr.bf16.gmra.mrb[0].mxu0 %v166
  %v501 = vpop.f32.mrb[0].mxu0
  %v502 = vadd.f32 %v122, %v501
  %v503 = vpop.f32.mrb[0].mxu0
  %v504 = vpop.f32.mrb[0].mxu0
  %v505 = vadd.f32 %v122, %v504
  %v506 = vpop.f32.mrb[0].mxu0
  %507 = vdwg.mxu0
  %508 = vmatprep.subr.bf16.mxu0 0
  %509 = vmatpush1.bf16.msra.mxu0 %v378
  %510 = vmatprep.subr.bf16.mxu0 0
  %511 = vmatpush1.bf16.msra.mxu0 %v379
  %512 = vmatprep.subr.bf16.mxu0 0
  %513 = vmatpush1.bf16.msra.mxu0 %v380
  %514 = vmatprep.subr.bf16.mxu0 0
  %515 = vmatpush1.bf16.msra.mxu0 %v381
  %516 = vmatprep.subr.bf16.mxu0 0
  %517 = vmatpush1.bf16.msra.mxu0 %v382
  %518 = vmatprep.subr.bf16.mxu0 0
  %519 = vmatpush1.bf16.msra.mxu0 %v383
  %520 = vmatprep.subr.bf16.mxu0 0
  %521 = vmatpush1.bf16.msra.mxu0 %v384
  %522 = vmatprep.subr.bf16.mxu0 0
  %523 = vmatpush1.bf16.msra.mxu0 %v385
  %524 = vmatprep.subr.bf16.mxu0 0
  %525 = vmatpush1.bf16.msra.mxu0 %v386
  %526 = vmatprep.subr.bf16.mxu0 0
  %527 = vmatpush1.bf16.msra.mxu0 %v387
  %528 = vmatprep.subr.bf16.mxu0 0
  %529 = vmatpush1.bf16.msra.mxu0 %v388
  %530 = vmatprep.subr.bf16.mxu0 0
  %531 = vmatpush1.bf16.msra.mxu0 %v389
  %532 = vmatprep.subr.bf16.mxu0 0
  %533 = vmatpush1.bf16.msra.mxu0 %v390
  %534 = vmatprep.subr.bf16.mxu0 0
  %535 = vmatpush1.bf16.msra.mxu0 %v391
  %536 = vmatprep.subr.bf16.mxu0 0
  %537 = vmatpush1.bf16.msra.mxu0 %v392
  %538 = vmatprep.subr.bf16.mxu0 0
  %539 = vmatpush1.bf16.msra.mxu0 %v393
  %540 = vmatprep.mubr.bf16.mxu0 %v163
  %541 = vmatmul.mubr.bf16.gmra.mrb[0].mxu0 %v162
  %v542 = vpop.f32.mrb[0].mxu0
  %v543 = vadd.f32 %v494, %v542
  %v544 = vpop.f32.mrb[0].mxu0
  %v545 = vpop.f32.mrb[0].mxu0
  %v546 = vadd.f32 %v497, %v545
  %v547 = vpop.f32.mrb[0].mxu0
  %548 = vmatprep.mubr.bf16.mxu0 %v169
  %549 = vmatmul.mubr.bf16.gmra.mrb[0].mxu0 %v168
  %v550 = vpop.f32.mrb[0].mxu0
  %v551 = vadd.f32 %v502, %v550
  %v552 = vpop.f32.mrb[0].mxu0
  %v553 = vpop.f32.mrb[0].mxu0
  %v554 = vadd.f32 %v505, %v553
  %v555 = vpop.f32.mrb[0].mxu0
  %556 = vdwg.mxu0
  %557 = vmatprep.subr.bf16.mxu0 0
  %558 = vmatpush1.bf16.msra.mxu0 %v394
  %559 = vmatprep.subr.bf16.mxu0 0
  %560 = vmatpush1.bf16.msra.mxu0 %v395
  %561 = vmatprep.subr.bf16.mxu0 0
  %562 = vmatpush1.bf16.msra.mxu0 %v396
  %563 = vmatprep.subr.bf16.mxu0 0
  %564 = vmatpush1.bf16.msra.mxu0 %v397
  %565 = vmatprep.subr.bf16.mxu0 0
  %566 = vmatpush1.bf16.msra.mxu0 %v398
  %567 = vmatprep.subr.bf16.mxu0 0
  %568 = vmatpush1.bf16.msra.mxu0 %v399
  %569 = vmatprep.subr.bf16.mxu0 0
  %570 = vmatpush1.bf16.msra.mxu0 %v400
  %571 = vmatprep.subr.bf16.mxu0 0
  %572 = vmatpush1.bf16.msra.mxu0 %v401
  %573 = vmatprep.subr.bf16.mxu0 0
  %574 = vmatpush1.bf16.msra.mxu0 %v402
  %575 = vmatprep.subr.bf16.mxu0 0
  %576 = vmatpush1.bf16.msra.mxu0 %v403
  %577 = vmatprep.subr.bf16.mxu0 0
  %578 = vmatpush1.bf16.msra.mxu0 %v404
  %579 = vmatprep.subr.bf16.mxu0 0
  %580 = vmatpush1.bf16.msra.mxu0 %v405
  %581 = vmatprep.subr.bf16.mxu0 0
  %582 = vmatpush1.bf16.msra.mxu0 %v406
  %583 = vmatprep.subr.bf16.mxu0 0
  %584 = vmatpush1.bf16.msra.mxu0 0
  %585 = vmatprep.subr.bf16.mxu0 0
  %586 = vmatpush1.bf16.msra.mxu0 0
  %587 = vmatprep.subr.bf16.mxu0 0
  %588 = vmatpush1.bf16.msra.mxu0 0
  %589 = vmatprep.mubr.bf16.mxu0 %v454
  %590 = vmatmul.mubr.bf16.gmra.mrb[0].mxu0 %v164
  %v591 = vpop.f32.mrb[0].mxu0
  %v592 = vadd.f32 %v543, %v591
  %v593 = vpop.f32.mrb[0].mxu0
  %v594 = vpop.f32.mrb[0].mxu0
  %v595 = vadd.f32 %v546, %v594
  %v596 = vpop.f32.mrb[0].mxu0
  %597 = vmatprep.mubr.bf16.mxu0 %v457
  %598 = vmatmul.mubr.bf16.gmra.mrb[0].mxu0 %v170
  %v599 = vpop.f32.mrb[0].mxu0
  %v600 = vadd.f32 %v551, %v599
  %v601 = vpop.f32.mrb[0].mxu0
  %v602 = vpop.f32.mrb[0].mxu0
  %v603 = vadd.f32 %v554, %v602
  %v604 = vpop.f32.mrb[0].mxu0
  %605 = vdwg.mxu0
  %v606 = vmax.f32 %v592, 0.0
  %v607 = vmax.f32 %v595, 0.0
  %v608 = vmax.f32 %v600, 0.0
  %v609 = vmax.f32 %v603, 0.0
  %v610 = vpack.c.bf16 %v607, %v606
  %v611 = vpack.c.bf16 %v609, %v608
  %v614 = vunpack.c.l.b16 %v610
  %v615 = vunpack.c.h.b16 %v610
  %v616 = vunpack.c.l.b16 %v611
  %v617 = vunpack.c.h.b16 %v611
  %v618 = vpack.c.b16 %v614, %v614
  %v619 = vpack.c.b16 %v615, %v615
  %v620 = vpack.c.b16 %v616, %v616
  %v621 = vpack.c.b16 %v617, %v617
  %626 = vst [vmem:[%s3] sm:$0xf] %v618
  %627 = vst [vmem:[%s3 + $0x4] sm:$0xf] %v619
  %628 = vst [vmem:[%s3 + $0x8] sm:$0xf] %v620
  %629 = vst [vmem:[%s3 + $0xc] sm:$0xf] %v621
  // Predicated region
  $region14: #{rnncell_forward.22} parent=0 // pred_check
    _
  $region15: #{rnncell_forward.22} parent=0 // pred_check_branch
    %631 = sbr.rel (0) target = $region17
  $region16: #{rnncell_forward.22} parent=0 // pred_region
    _
  $region17: #{rnncell_forward.22} parent=0 // pred_fallthru
    _
  // Predicated region
  $region18: #{rnncell_forward.22} parent=0 // pred_check
    _
  $region19: #{rnncell_forward.22} parent=0 // pred_check_branch
    %633 = sbr.rel (0) target = $region21
  $region20: #{rnncell_forward.22} parent=0 // pred_region
    _
  $region21: #{rnncell_forward.22} parent=0 // pred_fallthru
    _

// kernel: rnncell_forward.23
$region0: #{rnncell_forward.23}
  #allocation0 [shape = 'u32[]', space=smem, size = 0x4, offset = 0x4, fixed_abs, tag = 'smem constant byte address 0x4 - core index']
  #allocation1 [shape = 'u32[144,128]{1,0:T(1,128)}', space=vmem, size = 0x12000, scoped, tag = 'internal scratch']
  %s0 = inlined_call_operand.vmem [shape: bf16[32,720], index: 0, kind: input, shape index: {}]
  %s1 = inlined_call_operand.vmem [shape: bf16[720,128], index: 1, kind: input, shape index: {}]
  %s2 = inlined_call_operand.vmem [shape: f32[1,128], index: 2, kind: input, shape index: {}]
  %s3 = inlined_call_operand.vmem [shape: bf16[32,128], index: 3, kind: input, shape index: {}]
  %s4 = inlined_call_operand.vmem [shape: bf16[32,128], index: 4, kind: output, shape index: {}]
  %s5 = sld [smem:[#allocation0]]
  $region26: #{rnncell_forward.23} parent=0
    _
  %s7 = ssub.s32 1, %s5
  %s8 = scalar_select 0, %s7, %s5
  // Predicated region
  $region2: #{rnncell_forward.23} parent=0 // pred_check
    _
  $region3: #{rnncell_forward.23} parent=0 // pred_check_branch
    %10 = sbr.rel (0) target = $region5
  $region4: #{rnncell_forward.23} parent=0 // pred_region
    _
  $region5: #{rnncell_forward.23} parent=0 // pred_fallthru
    _
  // Predicated region
  $region6: #{rnncell_forward.23} parent=0 // pred_check
    _
  $region7: #{rnncell_forward.23} parent=0 // pred_check_branch
    %12 = sbr.rel (0) target = $region9
  $region8: #{rnncell_forward.23} parent=0 // pred_region
    _
  $region9: #{rnncell_forward.23} parent=0 // pred_fallthru
    _
  // Predicated region
  $region10: #{rnncell_forward.23} parent=0 // pred_check
    _
  $region11: #{rnncell_forward.23} parent=0 // pred_check_branch
    %14 = sbr.rel (0) target = $region13
  $region12: #{rnncell_forward.23} parent=0 // pred_region
    _
  $region13: #{rnncell_forward.23} parent=0 // pred_fallthru
    _
  // Predicated region
  $region14: #{rnncell_forward.23} parent=0 // pred_check
    _
  $region15: #{rnncell_forward.23} parent=0 // pred_check_branch
    %16 = sbr.rel (0) target = $region17
  $region16: #{rnncell_forward.23} parent=0 // pred_region
    _
  $region17: #{rnncell_forward.23} parent=0 // pred_fallthru
    _
  %v18 = vld [vmem:[%s0] sm:$0xff]
  %v19 = vld [vmem:[%s0 + $0x8] sm:$0xff]
  %v20 = vld [vmem:[%s0 + $0x10] sm:$0xff]
  %v21 = vld [vmem:[%s0 + $0x18] sm:$0xff]
  %v22 = vld [vmem:[%s0 + $0x20] sm:$0xff]
  %v23 = vld [vmem:[%s0 + $0x28] sm:$0xff]
  %v24 = vld [vmem:[%s0 + $0x30] sm:$0xff]
  %v25 = vld [vmem:[%s0 + $0x38] sm:$0xff]
  %v26 = vld [vmem:[%s0 + $0x40] sm:$0xff]
  %v27 = vld [vmem:[%s0 + $0x48] sm:$0xff]
  %v28 = vld [vmem:[%s0 + $0x50] sm:$0xff]
  %v29 = vld [vmem:[%s0 + $0x58] sm:$0xff]
  %v30 = vld [vmem:[%s1] sm:$0xf]
  %v31 = vld [vmem:[%s1 + $0x4] sm:$0xf]
  %v32 = vld [vmem:[%s1 + $0x8] sm:$0xf]
  %v33 = vld [vmem:[%s1 + $0xc] sm:$0xf]
  %v34 = vld [vmem:[%s1 + $0x10] sm:$0xf]
  %v35 = vld [vmem:[%s1 + $0x14] sm:$0xf]
  %v36 = vld [vmem:[%s1 + $0x18] sm:$0xf]
  %v37 = vld [vmem:[%s1 + $0x1c] sm:$0xf]
  %v38 = vld [vmem:[%s1 + $0x20] sm:$0xf]
  %v39 = vld [vmem:[%s1 + $0x24] sm:$0xf]
  %v40 = vld [vmem:[%s1 + $0x28] sm:$0xf]
  %v41 = vld [vmem:[%s1 + $0x2c] sm:$0xf]
  %v42 = vld [vmem:[%s1 + $0x30] sm:$0xf]
  %v43 = vld [vmem:[%s1 + $0x34] sm:$0xf]
  %v44 = vld [vmem:[%s1 + $0x38] sm:$0xf]
  %v45 = vld [vmem:[%s1 + $0x3c] sm:$0xf]
  %v46 = vld [vmem:[%s1 + $0x40] sm:$0xf]
  %v47 = vld [vmem:[%s1 + $0x44] sm:$0xf]
  %v48 = vld [vmem:[%s1 + $0x48] sm:$0xf]
  %v49 = vld [vmem:[%s1 + $0x4c] sm:$0xf]
  %v50 = vld [vmem:[%s1 + $0x50] sm:$0xf]
  %v51 = vld [vmem:[%s1 + $0x54] sm:$0xf]
  %v52 = vld [vmem:[%s1 + $0x58] sm:$0xf]
  %v53 = vld [vmem:[%s1 + $0x5c] sm:$0xf]
  %v54 = vld [vmem:[%s1 + $0x60] sm:$0xf]
  %v55 = vld [vmem:[%s1 + $0x64] sm:$0xf]
  %v56 = vld [vmem:[%s1 + $0x68] sm:$0xf]
  %v57 = vld [vmem:[%s1 + $0x6c] sm:$0xf]
  %v58 = vld [vmem:[%s1 + $0x70] sm:$0xf]
  %v59 = vld [vmem:[%s1 + $0x74] sm:$0xf]
  %v60 = vld [vmem:[%s1 + $0x78] sm:$0xf]
  %v61 = vld [vmem:[%s1 + $0x7c] sm:$0xf]
  %v62 = vld [vmem:[%s1 + $0x80] sm:$0xf]
  %v63 = vld [vmem:[%s1 + $0x84] sm:$0xf]
  %v64 = vld [vmem:[%s1 + $0x88] sm:$0xf]
  %v65 = vld [vmem:[%s1 + $0x8c] sm:$0xf]
  %v66 = vld [vmem:[%s1 + $0x90] sm:$0xf]
  %v67 = vld [vmem:[%s1 + $0x94] sm:$0xf]
  %v68 = vld [vmem:[%s1 + $0x98] sm:$0xf]
  %v69 = vld [vmem:[%s1 + $0x9c] sm:$0xf]
  %v70 = vld [vmem:[%s1 + $0xa0] sm:$0xf]
  %v71 = vld [vmem:[%s1 + $0xa4] sm:$0xf]
  %v72 = vld [vmem:[%s1 + $0xa8] sm:$0xf]
  %v73 = vld [vmem:[%s1 + $0xac] sm:$0xf]
  %v74 = vld [vmem:[%s1 + $0xb0] sm:$0xf]
  %v75 = vld [vmem:[%s1 + $0xb4] sm:$0xf]
  %v76 = vld [vmem:[%s1 + $0xb8] sm:$0xf]
  %v77 = vld [vmem:[%s1 + $0xbc] sm:$0xf]
  %v78 = vld [vmem:[%s1 + $0xc0] sm:$0xf]
  %v79 = vld [vmem:[%s1 + $0xc4] sm:$0xf]
  %v80 = vld [vmem:[%s1 + $0xc8] sm:$0xf]
  %v81 = vld [vmem:[%s1 + $0xcc] sm:$0xf]
  %v82 = vld [vmem:[%s1 + $0xd0] sm:$0xf]
  %v83 = vld [vmem:[%s1 + $0xd4] sm:$0xf]
  %v84 = vld [vmem:[%s1 + $0xd8] sm:$0xf]
  %v85 = vld [vmem:[%s1 + $0xdc] sm:$0xf]
  %v86 = vld [vmem:[%s1 + $0xe0] sm:$0xf]
  %v87 = vld [vmem:[%s1 + $0xe4] sm:$0xf]
  %v88 = vld [vmem:[%s1 + $0xe8] sm:$0xf]
  %v89 = vld [vmem:[%s1 + $0xec] sm:$0xf]
  %v90 = vld [vmem:[%s1 + $0xf0] sm:$0xf]
  %v91 = vld [vmem:[%s1 + $0xf4] sm:$0xf]
  %v92 = vld [vmem:[%s1 + $0xf8] sm:$0xf]
  %v93 = vld [vmem:[%s1 + $0xfc] sm:$0xf]
  %v94 = vld [vmem:[%s1 + $0x100] sm:$0xf]
  %v95 = vld [vmem:[%s1 + $0x104] sm:$0xf]
  %v96 = vld [vmem:[%s1 + $0x108] sm:$0xf]
  %v97 = vld [vmem:[%s1 + $0x10c] sm:$0xf]
  %v98 = vld [vmem:[%s1 + $0x110] sm:$0xf]
  %v99 = vld [vmem:[%s1 + $0x114] sm:$0xf]
  %v100 = vld [vmem:[%s1 + $0x118] sm:$0xf]
  %v101 = vld [vmem:[%s1 + $0x11c] sm:$0xf]
  %v102 = vld [vmem:[%s1 + $0x120] sm:$0xf]
  %v103 = vld [vmem:[%s1 + $0x124] sm:$0xf]
  %v104 = vld [vmem:[%s1 + $0x128] sm:$0xf]
  %v105 = vld [vmem:[%s1 + $0x12c] sm:$0xf]
  %v106 = vld [vmem:[%s1 + $0x130] sm:$0xf]
  %v107 = vld [vmem:[%s1 + $0x134] sm:$0xf]
  %v108 = vld [vmem:[%s1 + $0x138] sm:$0xf]
  %v109 = vld [vmem:[%s1 + $0x13c] sm:$0xf]
  %v110 = vld [vmem:[%s1 + $0x140] sm:$0xf]
  %v111 = vld [vmem:[%s1 + $0x144] sm:$0xf]
  %v112 = vld [vmem:[%s1 + $0x148] sm:$0xf]
  %v113 = vld [vmem:[%s1 + $0x14c] sm:$0xf]
  %v114 = vld [vmem:[%s1 + $0x150] sm:$0xf]
  %v115 = vld [vmem:[%s1 + $0x154] sm:$0xf]
  %v116 = vld [vmem:[%s1 + $0x158] sm:$0xf]
  %v117 = vld [vmem:[%s1 + $0x15c] sm:$0xf]
  %v118 = vld [vmem:[%s1 + $0x160] sm:$0xf]
  %v119 = vld [vmem:[%s1 + $0x164] sm:$0xf]
  %v120 = vld [vmem:[%s2] sm:$0x1]
  %v122 = vlaneseq
  %v123 = vshrl.u32 %v122, 7
  %v124 = vsub.s32 0, %v123
  %v125 = vrot.slane %v120, %v124
  %v139 = vunpack.c.l.b16 %v18
  %v140 = vunpack.c.h.b16 %v18
  %v141 = vunpack.c.l.b16 %v19
  %v142 = vunpack.c.h.b16 %v19
  %v143 = vunpack.c.l.b16 %v20
  %v144 = vunpack.c.h.b16 %v20
  %v145 = vunpack.c.l.b16 %v21
  %v146 = vunpack.c.h.b16 %v21
  %v147 = vunpack.c.l.b16 %v22
  %v148 = vunpack.c.h.b16 %v22
  %v149 = vunpack.c.l.b16 %v23
  %v150 = vunpack.c.h.b16 %v23
  %v151 = vunpack.c.l.b16 %v24
  %v152 = vunpack.c.h.b16 %v24
  %v153 = vunpack.c.l.b16 %v25
  %v154 = vunpack.c.h.b16 %v25
  %v155 = vunpack.c.l.b16 %v26
  %v156 = vunpack.c.h.b16 %v26
  %v157 = vunpack.c.l.b16 %v27
  %v158 = vunpack.c.h.b16 %v27
  %v159 = vunpack.c.l.b16 %v28
  %v160 = vunpack.c.h.b16 %v28
  %v161 = vunpack.c.l.b16 %v29
  %v162 = vunpack.c.h.b16 %v29
  %v163 = vpack.c.b16 %v145, %v139
  %v164 = vpack.c.b16 %v146, %v140
  %v165 = vpack.c.b16 %v147, %v141
  %v166 = vpack.c.b16 %v148, %v142
  %v167 = vpack.c.b16 %v149, %v143
  %v168 = vpack.c.b16 %v150, %v144
  %v169 = vpack.c.b16 %v157, %v151
  %v170 = vpack.c.b16 %v158, %v152
  %v171 = vpack.c.b16 %v159, %v153
  %v172 = vpack.c.b16 %v160, %v154
  %v173 = vpack.c.b16 %v161, %v155
  %v174 = vpack.c.b16 %v162, %v156
  %v275 = vunpack.c.l.b16 %v30
  %v276 = vunpack.c.l.b16 %v31
  %v277 = vunpack.c.l.b16 %v32
  %v278 = vunpack.c.l.b16 %v33
  %v279 = vunpack.c.l.b16 %v34
  %v280 = vunpack.c.l.b16 %v35
  %v281 = vunpack.c.l.b16 %v36
  %v282 = vunpack.c.l.b16 %v37
  %v283 = vunpack.c.l.b16 %v38
  %v284 = vunpack.c.l.b16 %v39
  %v285 = vunpack.c.l.b16 %v40
  %v286 = vunpack.c.l.b16 %v41
  %v287 = vunpack.c.l.b16 %v42
  %v288 = vunpack.c.l.b16 %v43
  %v289 = vunpack.c.l.b16 %v44
  %v290 = vunpack.c.l.b16 %v45
  %v291 = vunpack.c.l.b16 %v46
  %v292 = vunpack.c.l.b16 %v47
  %v293 = vunpack.c.l.b16 %v48
  %v294 = vunpack.c.l.b16 %v49
  %v295 = vunpack.c.l.b16 %v50
  %v296 = vunpack.c.l.b16 %v51
  %v297 = vunpack.c.l.b16 %v52
  %v298 = vunpack.c.l.b16 %v53
  %v299 = vunpack.c.l.b16 %v54
  %v300 = vunpack.c.l.b16 %v55
  %v301 = vunpack.c.l.b16 %v56
  %v302 = vunpack.c.l.b16 %v57
  %v303 = vunpack.c.l.b16 %v58
  %v304 = vunpack.c.l.b16 %v59
  %v305 = vunpack.c.l.b16 %v60
  %v306 = vunpack.c.l.b16 %v61
  %v307 = vunpack.c.l.b16 %v62
  %v308 = vunpack.c.l.b16 %v63
  %v309 = vunpack.c.l.b16 %v64
  %v310 = vunpack.c.l.b16 %v65
  %v311 = vunpack.c.l.b16 %v66
  %v312 = vunpack.c.l.b16 %v67
  %v313 = vunpack.c.l.b16 %v68
  %v314 = vunpack.c.l.b16 %v69
  %v315 = vunpack.c.l.b16 %v70
  %v316 = vunpack.c.l.b16 %v71
  %v317 = vunpack.c.l.b16 %v72
  %v318 = vunpack.c.l.b16 %v73
  %v319 = vunpack.c.l.b16 %v74
  %v320 = vunpack.c.l.b16 %v75
  %v321 = vunpack.c.l.b16 %v76
  %v322 = vunpack.c.l.b16 %v77
  %v323 = vunpack.c.l.b16 %v78
  %v324 = vunpack.c.l.b16 %v79
  %v325 = vunpack.c.l.b16 %v80
  %v326 = vunpack.c.l.b16 %v81
  %v327 = vunpack.c.l.b16 %v82
  %v328 = vunpack.c.l.b16 %v83
  %v329 = vunpack.c.l.b16 %v84
  %v330 = vunpack.c.l.b16 %v85
  %v331 = vunpack.c.l.b16 %v86
  %v332 = vunpack.c.l.b16 %v87
  %v333 = vunpack.c.l.b16 %v88
  %v334 = vunpack.c.l.b16 %v89
  %v335 = vunpack.c.l.b16 %v90
  %v336 = vunpack.c.l.b16 %v91
  %v337 = vunpack.c.l.b16 %v92
  %v338 = vunpack.c.l.b16 %v93
  %v339 = vunpack.c.l.b16 %v94
  %v340 = vunpack.c.l.b16 %v95
  %v341 = vunpack.c.l.b16 %v96
  %v342 = vunpack.c.l.b16 %v97
  %v343 = vunpack.c.l.b16 %v98
  %v344 = vunpack.c.l.b16 %v99
  %v345 = vunpack.c.l.b16 %v100
  %v346 = vunpack.c.l.b16 %v101
  %v347 = vunpack.c.l.b16 %v102
  %v348 = vunpack.c.l.b16 %v103
  %v349 = vunpack.c.l.b16 %v104
  %v350 = vunpack.c.l.b16 %v105
  %v351 = vunpack.c.l.b16 %v106
  %v352 = vunpack.c.l.b16 %v107
  %v353 = vunpack.c.l.b16 %v108
  %v354 = vunpack.c.l.b16 %v109
  %v355 = vunpack.c.l.b16 %v110
  %v356 = vunpack.c.l.b16 %v111
  %v357 = vunpack.c.l.b16 %v112
  %v358 = vunpack.c.l.b16 %v113
  %v359 = vunpack.c.l.b16 %v114
  %v360 = vunpack.c.l.b16 %v115
  %v361 = vunpack.c.l.b16 %v116
  %v362 = vunpack.c.l.b16 %v117
  %v363 = vunpack.c.l.b16 %v118
  %v364 = vunpack.c.l.b16 %v119
  %v365 = vpack.c.b16 %v276, %v275
  %v366 = vpack.c.b16 %v278, %v277
  %v367 = vpack.c.b16 %v280, %v279
  %v368 = vpack.c.b16 %v282, %v281
  %v369 = vpack.c.b16 %v284, %v283
  %v370 = vpack.c.b16 %v286, %v285
  %v371 = vpack.c.b16 %v288, %v287
  %v372 = vpack.c.b16 %v290, %v289
  %v373 = vpack.c.b16 %v292, %v291
  %v374 = vpack.c.b16 %v294, %v293
  %v375 = vpack.c.b16 %v296, %v295
  %v376 = vpack.c.b16 %v298, %v297
  %v377 = vpack.c.b16 %v300, %v299
  %v378 = vpack.c.b16 %v302, %v301
  %v379 = vpack.c.b16 %v304, %v303
  %v380 = vpack.c.b16 %v306, %v305
  %v381 = vpack.c.b16 %v308, %v307
  %v382 = vpack.c.b16 %v310, %v309
  %v383 = vpack.c.b16 %v312, %v311
  %v384 = vpack.c.b16 %v314, %v313
  %v385 = vpack.c.b16 %v316, %v315
  %v386 = vpack.c.b16 %v318, %v317
  %v387 = vpack.c.b16 %v320, %v319
  %v388 = vpack.c.b16 %v322, %v321
  %v389 = vpack.c.b16 %v324, %v323
  %v390 = vpack.c.b16 %v326, %v325
  %v391 = vpack.c.b16 %v328, %v327
  %v392 = vpack.c.b16 %v330, %v329
  %v393 = vpack.c.b16 %v332, %v331
  %v394 = vpack.c.b16 %v334, %v333
  %v395 = vpack.c.b16 %v336, %v335
  %v396 = vpack.c.b16 %v338, %v337
  %v397 = vpack.c.b16 %v340, %v339
  %v398 = vpack.c.b16 %v342, %v341
  %v399 = vpack.c.b16 %v344, %v343
  %v400 = vpack.c.b16 %v346, %v345
  %v401 = vpack.c.b16 %v348, %v347
  %v402 = vpack.c.b16 %v350, %v349
  %v403 = vpack.c.b16 %v352, %v351
  %v404 = vpack.c.b16 %v354, %v353
  %v405 = vpack.c.b16 %v356, %v355
  %v406 = vpack.c.b16 %v358, %v357
  %v407 = vpack.c.b16 %v360, %v359
  %v408 = vpack.c.b16 %v362, %v361
  %v409 = vpack.c.b16 %v364, %v363
  %vm455 = vcmask 654336
  %v457 = vsel %vm455, %v168, 0
  %v460 = vsel %vm455, %v174, 0
  %462 = vmatprep.subr.bf16.mxu0 0
  %463 = vmatpush1.bf16.msra.mxu0 %v365
  %464 = vmatprep.subr.bf16.mxu0 0
  %465 = vmatpush1.bf16.msra.mxu0 %v366
  %466 = vmatprep.subr.bf16.mxu0 0
  %467 = vmatpush1.bf16.msra.mxu0 %v367
  %468 = vmatprep.subr.bf16.mxu0 0
  %469 = vmatpush1.bf16.msra.mxu0 %v368
  %470 = vmatprep.subr.bf16.mxu0 0
  %471 = vmatpush1.bf16.msra.mxu0 %v369
  %472 = vmatprep.subr.bf16.mxu0 0
  %473 = vmatpush1.bf16.msra.mxu0 %v370
  %474 = vmatprep.subr.bf16.mxu0 0
  %475 = vmatpush1.bf16.msra.mxu0 %v371
  %476 = vmatprep.subr.bf16.mxu0 0
  %477 = vmatpush1.bf16.msra.mxu0 %v372
  %478 = vmatprep.subr.bf16.mxu0 0
  %479 = vmatpush1.bf16.msra.mxu0 %v373
  %480 = vmatprep.subr.bf16.mxu0 0
  %481 = vmatpush1.bf16.msra.mxu0 %v374
  %482 = vmatprep.subr.bf16.mxu0 0
  %483 = vmatpush1.bf16.msra.mxu0 %v375
  %484 = vmatprep.subr.bf16.mxu0 0
  %485 = vmatpush1.bf16.msra.mxu0 %v376
  %486 = vmatprep.subr.bf16.mxu0 0
  %487 = vmatpush1.bf16.msra.mxu0 %v377
  %488 = vmatprep.subr.bf16.mxu0 0
  %489 = vmatpush1.bf16.msra.mxu0 %v378
  %490 = vmatprep.subr.bf16.mxu0 0
  %491 = vmatpush1.bf16.msra.mxu0 %v379
  %492 = vmatprep.subr.bf16.mxu0 0
  %493 = vmatpush1.bf16.msra.mxu0 %v380
  %494 = vmatprep.mubr.bf16.mxu0 %v164
  %495 = vmatmul.mubr.bf16.gmra.mrb[0].mxu0 %v163
  %v496 = vpop.f32.mrb[0].mxu0
  %v497 = vadd.f32 %v125, %v496
  %v498 = vpop.f32.mrb[0].mxu0
  %v499 = vpop.f32.mrb[0].mxu0
  %v500 = vadd.f32 %v125, %v499
  %v501 = vpop.f32.mrb[0].mxu0
  %502 = vmatprep.mubr.bf16.mxu0 %v170
  %503 = vmatmul.mubr.bf16.gmra.mrb[0].mxu0 %v169
  %v504 = vpop.f32.mrb[0].mxu0
  %v505 = vadd.f32 %v125, %v504
  %v506 = vpop.f32.mrb[0].mxu0
  %v507 = vpop.f32.mrb[0].mxu0
  %v508 = vadd.f32 %v125, %v507
  %v509 = vpop.f32.mrb[0].mxu0
  %510 = vdwg.mxu0
  %511 = vmatprep.subr.bf16.mxu0 0
  %512 = vmatpush1.bf16.msra.mxu0 %v381
  %513 = vmatprep.subr.bf16.mxu0 0
  %514 = vmatpush1.bf16.msra.mxu0 %v382
  %515 = vmatprep.subr.bf16.mxu0 0
  %516 = vmatpush1.bf16.msra.mxu0 %v383
  %517 = vmatprep.subr.bf16.mxu0 0
  %518 = vmatpush1.bf16.msra.mxu0 %v384
  %519 = vmatprep.subr.bf16.mxu0 0
  %520 = vmatpush1.bf16.msra.mxu0 %v385
  %521 = vmatprep.subr.bf16.mxu0 0
  %522 = vmatpush1.bf16.msra.mxu0 %v386
  %523 = vmatprep.subr.bf16.mxu0 0
  %524 = vmatpush1.bf16.msra.mxu0 %v387
  %525 = vmatprep.subr.bf16.mxu0 0
  %526 = vmatpush1.bf16.msra.mxu0 %v388
  %527 = vmatprep.subr.bf16.mxu0 0
  %528 = vmatpush1.bf16.msra.mxu0 %v389
  %529 = vmatprep.subr.bf16.mxu0 0
  %530 = vmatpush1.bf16.msra.mxu0 %v390
  %531 = vmatprep.subr.bf16.mxu0 0
  %532 = vmatpush1.bf16.msra.mxu0 %v391
  %533 = vmatprep.subr.bf16.mxu0 0
  %534 = vmatpush1.bf16.msra.mxu0 %v392
  %535 = vmatprep.subr.bf16.mxu0 0
  %536 = vmatpush1.bf16.msra.mxu0 %v393
  %537 = vmatprep.subr.bf16.mxu0 0
  %538 = vmatpush1.bf16.msra.mxu0 %v394
  %539 = vmatprep.subr.bf16.mxu0 0
  %540 = vmatpush1.bf16.msra.mxu0 %v395
  %541 = vmatprep.subr.bf16.mxu0 0
  %542 = vmatpush1.bf16.msra.mxu0 %v396
  %543 = vmatprep.mubr.bf16.mxu0 %v166
  %544 = vmatmul.mubr.bf16.gmra.mrb[0].mxu0 %v165
  %v545 = vpop.f32.mrb[0].mxu0
  %v546 = vadd.f32 %v497, %v545
  %v547 = vpop.f32.mrb[0].mxu0
  %v548 = vpop.f32.mrb[0].mxu0
  %v549 = vadd.f32 %v500, %v548
  %v550 = vpop.f32.mrb[0].mxu0
  %551 = vmatprep.mubr.bf16.mxu0 %v172
  %552 = vmatmul.mubr.bf16.gmra.mrb[0].mxu0 %v171
  %v553 = vpop.f32.mrb[0].mxu0
  %v554 = vadd.f32 %v505, %v553
  %v555 = vpop.f32.mrb[0].mxu0
  %v556 = vpop.f32.mrb[0].mxu0
  %v557 = vadd.f32 %v508, %v556
  %v558 = vpop.f32.mrb[0].mxu0
  %559 = vdwg.mxu0
  %560 = vmatprep.subr.bf16.mxu0 0
  %561 = vmatpush1.bf16.msra.mxu0 %v397
  %562 = vmatprep.subr.bf16.mxu0 0
  %563 = vmatpush1.bf16.msra.mxu0 %v398
  %564 = vmatprep.subr.bf16.mxu0 0
  %565 = vmatpush1.bf16.msra.mxu0 %v399
  %566 = vmatprep.subr.bf16.mxu0 0
  %567 = vmatpush1.bf16.msra.mxu0 %v400
  %568 = vmatprep.subr.bf16.mxu0 0
  %569 = vmatpush1.bf16.msra.mxu0 %v401
  %570 = vmatprep.subr.bf16.mxu0 0
  %571 = vmatpush1.bf16.msra.mxu0 %v402
  %572 = vmatprep.subr.bf16.mxu0 0
  %573 = vmatpush1.bf16.msra.mxu0 %v403
  %574 = vmatprep.subr.bf16.mxu0 0
  %575 = vmatpush1.bf16.msra.mxu0 %v404
  %576 = vmatprep.subr.bf16.mxu0 0
  %577 = vmatpush1.bf16.msra.mxu0 %v405
  %578 = vmatprep.subr.bf16.mxu0 0
  %579 = vmatpush1.bf16.msra.mxu0 %v406
  %580 = vmatprep.subr.bf16.mxu0 0
  %581 = vmatpush1.bf16.msra.mxu0 %v407
  %582 = vmatprep.subr.bf16.mxu0 0
  %583 = vmatpush1.bf16.msra.mxu0 %v408
  %584 = vmatprep.subr.bf16.mxu0 0
  %585 = vmatpush1.bf16.msra.mxu0 %v409
  %586 = vmatprep.subr.bf16.mxu0 0
  %587 = vmatpush1.bf16.msra.mxu0 0
  %588 = vmatprep.subr.bf16.mxu0 0
  %589 = vmatpush1.bf16.msra.mxu0 0
  %590 = vmatprep.subr.bf16.mxu0 0
  %591 = vmatpush1.bf16.msra.mxu0 0
  %592 = vmatprep.mubr.bf16.mxu0 %v457
  %593 = vmatmul.mubr.bf16.gmra.mrb[0].mxu0 %v167
  %v594 = vpop.f32.mrb[0].mxu0
  %v595 = vadd.f32 %v546, %v594
  %v596 = vpop.f32.mrb[0].mxu0
  %v597 = vpop.f32.mrb[0].mxu0
  %v598 = vadd.f32 %v549, %v597
  %v599 = vpop.f32.mrb[0].mxu0
  %600 = vmatprep.mubr.bf16.mxu0 %v460
  %601 = vmatmul.mubr.bf16.gmra.mrb[0].mxu0 %v173
  %v602 = vpop.f32.mrb[0].mxu0
  %v603 = vadd.f32 %v554, %v602
  %v604 = vpop.f32.mrb[0].mxu0
  %v605 = vpop.f32.mrb[0].mxu0
  %v606 = vadd.f32 %v557, %v605
  %v607 = vpop.f32.mrb[0].mxu0
  %608 = vdwg.mxu0
  %v609 = vld [vmem:[%s3] sm:$0xf]
  %v610 = vld [vmem:[%s3 + $0x4] sm:$0xf]
  %v611 = vld [vmem:[%s3 + $0x8] sm:$0xf]
  %v612 = vld [vmem:[%s3 + $0xc] sm:$0xf]
  %v613 = vunpack.c.l.bf16 %v609
  %v614 = vunpack.c.l.bf16 %v610
  %v615 = vunpack.c.l.bf16 %v611
  %v616 = vunpack.c.l.bf16 %v612
  %v617 = vadd.f32 %v595, %v613
  %v618 = vadd.f32 %v598, %v614
  %v619 = vadd.f32 %v603, %v615
  %v620 = vadd.f32 %v606, %v616
  %v621 = vpack.c.bf16 %v618, %v617
  %v622 = vpack.c.bf16 %v620, %v619
  %v625 = vunpack.c.l.b16 %v621
  %v626 = vunpack.c.h.b16 %v621
  %v627 = vunpack.c.l.b16 %v622
  %v628 = vunpack.c.h.b16 %v622
  %v629 = vpack.c.b16 %v625, %v625
  %v630 = vpack.c.b16 %v626, %v626
  %v631 = vpack.c.b16 %v627, %v627
  %v632 = vpack.c.b16 %v628, %v628
  %637 = vst [vmem:[%s4] sm:$0xf] %v629
  %638 = vst [vmem:[%s4 + $0x4] sm:$0xf] %v630
  %639 = vst [vmem:[%s4 + $0x8] sm:$0xf] %v631
  %640 = vst [vmem:[%s4 + $0xc] sm:$0xf] %v632
  // Predicated region
  $region18: #{rnncell_forward.23} parent=0 // pred_check
    _
  $region19: #{rnncell_forward.23} parent=0 // pred_check_branch
    %642 = sbr.rel (0) target = $region21
  $region20: #{rnncell_forward.23} parent=0 // pred_region
    _
  $region21: #{rnncell_forward.23} parent=0 // pred_fallthru
    _
  // Predicated region
  $region22: #{rnncell_forward.23} parent=0 // pred_check
    _
  $region23: #{rnncell_forward.23} parent=0 // pred_check_branch
    %644 = sbr.rel (0) target = $region25
  $region24: #{rnncell_forward.23} parent=0 // pred_region
    _
  $region25: #{rnncell_forward.23} parent=0 // pred_fallthru
    _

// kernel: rnncell_forward.35
$region0: #{rnncell_forward.35}
  #allocation0 [shape = 'u32[]', space=smem, size = 0x4, offset = 0x4, fixed_abs, tag = 'smem constant byte address 0x4 - core index']
  #allocation1 [shape = 'u32[144,128]{1,0:T(1,128)}', space=vmem, size = 0x12000, scoped, tag = 'internal scratch']
  %s0 = inlined_call_operand.vmem [shape: bf16[32,180], index: 0, kind: input, shape index: {}]
  %s1 = inlined_call_operand.vmem [shape: bf16[180,128], index: 1, kind: input, shape index: {}]
  %s2 = inlined_call_operand.vmem [shape: f32[1,128], index: 2, kind: input, shape index: {}]
  %s3 = inlined_call_operand.vmem [shape: bf16[32,128], index: 3, kind: output, shape index: {}]
  %s4 = sld [smem:[#allocation0]]
  $region22: #{rnncell_forward.35} parent=0
    _
  %s6 = ssub.s32 1, %s4
  %s7 = scalar_select 0, %s6, %s4
  // Predicated region
  $region2: #{rnncell_forward.35} parent=0 // pred_check
    _
  $region3: #{rnncell_forward.35} parent=0 // pred_check_branch
    %9 = sbr.rel (0) target = $region5
  $region4: #{rnncell_forward.35} parent=0 // pred_region
    _
  $region5: #{rnncell_forward.35} parent=0 // pred_fallthru
    _
  // Predicated region
  $region6: #{rnncell_forward.35} parent=0 // pred_check
    _
  $region7: #{rnncell_forward.35} parent=0 // pred_check_branch
    %11 = sbr.rel (0) target = $region9
  $region8: #{rnncell_forward.35} parent=0 // pred_region
    _
  $region9: #{rnncell_forward.35} parent=0 // pred_fallthru
    _
  // Predicated region
  $region10: #{rnncell_forward.35} parent=0 // pred_check
    _
  $region11: #{rnncell_forward.35} parent=0 // pred_check_branch
    %13 = sbr.rel (0) target = $region13
  $region12: #{rnncell_forward.35} parent=0 // pred_region
    _
  $region13: #{rnncell_forward.35} parent=0 // pred_fallthru
    _
  %v15 = vld [vmem:[%s0] sm:$0xff]
  %v16 = vld [vmem:[%s0 + $0x8] sm:$0xff]
  %v17 = vld [vmem:[%s0 + $0x10] sm:$0xff]
  %v18 = vld [vmem:[%s0 + $0x18] sm:$0xff]
  %v19 = vld [vmem:[%s1] sm:$0xf]
  %v20 = vld [vmem:[%s1 + $0x4] sm:$0xf]
  %v21 = vld [vmem:[%s1 + $0x8] sm:$0xf]
  %v22 = vld [vmem:[%s1 + $0xc] sm:$0xf]
  %v23 = vld [vmem:[%s1 + $0x10] sm:$0xf]
  %v24 = vld [vmem:[%s1 + $0x14] sm:$0xf]
  %v25 = vld [vmem:[%s1 + $0x18] sm:$0xf]
  %v26 = vld [vmem:[%s1 + $0x1c] sm:$0xf]
  %v27 = vld [vmem:[%s1 + $0x20] sm:$0xf]
  %v28 = vld [vmem:[%s1 + $0x24] sm:$0xf]
  %v29 = vld [vmem:[%s1 + $0x28] sm:$0xf]
  %v30 = vld [vmem:[%s1 + $0x2c] sm:$0xf]
  %v31 = vld [vmem:[%s1 + $0x30] sm:$0xf]
  %v32 = vld [vmem:[%s1 + $0x34] sm:$0xf]
  %v33 = vld [vmem:[%s1 + $0x38] sm:$0xf]
  %v34 = vld [vmem:[%s1 + $0x3c] sm:$0xf]
  %v35 = vld [vmem:[%s1 + $0x40] sm:$0xf]
  %v36 = vld [vmem:[%s1 + $0x44] sm:$0xf]
  %v37 = vld [vmem:[%s1 + $0x48] sm:$0xf]
  %v38 = vld [vmem:[%s1 + $0x4c] sm:$0xf]
  %v39 = vld [vmem:[%s1 + $0x50] sm:$0xf]
  %v40 = vld [vmem:[%s1 + $0x54] sm:$0xf]
  %v41 = vld [vmem:[%s1 + $0x58] sm:$0x3]
  %v42 = vld [vmem:[%s2] sm:$0x1]
  %v44 = vlaneseq
  %v45 = vshrl.u32 %v44, 7
  %v46 = vsub.s32 0, %v45
  %v47 = vrot.slane %v42, %v46
  %v53 = vunpack.c.l.b16 %v15
  %v54 = vunpack.c.h.b16 %v15
  %v55 = vunpack.c.l.b16 %v16
  %v56 = vunpack.c.h.b16 %v16
  %v57 = vunpack.c.l.b16 %v17
  %v58 = vunpack.c.h.b16 %v17
  %v59 = vunpack.c.l.b16 %v18
  %v60 = vunpack.c.h.b16 %v18
  %v61 = vpack.c.b16 %v55, %v53
  %v62 = vpack.c.b16 %v56, %v54
  %v63 = vpack.c.b16 %v59, %v57
  %v64 = vpack.c.b16 %v60, %v58
  %v90 = vunpack.c.l.b16 %v19
  %v91 = vunpack.c.l.b16 %v20
  %v92 = vunpack.c.l.b16 %v21
  %v93 = vunpack.c.l.b16 %v22
  %v94 = vunpack.c.l.b16 %v23
  %v95 = vunpack.c.l.b16 %v24
  %v96 = vunpack.c.l.b16 %v25
  %v97 = vunpack.c.l.b16 %v26
  %v98 = vunpack.c.l.b16 %v27
  %v99 = vunpack.c.l.b16 %v28
  %v100 = vunpack.c.l.b16 %v29
  %v101 = vunpack.c.l.b16 %v30
  %v102 = vunpack.c.l.b16 %v31
  %v103 = vunpack.c.l.b16 %v32
  %v104 = vunpack.c.l.b16 %v33
  %v105 = vunpack.c.l.b16 %v34
  %v106 = vunpack.c.l.b16 %v35
  %v107 = vunpack.c.l.b16 %v36
  %v108 = vunpack.c.l.b16 %v37
  %v109 = vunpack.c.l.b16 %v38
  %v110 = vunpack.c.l.b16 %v39
  %v111 = vunpack.c.l.b16 %v40
  %v112 = vunpack.c.l.b16 %v41
  %v113 = vpack.c.b16 %v91, %v90
  %v114 = vpack.c.b16 %v93, %v92
  %v115 = vpack.c.b16 %v95, %v94
  %v116 = vpack.c.b16 %v97, %v96
  %v117 = vpack.c.b16 %v99, %v98
  %v118 = vpack.c.b16 %v101, %v100
  %v119 = vpack.c.b16 %v103, %v102
  %v120 = vpack.c.b16 %v105, %v104
  %v121 = vpack.c.b16 %v107, %v106
  %v122 = vpack.c.b16 %v109, %v108
  %v123 = vpack.c.b16 %v111, %v110
  %v124 = vpack.c.b16 %v112, %v112
  %vm136 = vcmask 424960
  %v138 = vsel %vm136, %v62, 0
  %v141 = vsel %vm136, %v64, 0
  %vm143 = vcmask 1041408
  %v145 = vsel %vm143, %v124, 0
  %147 = vmatprep.subr.bf16.mxu0 0
  %148 = vmatpush1.bf16.msra.mxu0 %v113
  %149 = vmatprep.subr.bf16.mxu0 0
  %150 = vmatpush1.bf16.msra.mxu0 %v114
  %151 = vmatprep.subr.bf16.mxu0 0
  %152 = vmatpush1.bf16.msra.mxu0 %v115
  %153 = vmatprep.subr.bf16.mxu0 0
  %154 = vmatpush1.bf16.msra.mxu0 %v116
  %155 = vmatprep.subr.bf16.mxu0 0
  %156 = vmatpush1.bf16.msra.mxu0 %v117
  %157 = vmatprep.subr.bf16.mxu0 0
  %158 = vmatpush1.bf16.msra.mxu0 %v118
  %159 = vmatprep.subr.bf16.mxu0 0
  %160 = vmatpush1.bf16.msra.mxu0 %v119
  %161 = vmatprep.subr.bf16.mxu0 0
  %162 = vmatpush1.bf16.msra.mxu0 %v120
  %163 = vmatprep.subr.bf16.mxu0 0
  %164 = vmatpush1.bf16.msra.mxu0 %v121
  %165 = vmatprep.subr.bf16.mxu0 0
  %166 = vmatpush1.bf16.msra.mxu0 %v122
  %167 = vmatprep.subr.bf16.mxu0 0
  %168 = vmatpush1.bf16.msra.mxu0 %v123
  %169 = vmatprep.subr.bf16.mxu0 0
  %170 = vmatpush1.bf16.msra.mxu0 %v145
  %171 = vmatprep.subr.bf16.mxu0 0
  %172 = vmatpush1.bf16.msra.mxu0 0
  %173 = vmatprep.subr.bf16.mxu0 0
  %174 = vmatpush1.bf16.msra.mxu0 0
  %175 = vmatprep.subr.bf16.mxu0 0
  %176 = vmatpush1.bf16.msra.mxu0 0
  %177 = vmatprep.subr.bf16.mxu0 0
  %178 = vmatpush1.bf16.msra.mxu0 0
  %179 = vmatprep.mubr.bf16.mxu0 %v138
  %180 = vmatmul.mubr.bf16.gmra.mrb[0].mxu0 %v61
  %v181 = vpop.f32.mrb[0].mxu0
  %v182 = vadd.f32 %v47, %v181
  %v183 = vpop.f32.mrb[0].mxu0
  %v184 = vpop.f32.mrb[0].mxu0
  %v185 = vadd.f32 %v47, %v184
  %v186 = vpop.f32.mrb[0].mxu0
  %187 = vmatprep.mubr.bf16.mxu0 %v141
  %188 = vmatmul.mubr.bf16.gmra.mrb[0].mxu0 %v63
  %v189 = vpop.f32.mrb[0].mxu0
  %v190 = vadd.f32 %v47, %v189
  %v191 = vpop.f32.mrb[0].mxu0
  %v192 = vpop.f32.mrb[0].mxu0
  %v193 = vadd.f32 %v47, %v192
  %v194 = vpop.f32.mrb[0].mxu0
  %195 = vdwg.mxu0
  %v196 = vmax.f32 %v182, 0.0
  %v197 = vmax.f32 %v185, 0.0
  %v198 = vmax.f32 %v190, 0.0
  %v199 = vmax.f32 %v193, 0.0
  %v200 = vpack.c.bf16 %v197, %v196
  %v201 = vpack.c.bf16 %v199, %v198
  %v204 = vunpack.c.l.b16 %v200
  %v205 = vunpack.c.h.b16 %v200
  %v206 = vunpack.c.l.b16 %v201
  %v207 = vunpack.c.h.b16 %v201
  %v208 = vpack.c.b16 %v204, %v204
  %v209 = vpack.c.b16 %v205, %v205
  %v210 = vpack.c.b16 %v206, %v206
  %v211 = vpack.c.b16 %v207, %v207
  %216 = vst [vmem:[%s3] sm:$0xf] %v208
  %217 = vst [vmem:[%s3 + $0x4] sm:$0xf] %v209
  %218 = vst [vmem:[%s3 + $0x8] sm:$0xf] %v210
  %219 = vst [vmem:[%s3 + $0xc] sm:$0xf] %v211
  // Predicated region
  $region14: #{rnncell_forward.35} parent=0 // pred_check
    _
  $region15: #{rnncell_forward.35} parent=0 // pred_check_branch
    %221 = sbr.rel (0) target = $region17
  $region16: #{rnncell_forward.35} parent=0 // pred_region
    _
  $region17: #{rnncell_forward.35} parent=0 // pred_fallthru
    _
  // Predicated region
  $region18: #{rnncell_forward.35} parent=0 // pred_check
    _
  $region19: #{rnncell_forward.35} parent=0 // pred_check_branch
    %223 = sbr.rel (0) target = $region21
  $region20: #{rnncell_forward.35} parent=0 // pred_region
    _
  $region21: #{rnncell_forward.35} parent=0 // pred_fallthru
    _

// kernel: rnncell_forward.34
$region0: #{rnncell_forward.34}
  #allocation0 [shape = 'u32[]', space=smem, size = 0x4, offset = 0x4, fixed_abs, tag = 'smem constant byte address 0x4 - core index']
  #allocation1 [shape = 'u32[144,128]{1,0:T(1,128)}', space=vmem, size = 0x12000, scoped, tag = 'internal scratch']
  %s0 = inlined_call_operand.vmem [shape: bf16[32,720], index: 0, kind: input, shape index: {}]
  %s1 = inlined_call_operand.vmem [shape: bf16[720,128], index: 1, kind: input, shape index: {}]
  %s2 = inlined_call_operand.vmem [shape: f32[1,128], index: 2, kind: input, shape index: {}]
  %s3 = inlined_call_operand.vmem [shape: bf16[32,128], index: 3, kind: output, shape index: {}]
  %s4 = sld [smem:[#allocation0]]
  $region22: #{rnncell_forward.34} parent=0
    _
  %s6 = ssub.s32 1, %s4
  %s7 = scalar_select 0, %s6, %s4
  // Predicated region
  $region2: #{rnncell_forward.34} parent=0 // pred_check
    _
  $region3: #{rnncell_forward.34} parent=0 // pred_check_branch
    %9 = sbr.rel (0) target = $region5
  $region4: #{rnncell_forward.34} parent=0 // pred_region
    _
  $region5: #{rnncell_forward.34} parent=0 // pred_fallthru
    _
  // Predicated region
  $region6: #{rnncell_forward.34} parent=0 // pred_check
    _
  $region7: #{rnncell_forward.34} parent=0 // pred_check_branch
    %11 = sbr.rel (0) target = $region9
  $region8: #{rnncell_forward.34} parent=0 // pred_region
    _
  $region9: #{rnncell_forward.34} parent=0 // pred_fallthru
    _
  // Predicated region
  $region10: #{rnncell_forward.34} parent=0 // pred_check
    _
  $region11: #{rnncell_forward.34} parent=0 // pred_check_branch
    %13 = sbr.rel (0) target = $region13
  $region12: #{rnncell_forward.34} parent=0 // pred_region
    _
  $region13: #{rnncell_forward.34} parent=0 // pred_fallthru
    _
  %v15 = vld [vmem:[%s0] sm:$0xff]
  %v16 = vld [vmem:[%s0 + $0x8] sm:$0xff]
  %v17 = vld [vmem:[%s0 + $0x10] sm:$0xff]
  %v18 = vld [vmem:[%s0 + $0x18] sm:$0xff]
  %v19 = vld [vmem:[%s0 + $0x20] sm:$0xff]
  %v20 = vld [vmem:[%s0 + $0x28] sm:$0xff]
  %v21 = vld [vmem:[%s0 + $0x30] sm:$0xff]
  %v22 = vld [vmem:[%s0 + $0x38] sm:$0xff]
  %v23 = vld [vmem:[%s0 + $0x40] sm:$0xff]
  %v24 = vld [vmem:[%s0 + $0x48] sm:$0xff]
  %v25 = vld [vmem:[%s0 + $0x50] sm:$0xff]
  %v26 = vld [vmem:[%s0 + $0x58] sm:$0xff]
  %v27 = vld [vmem:[%s1] sm:$0xf]
  %v28 = vld [vmem:[%s1 + $0x4] sm:$0xf]
  %v29 = vld [vmem:[%s1 + $0x8] sm:$0xf]
  %v30 = vld [vmem:[%s1 + $0xc] sm:$0xf]
  %v31 = vld [vmem:[%s1 + $0x10] sm:$0xf]
  %v32 = vld [vmem:[%s1 + $0x14] sm:$0xf]
  %v33 = vld [vmem:[%s1 + $0x18] sm:$0xf]
  %v34 = vld [vmem:[%s1 + $0x1c] sm:$0xf]
  %v35 = vld [vmem:[%s1 + $0x20] sm:$0xf]
  %v36 = vld [vmem:[%s1 + $0x24] sm:$0xf]
  %v37 = vld [vmem:[%s1 + $0x28] sm:$0xf]
  %v38 = vld [vmem:[%s1 + $0x2c] sm:$0xf]
  %v39 = vld [vmem:[%s1 + $0x30] sm:$0xf]
  %v40 = vld [vmem:[%s1 + $0x34] sm:$0xf]
  %v41 = vld [vmem:[%s1 + $0x38] sm:$0xf]
  %v42 = vld [vmem:[%s1 + $0x3c] sm:$0xf]
  %v43 = vld [vmem:[%s1 + $0x40] sm:$0xf]
  %v44 = vld [vmem:[%s1 + $0x44] sm:$0xf]
  %v45 = vld [vmem:[%s1 + $0x48] sm:$0xf]
  %v46 = vld [vmem:[%s1 + $0x4c] sm:$0xf]
  %v47 = vld [vmem:[%s1 + $0x50] sm:$0xf]
  %v48 = vld [vmem:[%s1 + $0x54] sm:$0xf]
  %v49 = vld [vmem:[%s1 + $0x58] sm:$0xf]
  %v50 = vld [vmem:[%s1 + $0x5c] sm:$0xf]
  %v51 = vld [vmem:[%s1 + $0x60] sm:$0xf]
  %v52 = vld [vmem:[%s1 + $0x64] sm:$0xf]
  %v53 = vld [vmem:[%s1 + $0x68] sm:$0xf]
  %v54 = vld [vmem:[%s1 + $0x6c] sm:$0xf]
  %v55 = vld [vmem:[%s1 + $0x70] sm:$0xf]
  %v56 = vld [vmem:[%s1 + $0x74] sm:$0xf]
  %v57 = vld [vmem:[%s1 + $0x78] sm:$0xf]
  %v58 = vld [vmem:[%s1 + $0x7c] sm:$0xf]
  %v59 = vld [vmem:[%s1 + $0x80] sm:$0xf]
  %v60 = vld [vmem:[%s1 + $0x84] sm:$0xf]
  %v61 = vld [vmem:[%s1 + $0x88] sm:$0xf]
  %v62 = vld [vmem:[%s1 + $0x8c] sm:$0xf]
  %v63 = vld [vmem:[%s1 + $0x90] sm:$0xf]
  %v64 = vld [vmem:[%s1 + $0x94] sm:$0xf]
  %v65 = vld [vmem:[%s1 + $0x98] sm:$0xf]
  %v66 = vld [vmem:[%s1 + $0x9c] sm:$0xf]
  %v67 = vld [vmem:[%s1 + $0xa0] sm:$0xf]
  %v68 = vld [vmem:[%s1 + $0xa4] sm:$0xf]
  %v69 = vld [vmem:[%s1 + $0xa8] sm:$0xf]
  %v70 = vld [vmem:[%s1 + $0xac] sm:$0xf]
  %v71 = vld [vmem:[%s1 + $0xb0] sm:$0xf]
  %v72 = vld [vmem:[%s1 + $0xb4] sm:$0xf]
  %v73 = vld [vmem:[%s1 + $0xb8] sm:$0xf]
  %v74 = vld [vmem:[%s1 + $0xbc] sm:$0xf]
  %v75 = vld [vmem:[%s1 + $0xc0] sm:$0xf]
  %v76 = vld [vmem:[%s1 + $0xc4] sm:$0xf]
  %v77 = vld [vmem:[%s1 + $0xc8] sm:$0xf]
  %v78 = vld [vmem:[%s1 + $0xcc] sm:$0xf]
  %v79 = vld [vmem:[%s1 + $0xd0] sm:$0xf]
  %v80 = vld [vmem:[%s1 + $0xd4] sm:$0xf]
  %v81 = vld [vmem:[%s1 + $0xd8] sm:$0xf]
  %v82 = vld [vmem:[%s1 + $0xdc] sm:$0xf]
  %v83 = vld [vmem:[%s1 + $0xe0] sm:$0xf]
  %v84 = vld [vmem:[%s1 + $0xe4] sm:$0xf]
  %v85 = vld [vmem:[%s1 + $0xe8] sm:$0xf]
  %v86 = vld [vmem:[%s1 + $0xec] sm:$0xf]
  %v87 = vld [vmem:[%s1 + $0xf0] sm:$0xf]
  %v88 = vld [vmem:[%s1 + $0xf4] sm:$0xf]
  %v89 = vld [vmem:[%s1 + $0xf8] sm:$0xf]
  %v90 = vld [vmem:[%s1 + $0xfc] sm:$0xf]
  %v91 = vld [vmem:[%s1 + $0x100] sm:$0xf]
  %v92 = vld [vmem:[%s1 + $0x104] sm:$0xf]
  %v93 = vld [vmem:[%s1 + $0x108] sm:$0xf]
  %v94 = vld [vmem:[%s1 + $0x10c] sm:$0xf]
  %v95 = vld [vmem:[%s1 + $0x110] sm:$0xf]
  %v96 = vld [vmem:[%s1 + $0x114] sm:$0xf]
  %v97 = vld [vmem:[%s1 + $0x118] sm:$0xf]
  %v98 = vld [vmem:[%s1 + $0x11c] sm:$0xf]
  %v99 = vld [vmem:[%s1 + $0x120] sm:$0xf]
  %v100 = vld [vmem:[%s1 + $0x124] sm:$0xf]
  %v101 = vld [vmem:[%s1 + $0x128] sm:$0xf]
  %v102 = vld [vmem:[%s1 + $0x12c] sm:$0xf]
  %v103 = vld [vmem:[%s1 + $0x130] sm:$0xf]
  %v104 = vld [vmem:[%s1 + $0x134] sm:$0xf]
  %v105 = vld [vmem:[%s1 + $0x138] sm:$0xf]
  %v106 = vld [vmem:[%s1 + $0x13c] sm:$0xf]
  %v107 = vld [vmem:[%s1 + $0x140] sm:$0xf]
  %v108 = vld [vmem:[%s1 + $0x144] sm:$0xf]
  %v109 = vld [vmem:[%s1 + $0x148] sm:$0xf]
  %v110 = vld [vmem:[%s1 + $0x14c] sm:$0xf]
  %v111 = vld [vmem:[%s1 + $0x150] sm:$0xf]
  %v112 = vld [vmem:[%s1 + $0x154] sm:$0xf]
  %v113 = vld [vmem:[%s1 + $0x158] sm:$0xf]
  %v114 = vld [vmem:[%s1 + $0x15c] sm:$0xf]
  %v115 = vld [vmem:[%s1 + $0x160] sm:$0xf]
  %v116 = vld [vmem:[%s1 + $0x164] sm:$0xf]
  %v117 = vld [vmem:[%s2] sm:$0x1]
  %v119 = vlaneseq
  %v120 = vshrl.u32 %v119, 7
  %v121 = vsub.s32 0, %v120
  %v122 = vrot.slane %v117, %v121
  %v136 = vunpack.c.l.b16 %v15
  %v137 = vunpack.c.h.b16 %v15
  %v138 = vunpack.c.l.b16 %v16
  %v139 = vunpack.c.h.b16 %v16
  %v140 = vunpack.c.l.b16 %v17
  %v141 = vunpack.c.h.b16 %v17
  %v142 = vunpack.c.l.b16 %v18
  %v143 = vunpack.c.h.b16 %v18
  %v144 = vunpack.c.l.b16 %v19
  %v145 = vunpack.c.h.b16 %v19
  %v146 = vunpack.c.l.b16 %v20
  %v147 = vunpack.c.h.b16 %v20
  %v148 = vunpack.c.l.b16 %v21
  %v149 = vunpack.c.h.b16 %v21
  %v150 = vunpack.c.l.b16 %v22
  %v151 = vunpack.c.h.b16 %v22
  %v152 = vunpack.c.l.b16 %v23
  %v153 = vunpack.c.h.b16 %v23
  %v154 = vunpack.c.l.b16 %v24
  %v155 = vunpack.c.h.b16 %v24
  %v156 = vunpack.c.l.b16 %v25
  %v157 = vunpack.c.h.b16 %v25
  %v158 = vunpack.c.l.b16 %v26
  %v159 = vunpack.c.h.b16 %v26
  %v160 = vpack.c.b16 %v142, %v136
  %v161 = vpack.c.b16 %v143, %v137
  %v162 = vpack.c.b16 %v144, %v138
  %v163 = vpack.c.b16 %v145, %v139
  %v164 = vpack.c.b16 %v146, %v140
  %v165 = vpack.c.b16 %v147, %v141
  %v166 = vpack.c.b16 %v154, %v148
  %v167 = vpack.c.b16 %v155, %v149
  %v168 = vpack.c.b16 %v156, %v150
  %v169 = vpack.c.b16 %v157, %v151
  %v170 = vpack.c.b16 %v158, %v152
  %v171 = vpack.c.b16 %v159, %v153
  %v272 = vunpack.c.l.b16 %v27
  %v273 = vunpack.c.l.b16 %v28
  %v274 = vunpack.c.l.b16 %v29
  %v275 = vunpack.c.l.b16 %v30
  %v276 = vunpack.c.l.b16 %v31
  %v277 = vunpack.c.l.b16 %v32
  %v278 = vunpack.c.l.b16 %v33
  %v279 = vunpack.c.l.b16 %v34
  %v280 = vunpack.c.l.b16 %v35
  %v281 = vunpack.c.l.b16 %v36
  %v282 = vunpack.c.l.b16 %v37
  %v283 = vunpack.c.l.b16 %v38
  %v284 = vunpack.c.l.b16 %v39
  %v285 = vunpack.c.l.b16 %v40
  %v286 = vunpack.c.l.b16 %v41
  %v287 = vunpack.c.l.b16 %v42
  %v288 = vunpack.c.l.b16 %v43
  %v289 = vunpack.c.l.b16 %v44
  %v290 = vunpack.c.l.b16 %v45
  %v291 = vunpack.c.l.b16 %v46
  %v292 = vunpack.c.l.b16 %v47
  %v293 = vunpack.c.l.b16 %v48
  %v294 = vunpack.c.l.b16 %v49
  %v295 = vunpack.c.l.b16 %v50
  %v296 = vunpack.c.l.b16 %v51
  %v297 = vunpack.c.l.b16 %v52
  %v298 = vunpack.c.l.b16 %v53
  %v299 = vunpack.c.l.b16 %v54
  %v300 = vunpack.c.l.b16 %v55
  %v301 = vunpack.c.l.b16 %v56
  %v302 = vunpack.c.l.b16 %v57
  %v303 = vunpack.c.l.b16 %v58
  %v304 = vunpack.c.l.b16 %v59
  %v305 = vunpack.c.l.b16 %v60
  %v306 = vunpack.c.l.b16 %v61
  %v307 = vunpack.c.l.b16 %v62
  %v308 = vunpack.c.l.b16 %v63
  %v309 = vunpack.c.l.b16 %v64
  %v310 = vunpack.c.l.b16 %v65
  %v311 = vunpack.c.l.b16 %v66
  %v312 = vunpack.c.l.b16 %v67
  %v313 = vunpack.c.l.b16 %v68
  %v314 = vunpack.c.l.b16 %v69
  %v315 = vunpack.c.l.b16 %v70
  %v316 = vunpack.c.l.b16 %v71
  %v317 = vunpack.c.l.b16 %v72
  %v318 = vunpack.c.l.b16 %v73
  %v319 = vunpack.c.l.b16 %v74
  %v320 = vunpack.c.l.b16 %v75
  %v321 = vunpack.c.l.b16 %v76
  %v322 = vunpack.c.l.b16 %v77
  %v323 = vunpack.c.l.b16 %v78
  %v324 = vunpack.c.l.b16 %v79
  %v325 = vunpack.c.l.b16 %v80
  %v326 = vunpack.c.l.b16 %v81
  %v327 = vunpack.c.l.b16 %v82
  %v328 = vunpack.c.l.b16 %v83
  %v329 = vunpack.c.l.b16 %v84
  %v330 = vunpack.c.l.b16 %v85
  %v331 = vunpack.c.l.b16 %v86
  %v332 = vunpack.c.l.b16 %v87
  %v333 = vunpack.c.l.b16 %v88
  %v334 = vunpack.c.l.b16 %v89
  %v335 = vunpack.c.l.b16 %v90
  %v336 = vunpack.c.l.b16 %v91
  %v337 = vunpack.c.l.b16 %v92
  %v338 = vunpack.c.l.b16 %v93
  %v339 = vunpack.c.l.b16 %v94
  %v340 = vunpack.c.l.b16 %v95
  %v341 = vunpack.c.l.b16 %v96
  %v342 = vunpack.c.l.b16 %v97
  %v343 = vunpack.c.l.b16 %v98
  %v344 = vunpack.c.l.b16 %v99
  %v345 = vunpack.c.l.b16 %v100
  %v346 = vunpack.c.l.b16 %v101
  %v347 = vunpack.c.l.b16 %v102
  %v348 = vunpack.c.l.b16 %v103
  %v349 = vunpack.c.l.b16 %v104
  %v350 = vunpack.c.l.b16 %v105
  %v351 = vunpack.c.l.b16 %v106
  %v352 = vunpack.c.l.b16 %v107
  %v353 = vunpack.c.l.b16 %v108
  %v354 = vunpack.c.l.b16 %v109
  %v355 = vunpack.c.l.b16 %v110
  %v356 = vunpack.c.l.b16 %v111
  %v357 = vunpack.c.l.b16 %v112
  %v358 = vunpack.c.l.b16 %v113
  %v359 = vunpack.c.l.b16 %v114
  %v360 = vunpack.c.l.b16 %v115
  %v361 = vunpack.c.l.b16 %v116
  %v362 = vpack.c.b16 %v273, %v272
  %v363 = vpack.c.b16 %v275, %v274
  %v364 = vpack.c.b16 %v277, %v276
  %v365 = vpack.c.b16 %v279, %v278
  %v366 = vpack.c.b16 %v281, %v280
  %v367 = vpack.c.b16 %v283, %v282
  %v368 = vpack.c.b16 %v285, %v284
  %v369 = vpack.c.b16 %v287, %v286
  %v370 = vpack.c.b16 %v289, %v288
  %v371 = vpack.c.b16 %v291, %v290
  %v372 = vpack.c.b16 %v293, %v292
  %v373 = vpack.c.b16 %v295, %v294
  %v374 = vpack.c.b16 %v297, %v296
  %v375 = vpack.c.b16 %v299, %v298
  %v376 = vpack.c.b16 %v301, %v300
  %v377 = vpack.c.b16 %v303, %v302
  %v378 = vpack.c.b16 %v305, %v304
  %v379 = vpack.c.b16 %v307, %v306
  %v380 = vpack.c.b16 %v309, %v308
  %v381 = vpack.c.b16 %v311, %v310
  %v382 = vpack.c.b16 %v313, %v312
  %v383 = vpack.c.b16 %v315, %v314
  %v384 = vpack.c.b16 %v317, %v316
  %v385 = vpack.c.b16 %v319, %v318
  %v386 = vpack.c.b16 %v321, %v320
  %v387 = vpack.c.b16 %v323, %v322
  %v388 = vpack.c.b16 %v325, %v324
  %v389 = vpack.c.b16 %v327, %v326
  %v390 = vpack.c.b16 %v329, %v328
  %v391 = vpack.c.b16 %v331, %v330
  %v392 = vpack.c.b16 %v333, %v332
  %v393 = vpack.c.b16 %v335, %v334
  %v394 = vpack.c.b16 %v337, %v336
  %v395 = vpack.c.b16 %v339, %v338
  %v396 = vpack.c.b16 %v341, %v340
  %v397 = vpack.c.b16 %v343, %v342
  %v398 = vpack.c.b16 %v345, %v344
  %v399 = vpack.c.b16 %v347, %v346
  %v400 = vpack.c.b16 %v349, %v348
  %v401 = vpack.c.b16 %v351, %v350
  %v402 = vpack.c.b16 %v353, %v352
  %v403 = vpack.c.b16 %v355, %v354
  %v404 = vpack.c.b16 %v357, %v356
  %v405 = vpack.c.b16 %v359, %v358
  %v406 = vpack.c.b16 %v361, %v360
  %vm452 = vcmask 654336
  %v454 = vsel %vm452, %v165, 0
  %v457 = vsel %vm452, %v171, 0
  %459 = vmatprep.subr.bf16.mxu0 0
  %460 = vmatpush1.bf16.msra.mxu0 %v362
  %461 = vmatprep.subr.bf16.mxu0 0
  %462 = vmatpush1.bf16.msra.mxu0 %v363
  %463 = vmatprep.subr.bf16.mxu0 0
  %464 = vmatpush1.bf16.msra.mxu0 %v364
  %465 = vmatprep.subr.bf16.mxu0 0
  %466 = vmatpush1.bf16.msra.mxu0 %v365
  %467 = vmatprep.subr.bf16.mxu0 0
  %468 = vmatpush1.bf16.msra.mxu0 %v366
  %469 = vmatprep.subr.bf16.mxu0 0
  %470 = vmatpush1.bf16.msra.mxu0 %v367
  %471 = vmatprep.subr.bf16.mxu0 0
  %472 = vmatpush1.bf16.msra.mxu0 %v368
  %473 = vmatprep.subr.bf16.mxu0 0
  %474 = vmatpush1.bf16.msra.mxu0 %v369
  %475 = vmatprep.subr.bf16.mxu0 0
  %476 = vmatpush1.bf16.msra.mxu0 %v370
  %477 = vmatprep.subr.bf16.mxu0 0
  %478 = vmatpush1.bf16.msra.mxu0 %v371
  %479 = vmatprep.subr.bf16.mxu0 0
  %480 = vmatpush1.bf16.msra.mxu0 %v372
  %481 = vmatprep.subr.bf16.mxu0 0
  %482 = vmatpush1.bf16.msra.mxu0 %v373
  %483 = vmatprep.subr.bf16.mxu0 0
  %484 = vmatpush1.bf16.msra.mxu0 %v374
  %485 = vmatprep.subr.bf16.mxu0 0
  %486 = vmatpush1.bf16.msra.mxu0 %v375
  %487 = vmatprep.subr.bf16.mxu0 0
  %488 = vmatpush1.bf16.msra.mxu0 %v376
  %489 = vmatprep.subr.bf16.mxu0 0
  %490 = vmatpush1.bf16.msra.mxu0 %v377
  %491 = vmatprep.mubr.bf16.mxu0 %v161
  %492 = vmatmul.mubr.bf16.gmra.mrb[0].mxu0 %v160
  %v493 = vpop.f32.mrb[0].mxu0
  %v494 = vadd.f32 %v122, %v493
  %v495 = vpop.f32.mrb[0].mxu0
  %v496 = vpop.f32.mrb[0].mxu0
  %v497 = vadd.f32 %v122, %v496
  %v498 = vpop.f32.mrb[0].mxu0
  %499 = vmatprep.mubr.bf16.mxu0 %v167
  %500 = vmatmul.mubr.bf16.gmra.mrb[0].mxu0 %v166
  %v501 = vpop.f32.mrb[0].mxu0
  %v502 = vadd.f32 %v122, %v501
  %v503 = vpop.f32.mrb[0].mxu0
  %v504 = vpop.f32.mrb[0].mxu0
  %v505 = vadd.f32 %v122, %v504
  %v506 = vpop.f32.mrb[0].mxu0
  %507 = vdwg.mxu0
  %508 = vmatprep.subr.bf16.mxu0 0
  %509 = vmatpush1.bf16.msra.mxu0 %v378
  %510 = vmatprep.subr.bf16.mxu0 0
  %511 = vmatpush1.bf16.msra.mxu0 %v379
  %512 = vmatprep.subr.bf16.mxu0 0
  %513 = vmatpush1.bf16.msra.mxu0 %v380
  %514 = vmatprep.subr.bf16.mxu0 0
  %515 = vmatpush1.bf16.msra.mxu0 %v381
  %516 = vmatprep.subr.bf16.mxu0 0
  %517 = vmatpush1.bf16.msra.mxu0 %v382
  %518 = vmatprep.subr.bf16.mxu0 0
  %519 = vmatpush1.bf16.msra.mxu0 %v383
  %520 = vmatprep.subr.bf16.mxu0 0
  %521 = vmatpush1.bf16.msra.mxu0 %v384
  %522 = vmatprep.subr.bf16.mxu0 0
  %523 = vmatpush1.bf16.msra.mxu0 %v385
  %524 = vmatprep.subr.bf16.mxu0 0
  %525 = vmatpush1.bf16.msra.mxu0 %v386
  %526 = vmatprep.subr.bf16.mxu0 0
  %527 = vmatpush1.bf16.msra.mxu0 %v387
  %528 = vmatprep.subr.bf16.mxu0 0
  %529 = vmatpush1.bf16.msra.mxu0 %v388
  %530 = vmatprep.subr.bf16.mxu0 0
  %531 = vmatpush1.bf16.msra.mxu0 %v389
  %532 = vmatprep.subr.bf16.mxu0 0
  %533 = vmatpush1.bf16.msra.mxu0 %v390
  %534 = vmatprep.subr.bf16.mxu0 0
  %535 = vmatpush1.bf16.msra.mxu0 %v391
  %536 = vmatprep.subr.bf16.mxu0 0
  %537 = vmatpush1.bf16.msra.mxu0 %v392
  %538 = vmatprep.subr.bf16.mxu0 0
  %539 = vmatpush1.bf16.msra.mxu0 %v393
  %540 = vmatprep.mubr.bf16.mxu0 %v163
  %541 = vmatmul.mubr.bf16.gmra.mrb[0].mxu0 %v162
  %v542 = vpop.f32.mrb[0].mxu0
  %v543 = vadd.f32 %v494, %v542
  %v544 = vpop.f32.mrb[0].mxu0
  %v545 = vpop.f32.mrb[0].mxu0
  %v546 = vadd.f32 %v497, %v545
  %v547 = vpop.f32.mrb[0].mxu0
  %548 = vmatprep.mubr.bf16.mxu0 %v169
  %549 = vmatmul.mubr.bf16.gmra.mrb[0].mxu0 %v168
  %v550 = vpop.f32.mrb[0].mxu0
  %v551 = vadd.f32 %v502, %v550
  %v552 = vpop.f32.mrb[0].mxu0
  %v553 = vpop.f32.mrb[0].mxu0
  %v554 = vadd.f32 %v505, %v553
  %v555 = vpop.f32.mrb[0].mxu0
  %556 = vdwg.mxu0
  %557 = vmatprep.subr.bf16.mxu0 0
  %558 = vmatpush1.bf16.msra.mxu0 %v394
  %559 = vmatprep.subr.bf16.mxu0 0
  %560 = vmatpush1.bf16.msra.mxu0 %v395
  %561 = vmatprep.subr.bf16.mxu0 0
  %562 = vmatpush1.bf16.msra.mxu0 %v396
  %563 = vmatprep.subr.bf16.mxu0 0
  %564 = vmatpush1.bf16.msra.mxu0 %v397
  %565 = vmatprep.subr.bf16.mxu0 0
  %566 = vmatpush1.bf16.msra.mxu0 %v398
  %567 = vmatprep.subr.bf16.mxu0 0
  %568 = vmatpush1.bf16.msra.mxu0 %v399
  %569 = vmatprep.subr.bf16.mxu0 0
  %570 = vmatpush1.bf16.msra.mxu0 %v400
  %571 = vmatprep.subr.bf16.mxu0 0
  %572 = vmatpush1.bf16.msra.mxu0 %v401
  %573 = vmatprep.subr.bf16.mxu0 0
  %574 = vmatpush1.bf16.msra.mxu0 %v402
  %575 = vmatprep.subr.bf16.mxu0 0
  %576 = vmatpush1.bf16.msra.mxu0 %v403
  %577 = vmatprep.subr.bf16.mxu0 0
  %578 = vmatpush1.bf16.msra.mxu0 %v404
  %579 = vmatprep.subr.bf16.mxu0 0
  %580 = vmatpush1.bf16.msra.mxu0 %v405
  %581 = vmatprep.subr.bf16.mxu0 0
  %582 = vmatpush1.bf16.msra.mxu0 %v406
  %583 = vmatprep.subr.bf16.mxu0 0
  %584 = vmatpush1.bf16.msra.mxu0 0
  %585 = vmatprep.subr.bf16.mxu0 0
  %586 = vmatpush1.bf16.msra.mxu0 0
  %587 = vmatprep.subr.bf16.mxu0 0
  %588 = vmatpush1.bf16.msra.mxu0 0
  %589 = vmatprep.mubr.bf16.mxu0 %v454
  %590 = vmatmul.mubr.bf16.gmra.mrb[0].mxu0 %v164
  %v591 = vpop.f32.mrb[0].mxu0
  %v592 = vadd.f32 %v543, %v591
  %v593 = vpop.f32.mrb[0].mxu0
  %v594 = vpop.f32.mrb[0].mxu0
  %v595 = vadd.f32 %v546, %v594
  %v596 = vpop.f32.mrb[0].mxu0
  %597 = vmatprep.mubr.bf16.mxu0 %v457
  %598 = vmatmul.mubr.bf16.gmra.mrb[0].mxu0 %v170
  %v599 = vpop.f32.mrb[0].mxu0
  %v600 = vadd.f32 %v551, %v599
  %v601 = vpop.f32.mrb[0].mxu0
  %v602 = vpop.f32.mrb[0].mxu0
  %v603 = vadd.f32 %v554, %v602
  %v604 = vpop.f32.mrb[0].mxu0
  %605 = vdwg.mxu0
  %v606 = vpack.c.bf16 %v595, %v592
  %v607 = vpack.c.bf16 %v603, %v600
  %v610 = vunpack.c.l.b16 %v606
  %v611 = vunpack.c.h.b16 %v606
  %v612 = vunpack.c.l.b16 %v607
  %v613 = vunpack.c.h.b16 %v607
  %v614 = vpack.c.b16 %v610, %v610
  %v615 = vpack.c.b16 %v611, %v611
  %v616 = vpack.c.b16 %v612, %v612
  %v617 = vpack.c.b16 %v613, %v613
  %622 = vst [vmem:[%s3] sm:$0xf] %v614
  %623 = vst [vmem:[%s3 + $0x4] sm:$0xf] %v615
  %624 = vst [vmem:[%s3 + $0x8] sm:$0xf] %v616
  %625 = vst [vmem:[%s3 + $0xc] sm:$0xf] %v617
  // Predicated region
  $region14: #{rnncell_forward.34} parent=0 // pred_check
    _
  $region15: #{rnncell_forward.34} parent=0 // pred_check_branch
    %627 = sbr.rel (0) target = $region17
  $region16: #{rnncell_forward.34} parent=0 // pred_region
    _
  $region17: #{rnncell_forward.34} parent=0 // pred_fallthru
    _
  // Predicated region
  $region18: #{rnncell_forward.34} parent=0 // pred_check
    _
  $region19: #{rnncell_forward.34} parent=0 // pred_check_branch
    %629 = sbr.rel (0) target = $region21
  $region20: #{rnncell_forward.34} parent=0 // pred_region
    _
  $region21: #{rnncell_forward.34} parent=0 // pred_fallthru
    _

// kernel: rnncell_forward.37
$region0: #{rnncell_forward.37}
  #allocation0 [shape = 'u32[]', space=smem, size = 0x4, offset = 0x4, fixed_abs, tag = 'smem constant byte address 0x4 - core index']
  #allocation1 [shape = 'u32[144,128]{1,0:T(1,128)}', space=vmem, size = 0x12000, scoped, tag = 'internal scratch']
  %s0 = inlined_call_operand.vmem [shape: bf16[32,180], index: 0, kind: input, shape index: {}]
  %s1 = inlined_call_operand.vmem [shape: bf16[180,128], index: 1, kind: input, shape index: {}]
  %s2 = inlined_call_operand.vmem [shape: f32[1,128], index: 2, kind: input, shape index: {}]
  %s3 = inlined_call_operand.hbm [shape: bf16[32,128], index: 3, kind: output, shape index: {}]
  %s4 = sld [smem:[#allocation0]]
  $region22: #{rnncell_forward.37} parent=0
    _
  %s6 = ssub.s32 1, %s4
  %s7 = scalar_select 0, %s6, %s4
  $region1: #{rnncell_forward.37} parent=0
    #allocation2 [shape = 'u8[8192]{0}', space=vmem, size = 0x2000, scoped, tag = 'output window, operand 0, single buffered']
    #allocation3 [shape = 's32[1]{0}', space=sflag, size = 0x4, scoped, tag = 'scoped memory for rnncell_forward.37']
    %8 = vsyncpa [#allocation3], 0
    // Predicated region
    $region2: #{rnncell_forward.37} parent=1 // pred_check
      _
    $region3: #{rnncell_forward.37} parent=1 // pred_check_branch
      %10 = sbr.rel (0) target = $region5
    $region4: #{rnncell_forward.37} parent=1 // pred_region
      _
    $region5: #{rnncell_forward.37} parent=1 // pred_fallthru
      _
    // Predicated region
    $region6: #{rnncell_forward.37} parent=1 // pred_check
      _
    $region7: #{rnncell_forward.37} parent=1 // pred_check_branch
      %12 = sbr.rel (0) target = $region9
    $region8: #{rnncell_forward.37} parent=1 // pred_region
      _
    $region9: #{rnncell_forward.37} parent=1 // pred_fallthru
      _
    // Predicated region
    $region10: #{rnncell_forward.37} parent=1 // pred_check
      _
    $region11: #{rnncell_forward.37} parent=1 // pred_check_branch
      %14 = sbr.rel (0) target = $region13
    $region12: #{rnncell_forward.37} parent=1 // pred_region
      _
    $region13: #{rnncell_forward.37} parent=1 // pred_fallthru
      _
    %v16 = vld [vmem:[%s0] sm:$0xff]
    %v17 = vld [vmem:[%s0 + $0x8] sm:$0xff]
    %v18 = vld [vmem:[%s0 + $0x10] sm:$0xff]
    %v19 = vld [vmem:[%s0 + $0x18] sm:$0xff]
    %v20 = vld [vmem:[%s1] sm:$0xf]
    %v21 = vld [vmem:[%s1 + $0x4] sm:$0xf]
    %v22 = vld [vmem:[%s1 + $0x8] sm:$0xf]
    %v23 = vld [vmem:[%s1 + $0xc] sm:$0xf]
    %v24 = vld [vmem:[%s1 + $0x10] sm:$0xf]
    %v25 = vld [vmem:[%s1 + $0x14] sm:$0xf]
    %v26 = vld [vmem:[%s1 + $0x18] sm:$0xf]
    %v27 = vld [vmem:[%s1 + $0x1c] sm:$0xf]
    %v28 = vld [vmem:[%s1 + $0x20] sm:$0xf]
    %v29 = vld [vmem:[%s1 + $0x24] sm:$0xf]
    %v30 = vld [vmem:[%s1 + $0x28] sm:$0xf]
    %v31 = vld [vmem:[%s1 + $0x2c] sm:$0xf]
    %v32 = vld [vmem:[%s1 + $0x30] sm:$0xf]
    %v33 = vld [vmem:[%s1 + $0x34] sm:$0xf]
    %v34 = vld [vmem:[%s1 + $0x38] sm:$0xf]
    %v35 = vld [vmem:[%s1 + $0x3c] sm:$0xf]
    %v36 = vld [vmem:[%s1 + $0x40] sm:$0xf]
    %v37 = vld [vmem:[%s1 + $0x44] sm:$0xf]
    %v38 = vld [vmem:[%s1 + $0x48] sm:$0xf]
    %v39 = vld [vmem:[%s1 + $0x4c] sm:$0xf]
    %v40 = vld [vmem:[%s1 + $0x50] sm:$0xf]
    %v41 = vld [vmem:[%s1 + $0x54] sm:$0xf]
    %v42 = vld [vmem:[%s1 + $0x58] sm:$0x3]
    %v43 = vld [vmem:[%s2] sm:$0x1]
    %v45 = vlaneseq
    %v46 = vshrl.u32 %v45, 7
    %v47 = vsub.s32 0, %v46
    %v48 = vrot.slane %v43, %v47
    %v54 = vunpack.c.l.b16 %v16
    %v55 = vunpack.c.h.b16 %v16
    %v56 = vunpack.c.l.b16 %v17
    %v57 = vunpack.c.h.b16 %v17
    %v58 = vunpack.c.l.b16 %v18
    %v59 = vunpack.c.h.b16 %v18
    %v60 = vunpack.c.l.b16 %v19
    %v61 = vunpack.c.h.b16 %v19
    %v62 = vpack.c.b16 %v56, %v54
    %v63 = vpack.c.b16 %v57, %v55
    %v64 = vpack.c.b16 %v60, %v58
    %v65 = vpack.c.b16 %v61, %v59
    %v91 = vunpack.c.l.b16 %v20
    %v92 = vunpack.c.l.b16 %v21
    %v93 = vunpack.c.l.b16 %v22
    %v94 = vunpack.c.l.b16 %v23
    %v95 = vunpack.c.l.b16 %v24
    %v96 = vunpack.c.l.b16 %v25
    %v97 = vunpack.c.l.b16 %v26
    %v98 = vunpack.c.l.b16 %v27
    %v99 = vunpack.c.l.b16 %v28
    %v100 = vunpack.c.l.b16 %v29
    %v101 = vunpack.c.l.b16 %v30
    %v102 = vunpack.c.l.b16 %v31
    %v103 = vunpack.c.l.b16 %v32
    %v104 = vunpack.c.l.b16 %v33
    %v105 = vunpack.c.l.b16 %v34
    %v106 = vunpack.c.l.b16 %v35
    %v107 = vunpack.c.l.b16 %v36
    %v108 = vunpack.c.l.b16 %v37
    %v109 = vunpack.c.l.b16 %v38
    %v110 = vunpack.c.l.b16 %v39
    %v111 = vunpack.c.l.b16 %v40
    %v112 = vunpack.c.l.b16 %v41
    %v113 = vunpack.c.l.b16 %v42
    %v114 = vpack.c.b16 %v92, %v91
    %v115 = vpack.c.b16 %v94, %v93
    %v116 = vpack.c.b16 %v96, %v95
    %v117 = vpack.c.b16 %v98, %v97
    %v118 = vpack.c.b16 %v100, %v99
    %v119 = vpack.c.b16 %v102, %v101
    %v120 = vpack.c.b16 %v104, %v103
    %v121 = vpack.c.b16 %v106, %v105
    %v122 = vpack.c.b16 %v108, %v107
    %v123 = vpack.c.b16 %v110, %v109
    %v124 = vpack.c.b16 %v112, %v111
    %v125 = vpack.c.b16 %v113, %v113
    %vm137 = vcmask 424960
    %v139 = vsel %vm137, %v63, 0
    %v142 = vsel %vm137, %v65, 0
    %vm144 = vcmask 1041408
    %v146 = vsel %vm144, %v125, 0
    %148 = vmatprep.subr.bf16.mxu0 0
    %149 = vmatpush1.bf16.msra.mxu0 %v114
    %150 = vmatprep.subr.bf16.mxu0 0
    %151 = vmatpush1.bf16.msra.mxu0 %v115
    %152 = vmatprep.subr.bf16.mxu0 0
    %153 = vmatpush1.bf16.msra.mxu0 %v116
    %154 = vmatprep.subr.bf16.mxu0 0
    %155 = vmatpush1.bf16.msra.mxu0 %v117
    %156 = vmatprep.subr.bf16.mxu0 0
    %157 = vmatpush1.bf16.msra.mxu0 %v118
    %158 = vmatprep.subr.bf16.mxu0 0
    %159 = vmatpush1.bf16.msra.mxu0 %v119
    %160 = vmatprep.subr.bf16.mxu0 0
    %161 = vmatpush1.bf16.msra.mxu0 %v120
    %162 = vmatprep.subr.bf16.mxu0 0
    %163 = vmatpush1.bf16.msra.mxu0 %v121
    %164 = vmatprep.subr.bf16.mxu0 0
    %165 = vmatpush1.bf16.msra.mxu0 %v122
    %166 = vmatprep.subr.bf16.mxu0 0
    %167 = vmatpush1.bf16.msra.mxu0 %v123
    %168 = vmatprep.subr.bf16.mxu0 0
    %169 = vmatpush1.bf16.msra.mxu0 %v124
    %170 = vmatprep.subr.bf16.mxu0 0
    %171 = vmatpush1.bf16.msra.mxu0 %v146
    %172 = vmatprep.subr.bf16.mxu0 0
    %173 = vmatpush1.bf16.msra.mxu0 0
    %174 = vmatprep.subr.bf16.mxu0 0
    %175 = vmatpush1.bf16.msra.mxu0 0
    %176 = vmatprep.subr.bf16.mxu0 0
    %177 = vmatpush1.bf16.msra.mxu0 0
    %178 = vmatprep.subr.bf16.mxu0 0
    %179 = vmatpush1.bf16.msra.mxu0 0
    %180 = vmatprep.mubr.bf16.mxu0 %v139
    %181 = vmatmul.mubr.bf16.gmra.mrb[0].mxu0 %v62
    %v182 = vpop.f32.mrb[0].mxu0
    %v183 = vadd.f32 %v48, %v182
    %v184 = vpop.f32.mrb[0].mxu0
    %v185 = vpop.f32.mrb[0].mxu0
    %v186 = vadd.f32 %v48, %v185
    %v187 = vpop.f32.mrb[0].mxu0
    %188 = vmatprep.mubr.bf16.mxu0 %v142
    %189 = vmatmul.mubr.bf16.gmra.mrb[0].mxu0 %v64
    %v190 = vpop.f32.mrb[0].mxu0
    %v191 = vadd.f32 %v48, %v190
    %v192 = vpop.f32.mrb[0].mxu0
    %v193 = vpop.f32.mrb[0].mxu0
    %v194 = vadd.f32 %v48, %v193
    %v195 = vpop.f32.mrb[0].mxu0
    %196 = vdwg.mxu0
    %v197 = vpack.c.bf16 %v186, %v183
    %v198 = vpack.c.bf16 %v194, %v191
    %v201 = vunpack.c.l.b16 %v197
    %v202 = vunpack.c.h.b16 %v197
    %v203 = vunpack.c.l.b16 %v198
    %v204 = vunpack.c.h.b16 %v198
    %v205 = vpack.c.b16 %v201, %v201
    %v206 = vpack.c.b16 %v202, %v202
    %v207 = vpack.c.b16 %v203, %v203
    %v208 = vpack.c.b16 %v204, %v204
    %213 = vst [vmem:[#allocation2] sm:$0xf] %v205
    %214 = vst [vmem:[#allocation2 + $0x4] sm:$0xf] %v206
    %215 = vst [vmem:[#allocation2 + $0x8] sm:$0xf] %v207
    %216 = vst [vmem:[#allocation2 + $0xc] sm:$0xf] %v208
    // Predicated region
    $region14: #{rnncell_forward.37} parent=1 // pred_check
      _
    $region15: #{rnncell_forward.37} parent=1 // pred_check_branch
      %218 = sbr.rel (0) target = $region17
    $region16: #{rnncell_forward.37} parent=1 // pred_region
      %s220 = ssub.s32 256, 256
      %221 = vsyncadd [#allocation3], %s220
      %s222 = sshll.u32 [#allocation2], 4
      %s223 = int_to_ptr.vmem [resolvable:$true] %s222
      %228 = dma.vmem_to_hbm [thread:$0]  %s223, 256, %s3, [#allocation3], 64, 64, 4
    $region17: #{rnncell_forward.37} parent=1 // pred_fallthru
      _
    // Predicated region
    $region18: #{rnncell_forward.37} parent=1 // pred_check
      _
    $region19: #{rnncell_forward.37} parent=1 // pred_check_branch
      %230 = sbr.rel (0) target = $region21
    $region20: #{rnncell_forward.37} parent=1 // pred_region
      %231 = dma.done [#allocation3], 256
    $region21: #{rnncell_forward.37} parent=1 // pred_fallthru
      _
    %232 = vsyncpa [#allocation3], 1

// kernel: rnncell_forward.36
$region0: #{rnncell_forward.36}
  #allocation0 [shape = 'u32[]', space=smem, size = 0x4, offset = 0x4, fixed_abs, tag = 'smem constant byte address 0x4 - core index']
  #allocation1 [shape = 'u32[144,128]{1,0:T(1,128)}', space=vmem, size = 0x12000, scoped, tag = 'internal scratch']
  %s0 = inlined_call_operand.vmem [shape: bf16[32,180], index: 0, kind: input, shape index: {}]
  %s1 = inlined_call_operand.vmem [shape: bf16[180,128], index: 1, kind: input, shape index: {}]
  %s2 = inlined_call_operand.vmem [shape: f32[1,128], index: 2, kind: input, shape index: {}]
  %s3 = inlined_call_operand.vmem [shape: bf16[32,128], index: 3, kind: input, shape index: {}]
  %s4 = inlined_call_operand.vmem [shape: bf16[32,128], index: 4, kind: output, shape index: {}]
  %s5 = sld [smem:[#allocation0]]
  $region26: #{rnncell_forward.36} parent=0
    _
  %s7 = ssub.s32 1, %s5
  %s8 = scalar_select 0, %s7, %s5
  // Predicated region
  $region2: #{rnncell_forward.36} parent=0 // pred_check
    _
  $region3: #{rnncell_forward.36} parent=0 // pred_check_branch
    %10 = sbr.rel (0) target = $region5
  $region4: #{rnncell_forward.36} parent=0 // pred_region
    _
  $region5: #{rnncell_forward.36} parent=0 // pred_fallthru
    _
  // Predicated region
  $region6: #{rnncell_forward.36} parent=0 // pred_check
    _
  $region7: #{rnncell_forward.36} parent=0 // pred_check_branch
    %12 = sbr.rel (0) target = $region9
  $region8: #{rnncell_forward.36} parent=0 // pred_region
    _
  $region9: #{rnncell_forward.36} parent=0 // pred_fallthru
    _
  // Predicated region
  $region10: #{rnncell_forward.36} parent=0 // pred_check
    _
  $region11: #{rnncell_forward.36} parent=0 // pred_check_branch
    %14 = sbr.rel (0) target = $region13
  $region12: #{rnncell_forward.36} parent=0 // pred_region
    _
  $region13: #{rnncell_forward.36} parent=0 // pred_fallthru
    _
  // Predicated region
  $region14: #{rnncell_forward.36} parent=0 // pred_check
    _
  $region15: #{rnncell_forward.36} parent=0 // pred_check_branch
    %16 = sbr.rel (0) target = $region17
  $region16: #{rnncell_forward.36} parent=0 // pred_region
    _
  $region17: #{rnncell_forward.36} parent=0 // pred_fallthru
    _
  %v18 = vld [vmem:[%s0] sm:$0xff]
  %v19 = vld [vmem:[%s0 + $0x8] sm:$0xff]
  %v20 = vld [vmem:[%s0 + $0x10] sm:$0xff]
  %v21 = vld [vmem:[%s0 + $0x18] sm:$0xff]
  %v22 = vld [vmem:[%s1] sm:$0xf]
  %v23 = vld [vmem:[%s1 + $0x4] sm:$0xf]
  %v24 = vld [vmem:[%s1 + $0x8] sm:$0xf]
  %v25 = vld [vmem:[%s1 + $0xc] sm:$0xf]
  %v26 = vld [vmem:[%s1 + $0x10] sm:$0xf]
  %v27 = vld [vmem:[%s1 + $0x14] sm:$0xf]
  %v28 = vld [vmem:[%s1 + $0x18] sm:$0xf]
  %v29 = vld [vmem:[%s1 + $0x1c] sm:$0xf]
  %v30 = vld [vmem:[%s1 + $0x20] sm:$0xf]
  %v31 = vld [vmem:[%s1 + $0x24] sm:$0xf]
  %v32 = vld [vmem:[%s1 + $0x28] sm:$0xf]
  %v33 = vld [vmem:[%s1 + $0x2c] sm:$0xf]
  %v34 = vld [vmem:[%s1 + $0x30] sm:$0xf]
  %v35 = vld [vmem:[%s1 + $0x34] sm:$0xf]
  %v36 = vld [vmem:[%s1 + $0x38] sm:$0xf]
  %v37 = vld [vmem:[%s1 + $0x3c] sm:$0xf]
  %v38 = vld [vmem:[%s1 + $0x40] sm:$0xf]
  %v39 = vld [vmem:[%s1 + $0x44] sm:$0xf]
  %v40 = vld [vmem:[%s1 + $0x48] sm:$0xf]
  %v41 = vld [vmem:[%s1 + $0x4c] sm:$0xf]
  %v42 = vld [vmem:[%s1 + $0x50] sm:$0xf]
  %v43 = vld [vmem:[%s1 + $0x54] sm:$0xf]
  %v44 = vld [vmem:[%s1 + $0x58] sm:$0x3]
  %v45 = vld [vmem:[%s2] sm:$0x1]
  %v47 = vlaneseq
  %v48 = vshrl.u32 %v47, 7
  %v49 = vsub.s32 0, %v48
  %v50 = vrot.slane %v45, %v49
  %v56 = vunpack.c.l.b16 %v18
  %v57 = vunpack.c.h.b16 %v18
  %v58 = vunpack.c.l.b16 %v19
  %v59 = vunpack.c.h.b16 %v19
  %v60 = vunpack.c.l.b16 %v20
  %v61 = vunpack.c.h.b16 %v20
  %v62 = vunpack.c.l.b16 %v21
  %v63 = vunpack.c.h.b16 %v21
  %v64 = vpack.c.b16 %v58, %v56
  %v65 = vpack.c.b16 %v59, %v57
  %v66 = vpack.c.b16 %v62, %v60
  %v67 = vpack.c.b16 %v63, %v61
  %v93 = vunpack.c.l.b16 %v22
  %v94 = vunpack.c.l.b16 %v23
  %v95 = vunpack.c.l.b16 %v24
  %v96 = vunpack.c.l.b16 %v25
  %v97 = vunpack.c.l.b16 %v26
  %v98 = vunpack.c.l.b16 %v27
  %v99 = vunpack.c.l.b16 %v28
  %v100 = vunpack.c.l.b16 %v29
  %v101 = vunpack.c.l.b16 %v30
  %v102 = vunpack.c.l.b16 %v31
  %v103 = vunpack.c.l.b16 %v32
  %v104 = vunpack.c.l.b16 %v33
  %v105 = vunpack.c.l.b16 %v34
  %v106 = vunpack.c.l.b16 %v35
  %v107 = vunpack.c.l.b16 %v36
  %v108 = vunpack.c.l.b16 %v37
  %v109 = vunpack.c.l.b16 %v38
  %v110 = vunpack.c.l.b16 %v39
  %v111 = vunpack.c.l.b16 %v40
  %v112 = vunpack.c.l.b16 %v41
  %v113 = vunpack.c.l.b16 %v42
  %v114 = vunpack.c.l.b16 %v43
  %v115 = vunpack.c.l.b16 %v44
  %v116 = vpack.c.b16 %v94, %v93
  %v117 = vpack.c.b16 %v96, %v95
  %v118 = vpack.c.b16 %v98, %v97
  %v119 = vpack.c.b16 %v100, %v99
  %v120 = vpack.c.b16 %v102, %v101
  %v121 = vpack.c.b16 %v104, %v103
  %v122 = vpack.c.b16 %v106, %v105
  %v123 = vpack.c.b16 %v108, %v107
  %v124 = vpack.c.b16 %v110, %v109
  %v125 = vpack.c.b16 %v112, %v111
  %v126 = vpack.c.b16 %v114, %v113
  %v127 = vpack.c.b16 %v115, %v115
  %vm139 = vcmask 424960
  %v141 = vsel %vm139, %v65, 0
  %v144 = vsel %vm139, %v67, 0
  %vm146 = vcmask 1041408
  %v148 = vsel %vm146, %v127, 0
  %150 = vmatprep.subr.bf16.mxu0 0
  %151 = vmatpush1.bf16.msra.mxu0 %v116
  %152 = vmatprep.subr.bf16.mxu0 0
  %153 = vmatpush1.bf16.msra.mxu0 %v117
  %154 = vmatprep.subr.bf16.mxu0 0
  %155 = vmatpush1.bf16.msra.mxu0 %v118
  %156 = vmatprep.subr.bf16.mxu0 0
  %157 = vmatpush1.bf16.msra.mxu0 %v119
  %158 = vmatprep.subr.bf16.mxu0 0
  %159 = vmatpush1.bf16.msra.mxu0 %v120
  %160 = vmatprep.subr.bf16.mxu0 0
  %161 = vmatpush1.bf16.msra.mxu0 %v121
  %162 = vmatprep.subr.bf16.mxu0 0
  %163 = vmatpush1.bf16.msra.mxu0 %v122
  %164 = vmatprep.subr.bf16.mxu0 0
  %165 = vmatpush1.bf16.msra.mxu0 %v123
  %166 = vmatprep.subr.bf16.mxu0 0
  %167 = vmatpush1.bf16.msra.mxu0 %v124
  %168 = vmatprep.subr.bf16.mxu0 0
  %169 = vmatpush1.bf16.msra.mxu0 %v125
  %170 = vmatprep.subr.bf16.mxu0 0
  %171 = vmatpush1.bf16.msra.mxu0 %v126
  %172 = vmatprep.subr.bf16.mxu0 0
  %173 = vmatpush1.bf16.msra.mxu0 %v148
  %174 = vmatprep.subr.bf16.mxu0 0
  %175 = vmatpush1.bf16.msra.mxu0 0
  %176 = vmatprep.subr.bf16.mxu0 0
  %177 = vmatpush1.bf16.msra.mxu0 0
  %178 = vmatprep.subr.bf16.mxu0 0
  %179 = vmatpush1.bf16.msra.mxu0 0
  %180 = vmatprep.subr.bf16.mxu0 0
  %181 = vmatpush1.bf16.msra.mxu0 0
  %182 = vmatprep.mubr.bf16.mxu0 %v141
  %183 = vmatmul.mubr.bf16.gmra.mrb[0].mxu0 %v64
  %v184 = vpop.f32.mrb[0].mxu0
  %v185 = vadd.f32 %v50, %v184
  %v186 = vpop.f32.mrb[0].mxu0
  %v187 = vpop.f32.mrb[0].mxu0
  %v188 = vadd.f32 %v50, %v187
  %v189 = vpop.f32.mrb[0].mxu0
  %190 = vmatprep.mubr.bf16.mxu0 %v144
  %191 = vmatmul.mubr.bf16.gmra.mrb[0].mxu0 %v66
  %v192 = vpop.f32.mrb[0].mxu0
  %v193 = vadd.f32 %v50, %v192
  %v194 = vpop.f32.mrb[0].mxu0
  %v195 = vpop.f32.mrb[0].mxu0
  %v196 = vadd.f32 %v50, %v195
  %v197 = vpop.f32.mrb[0].mxu0
  %198 = vdwg.mxu0
  %v199 = vld [vmem:[%s3] sm:$0xf]
  %v200 = vld [vmem:[%s3 + $0x4] sm:$0xf]
  %v201 = vld [vmem:[%s3 + $0x8] sm:$0xf]
  %v202 = vld [vmem:[%s3 + $0xc] sm:$0xf]
  %v203 = vunpack.c.l.bf16 %v199
  %v204 = vunpack.c.l.bf16 %v200
  %v205 = vunpack.c.l.bf16 %v201
  %v206 = vunpack.c.l.bf16 %v202
  %v207 = vadd.f32 %v185, %v203
  %v208 = vadd.f32 %v188, %v204
  %v209 = vadd.f32 %v193, %v205
  %v210 = vadd.f32 %v196, %v206
  %v211 = vpack.c.bf16 %v208, %v207
  %v212 = vpack.c.bf16 %v210, %v209
  %v215 = vunpack.c.l.b16 %v211
  %v216 = vunpack.c.h.b16 %v211
  %v217 = vunpack.c.l.b16 %v212
  %v218 = vunpack.c.h.b16 %v212
  %v219 = vpack.c.b16 %v215, %v215
  %v220 = vpack.c.b16 %v216, %v216
  %v221 = vpack.c.b16 %v217, %v217
  %v222 = vpack.c.b16 %v218, %v218
  %227 = vst [vmem:[%s4] sm:$0xf] %v219
  %228 = vst [vmem:[%s4 + $0x4] sm:$0xf] %v220
  %229 = vst [vmem:[%s4 + $0x8] sm:$0xf] %v221
  %230 = vst [vmem:[%s4 + $0xc] sm:$0xf] %v222
  // Predicated region
  $region18: #{rnncell_forward.36} parent=0 // pred_check
    _
  $region19: #{rnncell_forward.36} parent=0 // pred_check_branch
    %232 = sbr.rel (0) target = $region21
  $region20: #{rnncell_forward.36} parent=0 // pred_region
    _
  $region21: #{rnncell_forward.36} parent=0 // pred_fallthru
    _
  // Predicated region
  $region22: #{rnncell_forward.36} parent=0 // pred_check
    _
  $region23: #{rnncell_forward.36} parent=0 // pred_check_branch
    %234 = sbr.rel (0) target = $region25
  $region24: #{rnncell_forward.36} parent=0 // pred_region
    _
  $region25: #{rnncell_forward.36} parent=0 // pred_fallthru
    _

</llo_original>
